<compile_context>
chip_gen: v7x
topology: tpu7x:2x2x1
jax: 0.10.0
libtpu: 0.0.40
codegen_flags: <defaults>
</compile_context>

<pallas_src>
import math
import numpy as np
import jax
import jax.numpy as jnp
from jax import lax
from jax.experimental import pallas as pl
from jax.experimental.pallas import tpu as pltpu

# ---- sizes (small, but structurally consistent with DeepFamMHA) -------------
B        = 2
SEQ_LEN  = 110                            # module hard-codes 110 in pool_out_len
C_IN     = 4
KSIZES   = (10, 15)                       # conv_kernel_size
POOL     = 3
P_OUT    = int(1 + (SEQ_LEN - POOL) / POOL)   # 36
PGRP     = 40                             # tap-group rows padded 36 -> 40 (sublane multiple)
GROWS    = POOL * PGRP                    # 120 im2col rows per sample
CONV_OUT = 32                             # conv_out_dim (scaled down)
C_EACH   = CONV_OUT // len(KSIZES)        # 16
E        = 32                             # mha_embed_dim
NHEAD    = 4
HDIM     = E // NHEAD                     # 8
HID      = 32                             # fc_hidden_dim
FC_IN    = E * P_OUT                      # 1152
KTOT     = sum(KSIZES) * C_IN             # 100 (both branches' im2col columns)
KPAD     = 128                            # conv K padded to a full lane group
TCOLS    = P_OUT * HID                    # 1152 (fused outproj+FC1 matmul width)

# softmax denominator uses the EUP approximate reciprocal (documented deviation
# from torch.softmax; well inside the test tolerance).  Set False for exact divide.
APPROX_RECIP = True


# ----------------------------- Pallas kernel ---------------------------------
def fused_kernel(xcol_ref, wc_ref, wqkv_ref, qkvb_ref, wfold_ref,
                 wf2_ref, wf3_ref, bias_ref, o_ref):
    """Whole batch in one step: conv+pool, fused QKV MHA, fused outproj+FC head."""
    f32, bf16 = jnp.float32, jnp.bfloat16

    # ---- both conv branches + both samples + ReLU as ONE matmul -------------
    c = jnp.dot(xcol_ref[...], wc_ref[...], preferred_element_type=f32)
    c = jnp.maximum(c + bias_ref[0:1, :], 0.0)                    # (B*120, 32)

    # diagonal-block selector for the fused (out-proj + flatten + FC1) reduction
    # (built once; shared by all samples)
    row = lax.broadcasted_iota(jnp.int32, (P_OUT, TCOLS), 0)
    col = lax.broadcasted_iota(jnp.int32, (P_OUT, TCOLS), 1)
    dmask = (col >= row * HID) & (col < (row + 1) * HID)

    h1_rows = []
    for b in range(B):                                            # static, B=2
        cb = c[b * GROWS:(b + 1) * GROWS]                         # (120, 32)
        # MaxPool1d(3): groups start at sublane-aligned offsets 0/40/80
        pooled = jnp.maximum(jnp.maximum(cb[0:P_OUT], cb[PGRP:PGRP + P_OUT]),
                             cb[2 * PGRP:2 * PGRP + P_OUT])       # (36, 32)

        # ---- fused q|k|v projection (pos-enc + biases pre-folded into qkvb) -
        qkv = jnp.dot(pooled.astype(bf16), wqkv_ref[...],
                      preferred_element_type=f32) + qkvb_ref[...]  # (36, 96) f32

        heads = []
        for h in range(NHEAD):                                    # static, 4 heads
            qh = qkv[:, h * HDIM:(h + 1) * HDIM].astype(bf16)
            kh = qkv[:, E + h * HDIM:E + (h + 1) * HDIM].astype(bf16)
            vh = qkv[:, 2 * E + h * HDIM:2 * E + (h + 1) * HDIM].astype(bf16)
            # scores: contract the head dim of q and k (1/sqrt(d) folded into Wq)
            s = lax.dot_general(qh, kh, (((1,), (1,)), ((), ())),
                                preferred_element_type=f32)       # (36, 36)
            m = jnp.max(s, axis=-1, keepdims=True)
            e = jnp.exp(s - m)
            denom = jnp.sum(e, axis=-1, keepdims=True)
            if APPROX_RECIP:
                a = e * pl.reciprocal(denom, approx=True)
            else:
                a = e / denom
            heads.append(jnp.dot(a.astype(bf16), vh,
                                 preferred_element_type=f32))     # (36, 8)
        oc = jnp.concatenate(heads, axis=-1).astype(bf16)         # (36, 32)

        # ---- MHA out-proj + Flatten + FC1 fused into ONE matmul -------------
        # t[p, p*HID + j] holds position p's contribution to h1[j]
        t = jnp.dot(oc, wfold_ref[...], preferred_element_type=f32)     # (36, 1152)
        s1 = jnp.sum(jnp.where(dmask, t, 0.0), axis=0, keepdims=True)   # (1, 1152)
        u = s1[:, 0:128]
        for g in range(1, TCOLS // 128):                          # fold 9 lane groups
            u = u + s1[:, g * 128:(g + 1) * 128]
        h1b = u[:, 0:HID]
        for q in range(1, 128 // HID):                            # fold 4 blocks of 32
            h1b = h1b + u[:, q * HID:(q + 1) * HID]               # (1, 32)
        h1_rows.append(h1b)

    # ---- fc head (M = B), dropout = identity ---------------------------------
    h1 = jnp.maximum(jnp.concatenate(h1_rows, axis=0) + bias_ref[1:2, :], 0.0)
    h2 = jnp.maximum(jnp.dot(h1.astype(bf16), wf2_ref[...],
                             preferred_element_type=f32) + bias_ref[2:3, :], 0.0)
    y = jnp.dot(h2.astype(bf16), wf3_ref[...],
                preferred_element_type=f32) + bias_ref[3:4, 0:1]  # (B, 1)
    o_ref[...] = y.astype(o_ref.dtype)


# ------------------------------- glue (wrapper) -------------------------------
def positional_encoding(n_pos, channels):
    ch = int(math.ceil(channels / 2) * 2)
    inv_freq = 1.0 / (10000.0 ** (jnp.arange(0, ch, 2, dtype=jnp.float32) / ch))
    pos = jnp.arange(n_pos, dtype=jnp.float32)
    sin_inp = pos[:, None] * inv_freq[None, :]
    emb = jnp.concatenate([jnp.sin(sin_inp), jnp.cos(sin_inp)], axis=-1)
    return emb[:, :channels]                       # (n_pos, channels)


def build_xcol(x):
    """im2col for BOTH conv branches, MaxPool taps folded into row groups.

    Tap groups are padded 36->40 rows (sublane aligned) and the column count is
    padded 100->128 (lane-exact K).  Returns (B*120, 128); pure data movement.
    """
    base = POOL * jnp.arange(P_OUT)
    branches = []
    for k in KSIZES:
        left = (k - 1) // 2
        right = (k - 1) - left                      # PyTorch 'same' padding split
        xpad = jnp.pad(x, ((0, 0), (left, right), (0, 0)))
        taps = jnp.arange(k)
        groups = []
        for j in range(POOL):
            idx = base[:, None] + j + taps[None, :]           # (P_OUT, k)
            g = xpad[:, idx, :].reshape(B, P_OUT, k * C_IN)   # (B, 36, k*C_IN)
            g = jnp.pad(g, ((0, 0), (0, PGRP - P_OUT), (0, 0)))
            groups.append(g)                                  # (B, 40, k*C_IN)
        branches.append(jnp.concatenate(groups, axis=1))      # (B, 120, k*C_IN)
    xcol = jnp.concatenate(branches, axis=-1)                 # (B, 120, 100)
    xcol = jnp.pad(xcol, ((0, 0), (0, 0), (0, KPAD - KTOT)))  # (B, 120, 128)
    return xcol.reshape(B * GROWS, KPAD)


def init_params(key):
    keys = iter(jax.random.split(key, 32))

    def w(shape):
        return jax.random.normal(next(keys), shape, jnp.float32) / math.sqrt(shape[0])

    def b(shape):
        return jax.random.normal(next(keys), shape, jnp.float32) * 0.01

    p = {}
    p['wc1'] = w((KSIZES[0] * C_IN, C_EACH)); p['bc1'] = b((1, C_EACH))
    p['wc2'] = w((KSIZES[1] * C_IN, C_EACH)); p['bc2'] = b((1, C_EACH))
    for name in ('q1', 'k1', 'v1', 'q2', 'k2', 'v2', 'o'):
        p['w' + name] = w((E, E)); p['b' + name] = b((1, E))
    p['wf1'] = w((FC_IN, HID)); p['bf1'] = b((1, HID))
    p['wf2'] = w((HID, HID));   p['bf2'] = b((1, HID))
    p['wf3'] = w((HID, 1));     p['bf3'] = b((1, 1))
    return p


def fold_params(p):
    """Exact algebraic folding done once in the wrapper; MXU operands -> bf16."""
    bf16 = jnp.bfloat16
    scale = 1.0 / math.sqrt(HDIM)

    def fold(w1, b1, w2, b2):                      # Linear∘Linear -> one Linear
        return w1 @ w2, b1 @ w2 + b2

    wq, bq = fold(p['wq1'], p['bq1'], p['wq2'], p['bq2'])
    wk, bk = fold(p['wk1'], p['bk1'], p['wk2'], p['bk2'])
    wv, bv = fold(p['wv1'], p['bv1'], p['wv2'], p['bv2'])
    wq, bq = wq * scale, bq * scale                # fold 1/sqrt(HDIM) into q

    # fused q|k|v projection; pos-enc + biases pre-folded into one additive term
    # (bk is a softmax no-op, but keeping it in the fold is free and exact)
    wqkv = jnp.concatenate([wq, wk, wv], axis=1)                  # (E, 3E)
    pe = positional_encoding(P_OUT, CONV_OUT)                     # (36, 32)
    qkv_bias = pe @ wqkv + jnp.concatenate([bq, bk, bv], axis=1)  # (36, 96) f32

    # block-diagonal conv weight covering both branches, K padded to 128
    wc = jnp.zeros((KPAD, CONV_OUT), jnp.float32)
    wc = wc.at[:KSIZES[0] * C_IN, :C_EACH].set(p['wc1'])
    wc = wc.at[KSIZES[0] * C_IN:KTOT, C_EACH:].set(p['wc2'])

    # MHA out-projection folded into FC1 (consumed via diag-block reduction):
    #   wfold[d, p*HID + j] = sum_e wo[d,e] * wf1[p*E + e, j]
    w1r = p['wf1'].reshape(P_OUT, E, HID)
    wfold = jnp.einsum('de,pej->dpj', p['wo'], w1r).reshape(E, TCOLS)
    bf1p = p['bf1'] + p['bo'] @ w1r.sum(axis=0)                   # bo folded into bf1

    # pack all small biases into a single (4, 32) f32 slab
    bc = jnp.concatenate([p['bc1'], p['bc2']], axis=-1)           # (1, 32)
    bf3pad = jnp.pad(p['bf3'], ((0, 0), (0, HID - 1)))
    biases = jnp.concatenate([bc, bf1p, p['bf2'], bf3pad], axis=0)  # (4, 32)

    return dict(
        wc=wc.astype(bf16), wqkv=wqkv.astype(bf16), qkv_bias=qkv_bias,
        wfold=wfold.astype(bf16),
        wf2=p['wf2'].astype(bf16), wf3=p['wf3'].astype(bf16),
        biases=biases,
    )


def _full_spec(a):
    return pl.BlockSpec(a.shape, lambda i: (0, 0))   # all kernel inputs are 2-D


@jax.jit
def deepfam_mha_forward(x, params):
    # x: (B, SEQ_LEN, C_IN) float32
    xcol = build_xcol(x).astype(jnp.bfloat16)          # (B*120, 128)
    f = fold_params(params)

    args = (xcol, f['wc'], f['wqkv'], f['qkv_bias'], f['wfold'],
            f['wf2'], f['wf3'], f['biases'])

    out = pl.pallas_call(
        fused_kernel,
        out_shape=jax.ShapeDtypeStruct((B, 1), jnp.float32),
        grid=(1,),                                     # whole batch in one step
        in_specs=[_full_spec(a) for a in args],
        out_specs=pl.BlockSpec((B, 1), lambda i: (0, 0)),
        compiler_params=pltpu.CompilerParams(dimension_semantics=("arbitrary",)),
    )(*args)
    return out[:, 0]                                   # .squeeze()


# --------------------------- pure-JAX reference (f32) -------------------------
def reference_forward(x, params):
    pe = positional_encoding(P_OUT, CONV_OUT)
    convs = []
    for k, (wc, bc) in zip(KSIZES, ((params['wc1'], params['bc1']),
                                    (params['wc2'], params['bc2']))):
        left = (k - 1) // 2
        right = (k - 1) - left
        xpad = jnp.pad(x, ((0, 0), (left, right), (0, 0)))
        idx = jnp.arange(SEQ_LEN)[:, None] + jnp.arange(k)[None, :]
        win = xpad[:, idx, :].reshape(B, SEQ_LEN, k * C_IN)
        c = jnp.maximum(win @ wc + bc, 0.0)
        pooled = c[:, :P_OUT * POOL].reshape(B, P_OUT, POOL, C_EACH).max(axis=2)
        convs.append(pooled)
    h = jnp.concatenate(convs, axis=-1) + pe[None]

    def lin(v, w, bias):
        return v @ w + bias

    q = lin(lin(h, params['wq1'], params['bq1']), params['wq2'], params['bq2'])
    k_ = lin(lin(h, params['wk1'], params['bk1']), params['wk2'], params['bk2'])
    v_ = lin(lin(h, params['wv1'], params['bv1']), params['wv2'], params['bv2'])
    qh = q.reshape(B, P_OUT, NHEAD, HDIM)
    kh = k_.reshape(B, P_OUT, NHEAD, HDIM)
    vh = v_.reshape(B, P_OUT, NHEAD, HDIM)
    s = jnp.einsum('bqhd,bkhd->bhqk', qh, kh) / math.sqrt(HDIM)
    a = jax.nn.softmax(s, axis=-1)
    o = jnp.einsum('bhqk,bkhd->bqhd', a, vh).reshape(B, P_OUT, E)
    o = lin(o, params['wo'], params['bo'])
    flat = o.reshape(B, FC_IN)
    f = jnp.maximum(flat @ params['wf1'] + params['bf1'], 0.0)
    f = jnp.maximum(f @ params['wf2'] + params['bf2'], 0.0)
    y = f @ params['wf3'] + params['bf3']
    return y[:, 0]


if __name__ == "__main__":
    key = jax.random.PRNGKey(0)
    kx, kp = jax.random.split(key)
    x = jax.random.normal(kx, (B, SEQ_LEN, C_IN), jnp.float32)
    params = init_params(kp)

    y = jax.block_until_ready(deepfam_mha_forward(x, params))
    y_ref = jax.block_until_ready(reference_forward(x, params))

    assert y.shape == (B,)
    # tolerance accounts for bf16 MXU operands (f32 accumulation) and the EUP
    # approximate reciprocal in softmax vs the f32 reference
    np.testing.assert_allclose(np.asarray(y), np.asarray(y_ref), rtol=5e-2, atol=5e-2)
    print("KERNEL_OK")
</pallas_src>

<mosaic_0001>
module attributes {stable_mosaic.version = 11 : i64} {
  func.func @fused_kernel(%arg0: i32, %arg1: memref<240x128xbf16, #tpu.memory_space<vmem>>, %arg2: memref<128x32xbf16, #tpu.memory_space<vmem>>, %arg3: memref<32x96xbf16, #tpu.memory_space<vmem>>, %arg4: memref<36x96xf32, #tpu.memory_space<vmem>>, %arg5: memref<32x1152xbf16, #tpu.memory_space<vmem>>, %arg6: memref<32x32xbf16, #tpu.memory_space<vmem>>, %arg7: memref<32x1xbf16, #tpu.memory_space<vmem>>, %arg8: memref<4x32xf32, #tpu.memory_space<vmem>>, %arg9: memref<2x1xf32, #tpu.memory_space<vmem>>) attributes {dimension_semantics = [#tpu.dimension_semantics<arbitrary>], iteration_bounds = array<i64: 1>, scalar_prefetch = 0 : i64, scratch_operands = 0 : i64, tpu.core_type = #tpu.core_type<tc>, window_params = [{pipeline_mode = #tpu.pipeline_mode<synchronous>, transform_indices = @transform_0, window_bounds = array<i64: 240, 128>}, {pipeline_mode = #tpu.pipeline_mode<synchronous>, transform_indices = @transform_1, window_bounds = array<i64: 128, 32>}, {pipeline_mode = #tpu.pipeline_mode<synchronous>, transform_indices = @transform_2, window_bounds = array<i64: 32, 96>}, {pipeline_mode = #tpu.pipeline_mode<synchronous>, transform_indices = @transform_3, window_bounds = array<i64: 36, 96>}, {pipeline_mode = #tpu.pipeline_mode<synchronous>, transform_indices = @transform_4, window_bounds = array<i64: 32, 1152>}, {pipeline_mode = #tpu.pipeline_mode<synchronous>, transform_indices = @transform_5, window_bounds = array<i64: 32, 32>}, {pipeline_mode = #tpu.pipeline_mode<synchronous>, transform_indices = @transform_6, window_bounds = array<i64: 32, 1>}, {pipeline_mode = #tpu.pipeline_mode<synchronous>, transform_indices = @transform_7, window_bounds = array<i64: 4, 32>}, {pipeline_mode = #tpu.pipeline_mode<synchronous>, transform_indices = @transform_8, window_bounds = array<i64: 2, 1>}]} {
    %c0 = arith.constant 0 : index
    %c0_0 = arith.constant 0 : index
    %0 = vector.load %arg1[%c0, %c0_0] : memref<240x128xbf16, #tpu.memory_space<vmem>>, vector<240x128xbf16>
    %c0_1 = arith.constant 0 : index
    %c0_2 = arith.constant 0 : index
    %1 = vector.load %arg2[%c0_1, %c0_2] : memref<128x32xbf16, #tpu.memory_space<vmem>>, vector<128x32xbf16>
    %cst = arith.constant dense<0.000000e+00> : vector<240x32xf32>
    %2 = tpu.matmul %0, %1, %cst {dimension_numbers = #tpu.dot_dimension_numbers<[1], [0], [0], [1], [0, 0, 1, 1], [], []>} : vector<240x128xbf16>, vector<128x32xbf16>, vector<240x32xf32> -> vector<240x32xf32>
    %c0_3 = arith.constant 0 : index
    %c0_4 = arith.constant 0 : index
    %3 = vector.load %arg8[%c0_3, %c0_4] : memref<4x32xf32, #tpu.memory_space<vmem>>, vector<1x32xf32>
    %4 = vector.broadcast %3 : vector<1x32xf32> to vector<240x32xf32>
    %5 = arith.addf %2, %4 : vector<240x32xf32>
    %cst_5 = arith.constant 0.000000e+00 : f32
    %6 = vector.broadcast %cst_5 : f32 to vector<240x32xf32>
    %7 = arith.maximumf %5, %6 : vector<240x32xf32>
    %8 = tpu.iota {dimensions = array<i32: 0>} : vector<36x1152xi32>
    %9 = tpu.iota {dimensions = array<i32: 1>} : vector<36x1152xi32>
    %c32_i32 = arith.constant 32 : i32
    %10 = vector.broadcast %c32_i32 : i32 to vector<36x1152xi32>
    %11 = arith.muli %8, %10 : vector<36x1152xi32>
    %12 = arith.cmpi sge, %9, %11 : vector<36x1152xi32>
    %c1_i32 = arith.constant 1 : i32
    %13 = vector.broadcast %c1_i32 : i32 to vector<36x1152xi32>
    %14 = arith.addi %8, %13 : vector<36x1152xi32>
    %c32_i32_6 = arith.constant 32 : i32
    %15 = vector.broadcast %c32_i32_6 : i32 to vector<36x1152xi32>
    %16 = arith.muli %14, %15 : vector<36x1152xi32>
    %17 = arith.cmpi slt, %9, %16 : vector<36x1152xi32>
    %18 = arith.andi %12, %17 : vector<36x1152xi1>
    %19 = vector.extract_strided_slice %7 {offsets = [0, 0], sizes = [120, 32], strides = [1, 1]} : vector<240x32xf32> to vector<120x32xf32>
    %20 = vector.extract_strided_slice %19 {offsets = [0, 0], sizes = [36, 32], strides = [1, 1]} : vector<120x32xf32> to vector<36x32xf32>
    %21 = vector.extract_strided_slice %19 {offsets = [40, 0], sizes = [36, 32], strides = [1, 1]} : vector<120x32xf32> to vector<36x32xf32>
    %22 = arith.maximumf %20, %21 : vector<36x32xf32>
    %23 = vector.extract_strided_slice %19 {offsets = [80, 0], sizes = [36, 32], strides = [1, 1]} : vector<120x32xf32> to vector<36x32xf32>
    %24 = arith.maximumf %22, %23 : vector<36x32xf32>
    %25 = arith.truncf %24 : vector<36x32xf32> to vector<36x32xbf16>
    %c0_7 = arith.constant 0 : index
    %c0_8 = arith.constant 0 : index
    %26 = vector.load %arg3[%c0_7, %c0_8] : memref<32x96xbf16, #tpu.memory_space<vmem>>, vector<32x96xbf16>
    %cst_9 = arith.constant dense<0.000000e+00> : vector<36x96xf32>
    %27 = tpu.matmul %25, %26, %cst_9 {dimension_numbers = #tpu.dot_dimension_numbers<[1], [0], [0], [1], [0, 0, 1, 1], [], []>} : vector<36x32xbf16>, vector<32x96xbf16>, vector<36x96xf32> -> vector<36x96xf32>
    %c0_10 = arith.constant 0 : index
    %c0_11 = arith.constant 0 : index
    %28 = vector.load %arg4[%c0_10, %c0_11] : memref<36x96xf32, #tpu.memory_space<vmem>>, vector<36x96xf32>
    %29 = arith.addf %27, %28 : vector<36x96xf32>
    %30 = vector.extract_strided_slice %29 {offsets = [0, 0], sizes = [36, 8], strides = [1, 1]} : vector<36x96xf32> to vector<36x8xf32>
    %31 = arith.truncf %30 : vector<36x8xf32> to vector<36x8xbf16>
    %32 = vector.extract_strided_slice %29 {offsets = [0, 32], sizes = [36, 8], strides = [1, 1]} : vector<36x96xf32> to vector<36x8xf32>
    %33 = arith.truncf %32 : vector<36x8xf32> to vector<36x8xbf16>
    %34 = vector.extract_strided_slice %29 {offsets = [0, 64], sizes = [36, 8], strides = [1, 1]} : vector<36x96xf32> to vector<36x8xf32>
    %35 = arith.truncf %34 : vector<36x8xf32> to vector<36x8xbf16>
    %cst_12 = arith.constant dense<0.000000e+00> : vector<36x36xf32>
    %36 = tpu.matmul %31, %33, %cst_12 {dimension_numbers = #tpu.dot_dimension_numbers<[1], [1], [0], [0], [0, 0, 1, 0], [], []>} : vector<36x8xbf16>, vector<36x8xbf16>, vector<36x36xf32> -> vector<36x36xf32>
    %cst_13 = arith.constant dense<0xFF800000> : vector<36xf32>
    %37 = vector.multi_reduction <maximumf>, %36, %cst_13 [1] : vector<36x36xf32> to vector<36xf32>
    %38 = vector.shape_cast %37 : vector<36xf32> to vector<36x1xf32>
    %39 = vector.broadcast %38 : vector<36x1xf32> to vector<36x36xf32>
    %40 = arith.subf %36, %39 : vector<36x36xf32>
    %41 = math.exp %40 : vector<36x36xf32>
    %cst_14 = arith.constant dense<0.000000e+00> : vector<36xf32>
    %42 = vector.multi_reduction <add>, %41, %cst_14 [1] : vector<36x36xf32> to vector<36xf32>
    %43 = vector.shape_cast %42 : vector<36xf32> to vector<36x1xf32>
    %44 = tpu.reciprocal %43 {approx = true} : vector<36x1xf32> -> vector<36x1xf32>
    %45 = vector.broadcast %44 : vector<36x1xf32> to vector<36x36xf32>
    %46 = arith.mulf %41, %45 : vector<36x36xf32>
    %47 = arith.truncf %46 : vector<36x36xf32> to vector<36x36xbf16>
    %cst_15 = arith.constant dense<0.000000e+00> : vector<36x8xf32>
    %48 = tpu.matmul %47, %35, %cst_15 {dimension_numbers = #tpu.dot_dimension_numbers<[1], [0], [0], [1], [0, 0, 1, 1], [], []>} : vector<36x36xbf16>, vector<36x8xbf16>, vector<36x8xf32> -> vector<36x8xf32>
    %49 = vector.extract_strided_slice %29 {offsets = [0, 8], sizes = [36, 8], strides = [1, 1]} : vector<36x96xf32> to vector<36x8xf32>
    %50 = arith.truncf %49 : vector<36x8xf32> to vector<36x8xbf16>
    %51 = vector.extract_strided_slice %29 {offsets = [0, 40], sizes = [36, 8], strides = [1, 1]} : vector<36x96xf32> to vector<36x8xf32>
    %52 = arith.truncf %51 : vector<36x8xf32> to vector<36x8xbf16>
    %53 = vector.extract_strided_slice %29 {offsets = [0, 72], sizes = [36, 8], strides = [1, 1]} : vector<36x96xf32> to vector<36x8xf32>
    %54 = arith.truncf %53 : vector<36x8xf32> to vector<36x8xbf16>
    %cst_16 = arith.constant dense<0.000000e+00> : vector<36x36xf32>
    %55 = tpu.matmul %50, %52, %cst_16 {dimension_numbers = #tpu.dot_dimension_numbers<[1], [1], [0], [0], [0, 0, 1, 0], [], []>} : vector<36x8xbf16>, vector<36x8xbf16>, vector<36x36xf32> -> vector<36x36xf32>
    %cst_17 = arith.constant dense<0xFF800000> : vector<36xf32>
    %56 = vector.multi_reduction <maximumf>, %55, %cst_17 [1] : vector<36x36xf32> to vector<36xf32>
    %57 = vector.shape_cast %56 : vector<36xf32> to vector<36x1xf32>
    %58 = vector.broadcast %57 : vector<36x1xf32> to vector<36x36xf32>
    %59 = arith.subf %55, %58 : vector<36x36xf32>
    %60 = math.exp %59 : vector<36x36xf32>
    %cst_18 = arith.constant dense<0.000000e+00> : vector<36xf32>
    %61 = vector.multi_reduction <add>, %60, %cst_18 [1] : vector<36x36xf32> to vector<36xf32>
    %62 = vector.shape_cast %61 : vector<36xf32> to vector<36x1xf32>
    %63 = tpu.reciprocal %62 {approx = true} : vector<36x1xf32> -> vector<36x1xf32>
    %64 = vector.broadcast %63 : vector<36x1xf32> to vector<36x36xf32>
    %65 = arith.mulf %60, %64 : vector<36x36xf32>
    %66 = arith.truncf %65 : vector<36x36xf32> to vector<36x36xbf16>
    %cst_19 = arith.constant dense<0.000000e+00> : vector<36x8xf32>
    %67 = tpu.matmul %66, %54, %cst_19 {dimension_numbers = #tpu.dot_dimension_numbers<[1], [0], [0], [1], [0, 0, 1, 1], [], []>} : vector<36x36xbf16>, vector<36x8xbf16>, vector<36x8xf32> -> vector<36x8xf32>
    %68 = vector.extract_strided_slice %29 {offsets = [0, 16], sizes = [36, 8], strides = [1, 1]} : vector<36x96xf32> to vector<36x8xf32>
    %69 = arith.truncf %68 : vector<36x8xf32> to vector<36x8xbf16>
    %70 = vector.extract_strided_slice %29 {offsets = [0, 48], sizes = [36, 8], strides = [1, 1]} : vector<36x96xf32> to vector<36x8xf32>
    %71 = arith.truncf %70 : vector<36x8xf32> to vector<36x8xbf16>
    %72 = vector.extract_strided_slice %29 {offsets = [0, 80], sizes = [36, 8], strides = [1, 1]} : vector<36x96xf32> to vector<36x8xf32>
    %73 = arith.truncf %72 : vector<36x8xf32> to vector<36x8xbf16>
    %cst_20 = arith.constant dense<0.000000e+00> : vector<36x36xf32>
    %74 = tpu.matmul %69, %71, %cst_20 {dimension_numbers = #tpu.dot_dimension_numbers<[1], [1], [0], [0], [0, 0, 1, 0], [], []>} : vector<36x8xbf16>, vector<36x8xbf16>, vector<36x36xf32> -> vector<36x36xf32>
    %cst_21 = arith.constant dense<0xFF800000> : vector<36xf32>
    %75 = vector.multi_reduction <maximumf>, %74, %cst_21 [1] : vector<36x36xf32> to vector<36xf32>
    %76 = vector.shape_cast %75 : vector<36xf32> to vector<36x1xf32>
    %77 = vector.broadcast %76 : vector<36x1xf32> to vector<36x36xf32>
    %78 = arith.subf %74, %77 : vector<36x36xf32>
    %79 = math.exp %78 : vector<36x36xf32>
    %cst_22 = arith.constant dense<0.000000e+00> : vector<36xf32>
    %80 = vector.multi_reduction <add>, %79, %cst_22 [1] : vector<36x36xf32> to vector<36xf32>
    %81 = vector.shape_cast %80 : vector<36xf32> to vector<36x1xf32>
    %82 = tpu.reciprocal %81 {approx = true} : vector<36x1xf32> -> vector<36x1xf32>
    %83 = vector.broadcast %82 : vector<36x1xf32> to vector<36x36xf32>
    %84 = arith.mulf %79, %83 : vector<36x36xf32>
    %85 = arith.truncf %84 : vector<36x36xf32> to vector<36x36xbf16>
    %cst_23 = arith.constant dense<0.000000e+00> : vector<36x8xf32>
    %86 = tpu.matmul %85, %73, %cst_23 {dimension_numbers = #tpu.dot_dimension_numbers<[1], [0], [0], [1], [0, 0, 1, 1], [], []>} : vector<36x36xbf16>, vector<36x8xbf16>, vector<36x8xf32> -> vector<36x8xf32>
    %87 = vector.extract_strided_slice %29 {offsets = [0, 24], sizes = [36, 8], strides = [1, 1]} : vector<36x96xf32> to vector<36x8xf32>
    %88 = arith.truncf %87 : vector<36x8xf32> to vector<36x8xbf16>
    %89 = vector.extract_strided_slice %29 {offsets = [0, 56], sizes = [36, 8], strides = [1, 1]} : vector<36x96xf32> to vector<36x8xf32>
    %90 = arith.truncf %89 : vector<36x8xf32> to vector<36x8xbf16>
    %91 = vector.extract_strided_slice %29 {offsets = [0, 88], sizes = [36, 8], strides = [1, 1]} : vector<36x96xf32> to vector<36x8xf32>
    %92 = arith.truncf %91 : vector<36x8xf32> to vector<36x8xbf16>
    %cst_24 = arith.constant dense<0.000000e+00> : vector<36x36xf32>
    %93 = tpu.matmul %88, %90, %cst_24 {dimension_numbers = #tpu.dot_dimension_numbers<[1], [1], [0], [0], [0, 0, 1, 0], [], []>} : vector<36x8xbf16>, vector<36x8xbf16>, vector<36x36xf32> -> vector<36x36xf32>
    %cst_25 = arith.constant dense<0xFF800000> : vector<36xf32>
    %94 = vector.multi_reduction <maximumf>, %93, %cst_25 [1] : vector<36x36xf32> to vector<36xf32>
    %95 = vector.shape_cast %94 : vector<36xf32> to vector<36x1xf32>
    %96 = vector.broadcast %95 : vector<36x1xf32> to vector<36x36xf32>
    %97 = arith.subf %93, %96 : vector<36x36xf32>
    %98 = math.exp %97 : vector<36x36xf32>
    %cst_26 = arith.constant dense<0.000000e+00> : vector<36xf32>
    %99 = vector.multi_reduction <add>, %98, %cst_26 [1] : vector<36x36xf32> to vector<36xf32>
    %100 = vector.shape_cast %99 : vector<36xf32> to vector<36x1xf32>
    %101 = tpu.reciprocal %100 {approx = true} : vector<36x1xf32> -> vector<36x1xf32>
    %102 = vector.broadcast %101 : vector<36x1xf32> to vector<36x36xf32>
    %103 = arith.mulf %98, %102 : vector<36x36xf32>
    %104 = arith.truncf %103 : vector<36x36xf32> to vector<36x36xbf16>
    %cst_27 = arith.constant dense<0.000000e+00> : vector<36x8xf32>
    %105 = tpu.matmul %104, %92, %cst_27 {dimension_numbers = #tpu.dot_dimension_numbers<[1], [0], [0], [1], [0, 0, 1, 1], [], []>} : vector<36x36xbf16>, vector<36x8xbf16>, vector<36x8xf32> -> vector<36x8xf32>
    %106 = tpu.concatenate %48, %67, %86, %105 in 1 : vector<36x8xf32>, vector<36x8xf32>, vector<36x8xf32>, vector<36x8xf32> -> vector<36x32xf32>
    %107 = arith.truncf %106 : vector<36x32xf32> to vector<36x32xbf16>
    %c0_28 = arith.constant 0 : index
    %c0_29 = arith.constant 0 : index
    %108 = vector.load %arg5[%c0_28, %c0_29] : memref<32x1152xbf16, #tpu.memory_space<vmem>>, vector<32x1152xbf16>
    %cst_30 = arith.constant dense<0.000000e+00> : vector<36x1152xf32>
    %109 = tpu.matmul %107, %108, %cst_30 {dimension_numbers = #tpu.dot_dimension_numbers<[1], [0], [0], [1], [0, 0, 1, 1], [], []>} : vector<36x32xbf16>, vector<32x1152xbf16>, vector<36x1152xf32> -> vector<36x1152xf32>
    %cst_31 = arith.constant 0.000000e+00 : f32
    %110 = vector.broadcast %cst_31 : f32 to vector<36x1152xf32>
    %111 = arith.select %18, %109, %110 : vector<36x1152xi1>, vector<36x1152xf32>
    %cst_32 = arith.constant dense<0.000000e+00> : vector<1152xf32>
    %112 = vector.multi_reduction <add>, %111, %cst_32 [0] : vector<36x1152xf32> to vector<1152xf32>
    %113 = vector.shape_cast %112 : vector<1152xf32> to vector<1x1152xf32>
    %114 = vector.extract_strided_slice %113 {offsets = [0, 0], sizes = [1, 128], strides = [1, 1]} : vector<1x1152xf32> to vector<1x128xf32>
    %115 = vector.extract_strided_slice %113 {offsets = [0, 128], sizes = [1, 128], strides = [1, 1]} : vector<1x1152xf32> to vector<1x128xf32>
    %116 = arith.addf %114, %115 : vector<1x128xf32>
    %117 = vector.extract_strided_slice %113 {offsets = [0, 256], sizes = [1, 128], strides = [1, 1]} : vector<1x1152xf32> to vector<1x128xf32>
    %118 = arith.addf %116, %117 : vector<1x128xf32>
    %119 = vector.extract_strided_slice %113 {offsets = [0, 384], sizes = [1, 128], strides = [1, 1]} : vector<1x1152xf32> to vector<1x128xf32>
    %120 = arith.addf %118, %119 : vector<1x128xf32>
    %121 = vector.extract_strided_slice %113 {offsets = [0, 512], sizes = [1, 128], strides = [1, 1]} : vector<1x1152xf32> to vector<1x128xf32>
    %122 = arith.addf %120, %121 : vector<1x128xf32>
    %123 = vector.extract_strided_slice %113 {offsets = [0, 640], sizes = [1, 128], strides = [1, 1]} : vector<1x1152xf32> to vector<1x128xf32>
    %124 = arith.addf %122, %123 : vector<1x128xf32>
    %125 = vector.extract_strided_slice %113 {offsets = [0, 768], sizes = [1, 128], strides = [1, 1]} : vector<1x1152xf32> to vector<1x128xf32>
    %126 = arith.addf %124, %125 : vector<1x128xf32>
    %127 = vector.extract_strided_slice %113 {offsets = [0, 896], sizes = [1, 128], strides = [1, 1]} : vector<1x1152xf32> to vector<1x128xf32>
    %128 = arith.addf %126, %127 : vector<1x128xf32>
    %129 = vector.extract_strided_slice %113 {offsets = [0, 1024], sizes = [1, 128], strides = [1, 1]} : vector<1x1152xf32> to vector<1x128xf32>
    %130 = arith.addf %128, %129 : vector<1x128xf32>
    %131 = vector.extract_strided_slice %130 {offsets = [0, 0], sizes = [1, 32], strides = [1, 1]} : vector<1x128xf32> to vector<1x32xf32>
    %132 = vector.extract_strided_slice %130 {offsets = [0, 32], sizes = [1, 32], strides = [1, 1]} : vector<1x128xf32> to vector<1x32xf32>
    %133 = arith.addf %131, %132 : vector<1x32xf32>
    %134 = vector.extract_strided_slice %130 {offsets = [0, 64], sizes = [1, 32], strides = [1, 1]} : vector<1x128xf32> to vector<1x32xf32>
    %135 = arith.addf %133, %134 : vector<1x32xf32>
    %136 = vector.extract_strided_slice %130 {offsets = [0, 96], sizes = [1, 32], strides = [1, 1]} : vector<1x128xf32> to vector<1x32xf32>
    %137 = arith.addf %135, %136 : vector<1x32xf32>
    %138 = vector.extract_strided_slice %7 {offsets = [120, 0], sizes = [120, 32], strides = [1, 1]} : vector<240x32xf32> to vector<120x32xf32>
    %139 = vector.extract_strided_slice %138 {offsets = [0, 0], sizes = [36, 32], strides = [1, 1]} : vector<120x32xf32> to vector<36x32xf32>
    %140 = vector.extract_strided_slice %138 {offsets = [40, 0], sizes = [36, 32], strides = [1, 1]} : vector<120x32xf32> to vector<36x32xf32>
    %141 = arith.maximumf %139, %140 : vector<36x32xf32>
    %142 = vector.extract_strided_slice %138 {offsets = [80, 0], sizes = [36, 32], strides = [1, 1]} : vector<120x32xf32> to vector<36x32xf32>
    %143 = arith.maximumf %141, %142 : vector<36x32xf32>
    %144 = arith.truncf %143 : vector<36x32xf32> to vector<36x32xbf16>
    %c0_33 = arith.constant 0 : index
    %c0_34 = arith.constant 0 : index
    %145 = vector.load %arg3[%c0_33, %c0_34] : memref<32x96xbf16, #tpu.memory_space<vmem>>, vector<32x96xbf16>
    %cst_35 = arith.constant dense<0.000000e+00> : vector<36x96xf32>
    %146 = tpu.matmul %144, %145, %cst_35 {dimension_numbers = #tpu.dot_dimension_numbers<[1], [0], [0], [1], [0, 0, 1, 1], [], []>} : vector<36x32xbf16>, vector<32x96xbf16>, vector<36x96xf32> -> vector<36x96xf32>
    %c0_36 = arith.constant 0 : index
    %c0_37 = arith.constant 0 : index
    %147 = vector.load %arg4[%c0_36, %c0_37] : memref<36x96xf32, #tpu.memory_space<vmem>>, vector<36x96xf32>
    %148 = arith.addf %146, %147 : vector<36x96xf32>
    %149 = vector.extract_strided_slice %148 {offsets = [0, 0], sizes = [36, 8], strides = [1, 1]} : vector<36x96xf32> to vector<36x8xf32>
    %150 = arith.truncf %149 : vector<36x8xf32> to vector<36x8xbf16>
    %151 = vector.extract_strided_slice %148 {offsets = [0, 32], sizes = [36, 8], strides = [1, 1]} : vector<36x96xf32> to vector<36x8xf32>
    %152 = arith.truncf %151 : vector<36x8xf32> to vector<36x8xbf16>
    %153 = vector.extract_strided_slice %148 {offsets = [0, 64], sizes = [36, 8], strides = [1, 1]} : vector<36x96xf32> to vector<36x8xf32>
    %154 = arith.truncf %153 : vector<36x8xf32> to vector<36x8xbf16>
    %cst_38 = arith.constant dense<0.000000e+00> : vector<36x36xf32>
    %155 = tpu.matmul %150, %152, %cst_38 {dimension_numbers = #tpu.dot_dimension_numbers<[1], [1], [0], [0], [0, 0, 1, 0], [], []>} : vector<36x8xbf16>, vector<36x8xbf16>, vector<36x36xf32> -> vector<36x36xf32>
    %cst_39 = arith.constant dense<0xFF800000> : vector<36xf32>
    %156 = vector.multi_reduction <maximumf>, %155, %cst_39 [1] : vector<36x36xf32> to vector<36xf32>
    %157 = vector.shape_cast %156 : vector<36xf32> to vector<36x1xf32>
    %158 = vector.broadcast %157 : vector<36x1xf32> to vector<36x36xf32>
    %159 = arith.subf %155, %158 : vector<36x36xf32>
    %160 = math.exp %159 : vector<36x36xf32>
    %cst_40 = arith.constant dense<0.000000e+00> : vector<36xf32>
    %161 = vector.multi_reduction <add>, %160, %cst_40 [1] : vector<36x36xf32> to vector<36xf32>
    %162 = vector.shape_cast %161 : vector<36xf32> to vector<36x1xf32>
    %163 = tpu.reciprocal %162 {approx = true} : vector<36x1xf32> -> vector<36x1xf32>
    %164 = vector.broadcast %163 : vector<36x1xf32> to vector<36x36xf32>
    %165 = arith.mulf %160, %164 : vector<36x36xf32>
    %166 = arith.truncf %165 : vector<36x36xf32> to vector<36x36xbf16>
    %cst_41 = arith.constant dense<0.000000e+00> : vector<36x8xf32>
    %167 = tpu.matmul %166, %154, %cst_41 {dimension_numbers = #tpu.dot_dimension_numbers<[1], [0], [0], [1], [0, 0, 1, 1], [], []>} : vector<36x36xbf16>, vector<36x8xbf16>, vector<36x8xf32> -> vector<36x8xf32>
    %168 = vector.extract_strided_slice %148 {offsets = [0, 8], sizes = [36, 8], strides = [1, 1]} : vector<36x96xf32> to vector<36x8xf32>
    %169 = arith.truncf %168 : vector<36x8xf32> to vector<36x8xbf16>
    %170 = vector.extract_strided_slice %148 {offsets = [0, 40], sizes = [36, 8], strides = [1, 1]} : vector<36x96xf32> to vector<36x8xf32>
    %171 = arith.truncf %170 : vector<36x8xf32> to vector<36x8xbf16>
    %172 = vector.extract_strided_slice %148 {offsets = [0, 72], sizes = [36, 8], strides = [1, 1]} : vector<36x96xf32> to vector<36x8xf32>
    %173 = arith.truncf %172 : vector<36x8xf32> to vector<36x8xbf16>
    %cst_42 = arith.constant dense<0.000000e+00> : vector<36x36xf32>
    %174 = tpu.matmul %169, %171, %cst_42 {dimension_numbers = #tpu.dot_dimension_numbers<[1], [1], [0], [0], [0, 0, 1, 0], [], []>} : vector<36x8xbf16>, vector<36x8xbf16>, vector<36x36xf32> -> vector<36x36xf32>
    %cst_43 = arith.constant dense<0xFF800000> : vector<36xf32>
    %175 = vector.multi_reduction <maximumf>, %174, %cst_43 [1] : vector<36x36xf32> to vector<36xf32>
    %176 = vector.shape_cast %175 : vector<36xf32> to vector<36x1xf32>
    %177 = vector.broadcast %176 : vector<36x1xf32> to vector<36x36xf32>
    %178 = arith.subf %174, %177 : vector<36x36xf32>
    %179 = math.exp %178 : vector<36x36xf32>
    %cst_44 = arith.constant dense<0.000000e+00> : vector<36xf32>
    %180 = vector.multi_reduction <add>, %179, %cst_44 [1] : vector<36x36xf32> to vector<36xf32>
    %181 = vector.shape_cast %180 : vector<36xf32> to vector<36x1xf32>
    %182 = tpu.reciprocal %181 {approx = true} : vector<36x1xf32> -> vector<36x1xf32>
    %183 = vector.broadcast %182 : vector<36x1xf32> to vector<36x36xf32>
    %184 = arith.mulf %179, %183 : vector<36x36xf32>
    %185 = arith.truncf %184 : vector<36x36xf32> to vector<36x36xbf16>
    %cst_45 = arith.constant dense<0.000000e+00> : vector<36x8xf32>
    %186 = tpu.matmul %185, %173, %cst_45 {dimension_numbers = #tpu.dot_dimension_numbers<[1], [0], [0], [1], [0, 0, 1, 1], [], []>} : vector<36x36xbf16>, vector<36x8xbf16>, vector<36x8xf32> -> vector<36x8xf32>
    %187 = vector.extract_strided_slice %148 {offsets = [0, 16], sizes = [36, 8], strides = [1, 1]} : vector<36x96xf32> to vector<36x8xf32>
    %188 = arith.truncf %187 : vector<36x8xf32> to vector<36x8xbf16>
    %189 = vector.extract_strided_slice %148 {offsets = [0, 48], sizes = [36, 8], strides = [1, 1]} : vector<36x96xf32> to vector<36x8xf32>
    %190 = arith.truncf %189 : vector<36x8xf32> to vector<36x8xbf16>
    %191 = vector.extract_strided_slice %148 {offsets = [0, 80], sizes = [36, 8], strides = [1, 1]} : vector<36x96xf32> to vector<36x8xf32>
    %192 = arith.truncf %191 : vector<36x8xf32> to vector<36x8xbf16>
    %cst_46 = arith.constant dense<0.000000e+00> : vector<36x36xf32>
    %193 = tpu.matmul %188, %190, %cst_46 {dimension_numbers = #tpu.dot_dimension_numbers<[1], [1], [0], [0], [0, 0, 1, 0], [], []>} : vector<36x8xbf16>, vector<36x8xbf16>, vector<36x36xf32> -> vector<36x36xf32>
    %cst_47 = arith.constant dense<0xFF800000> : vector<36xf32>
    %194 = vector.multi_reduction <maximumf>, %193, %cst_47 [1] : vector<36x36xf32> to vector<36xf32>
    %195 = vector.shape_cast %194 : vector<36xf32> to vector<36x1xf32>
    %196 = vector.broadcast %195 : vector<36x1xf32> to vector<36x36xf32>
    %197 = arith.subf %193, %196 : vector<36x36xf32>
    %198 = math.exp %197 : vector<36x36xf32>
    %cst_48 = arith.constant dense<0.000000e+00> : vector<36xf32>
    %199 = vector.multi_reduction <add>, %198, %cst_48 [1] : vector<36x36xf32> to vector<36xf32>
    %200 = vector.shape_cast %199 : vector<36xf32> to vector<36x1xf32>
    %201 = tpu.reciprocal %200 {approx = true} : vector<36x1xf32> -> vector<36x1xf32>
    %202 = vector.broadcast %201 : vector<36x1xf32> to vector<36x36xf32>
    %203 = arith.mulf %198, %202 : vector<36x36xf32>
    %204 = arith.truncf %203 : vector<36x36xf32> to vector<36x36xbf16>
    %cst_49 = arith.constant dense<0.000000e+00> : vector<36x8xf32>
    %205 = tpu.matmul %204, %192, %cst_49 {dimension_numbers = #tpu.dot_dimension_numbers<[1], [0], [0], [1], [0, 0, 1, 1], [], []>} : vector<36x36xbf16>, vector<36x8xbf16>, vector<36x8xf32> -> vector<36x8xf32>
    %206 = vector.extract_strided_slice %148 {offsets = [0, 24], sizes = [36, 8], strides = [1, 1]} : vector<36x96xf32> to vector<36x8xf32>
    %207 = arith.truncf %206 : vector<36x8xf32> to vector<36x8xbf16>
    %208 = vector.extract_strided_slice %148 {offsets = [0, 56], sizes = [36, 8], strides = [1, 1]} : vector<36x96xf32> to vector<36x8xf32>
    %209 = arith.truncf %208 : vector<36x8xf32> to vector<36x8xbf16>
    %210 = vector.extract_strided_slice %148 {offsets = [0, 88], sizes = [36, 8], strides = [1, 1]} : vector<36x96xf32> to vector<36x8xf32>
    %211 = arith.truncf %210 : vector<36x8xf32> to vector<36x8xbf16>
    %cst_50 = arith.constant dense<0.000000e+00> : vector<36x36xf32>
    %212 = tpu.matmul %207, %209, %cst_50 {dimension_numbers = #tpu.dot_dimension_numbers<[1], [1], [0], [0], [0, 0, 1, 0], [], []>} : vector<36x8xbf16>, vector<36x8xbf16>, vector<36x36xf32> -> vector<36x36xf32>
    %cst_51 = arith.constant dense<0xFF800000> : vector<36xf32>
    %213 = vector.multi_reduction <maximumf>, %212, %cst_51 [1] : vector<36x36xf32> to vector<36xf32>
    %214 = vector.shape_cast %213 : vector<36xf32> to vector<36x1xf32>
    %215 = vector.broadcast %214 : vector<36x1xf32> to vector<36x36xf32>
    %216 = arith.subf %212, %215 : vector<36x36xf32>
    %217 = math.exp %216 : vector<36x36xf32>
    %cst_52 = arith.constant dense<0.000000e+00> : vector<36xf32>
    %218 = vector.multi_reduction <add>, %217, %cst_52 [1] : vector<36x36xf32> to vector<36xf32>
    %219 = vector.shape_cast %218 : vector<36xf32> to vector<36x1xf32>
    %220 = tpu.reciprocal %219 {approx = true} : vector<36x1xf32> -> vector<36x1xf32>
    %221 = vector.broadcast %220 : vector<36x1xf32> to vector<36x36xf32>
    %222 = arith.mulf %217, %221 : vector<36x36xf32>
    %223 = arith.truncf %222 : vector<36x36xf32> to vector<36x36xbf16>
    %cst_53 = arith.constant dense<0.000000e+00> : vector<36x8xf32>
    %224 = tpu.matmul %223, %211, %cst_53 {dimension_numbers = #tpu.dot_dimension_numbers<[1], [0], [0], [1], [0, 0, 1, 1], [], []>} : vector<36x36xbf16>, vector<36x8xbf16>, vector<36x8xf32> -> vector<36x8xf32>
    %225 = tpu.concatenate %167, %186, %205, %224 in 1 : vector<36x8xf32>, vector<36x8xf32>, vector<36x8xf32>, vector<36x8xf32> -> vector<36x32xf32>
    %226 = arith.truncf %225 : vector<36x32xf32> to vector<36x32xbf16>
    %c0_54 = arith.constant 0 : index
    %c0_55 = arith.constant 0 : index
    %227 = vector.load %arg5[%c0_54, %c0_55] : memref<32x1152xbf16, #tpu.memory_space<vmem>>, vector<32x1152xbf16>
    %cst_56 = arith.constant dense<0.000000e+00> : vector<36x1152xf32>
    %228 = tpu.matmul %226, %227, %cst_56 {dimension_numbers = #tpu.dot_dimension_numbers<[1], [0], [0], [1], [0, 0, 1, 1], [], []>} : vector<36x32xbf16>, vector<32x1152xbf16>, vector<36x1152xf32> -> vector<36x1152xf32>
    %cst_57 = arith.constant 0.000000e+00 : f32
    %229 = vector.broadcast %cst_57 : f32 to vector<36x1152xf32>
    %230 = arith.select %18, %228, %229 : vector<36x1152xi1>, vector<36x1152xf32>
    %cst_58 = arith.constant dense<0.000000e+00> : vector<1152xf32>
    %231 = vector.multi_reduction <add>, %230, %cst_58 [0] : vector<36x1152xf32> to vector<1152xf32>
    %232 = vector.shape_cast %231 : vector<1152xf32> to vector<1x1152xf32>
    %233 = vector.extract_strided_slice %232 {offsets = [0, 0], sizes = [1, 128], strides = [1, 1]} : vector<1x1152xf32> to vector<1x128xf32>
    %234 = vector.extract_strided_slice %232 {offsets = [0, 128], sizes = [1, 128], strides = [1, 1]} : vector<1x1152xf32> to vector<1x128xf32>
    %235 = arith.addf %233, %234 : vector<1x128xf32>
    %236 = vector.extract_strided_slice %232 {offsets = [0, 256], sizes = [1, 128], strides = [1, 1]} : vector<1x1152xf32> to vector<1x128xf32>
    %237 = arith.addf %235, %236 : vector<1x128xf32>
    %238 = vector.extract_strided_slice %232 {offsets = [0, 384], sizes = [1, 128], strides = [1, 1]} : vector<1x1152xf32> to vector<1x128xf32>
    %239 = arith.addf %237, %238 : vector<1x128xf32>
    %240 = vector.extract_strided_slice %232 {offsets = [0, 512], sizes = [1, 128], strides = [1, 1]} : vector<1x1152xf32> to vector<1x128xf32>
    %241 = arith.addf %239, %240 : vector<1x128xf32>
    %242 = vector.extract_strided_slice %232 {offsets = [0, 640], sizes = [1, 128], strides = [1, 1]} : vector<1x1152xf32> to vector<1x128xf32>
    %243 = arith.addf %241, %242 : vector<1x128xf32>
    %244 = vector.extract_strided_slice %232 {offsets = [0, 768], sizes = [1, 128], strides = [1, 1]} : vector<1x1152xf32> to vector<1x128xf32>
    %245 = arith.addf %243, %244 : vector<1x128xf32>
    %246 = vector.extract_strided_slice %232 {offsets = [0, 896], sizes = [1, 128], strides = [1, 1]} : vector<1x1152xf32> to vector<1x128xf32>
    %247 = arith.addf %245, %246 : vector<1x128xf32>
    %248 = vector.extract_strided_slice %232 {offsets = [0, 1024], sizes = [1, 128], strides = [1, 1]} : vector<1x1152xf32> to vector<1x128xf32>
    %249 = arith.addf %247, %248 : vector<1x128xf32>
    %250 = vector.extract_strided_slice %249 {offsets = [0, 0], sizes = [1, 32], strides = [1, 1]} : vector<1x128xf32> to vector<1x32xf32>
    %251 = vector.extract_strided_slice %249 {offsets = [0, 32], sizes = [1, 32], strides = [1, 1]} : vector<1x128xf32> to vector<1x32xf32>
    %252 = arith.addf %250, %251 : vector<1x32xf32>
    %253 = vector.extract_strided_slice %249 {offsets = [0, 64], sizes = [1, 32], strides = [1, 1]} : vector<1x128xf32> to vector<1x32xf32>
    %254 = arith.addf %252, %253 : vector<1x32xf32>
    %255 = vector.extract_strided_slice %249 {offsets = [0, 96], sizes = [1, 32], strides = [1, 1]} : vector<1x128xf32> to vector<1x32xf32>
    %256 = arith.addf %254, %255 : vector<1x32xf32>
    %257 = tpu.concatenate %137, %256 in 0 : vector<1x32xf32>, vector<1x32xf32> -> vector<2x32xf32>
    %c1 = arith.constant 1 : index
    %c0_59 = arith.constant 0 : index
    %258 = vector.load %arg8[%c1, %c0_59] : memref<4x32xf32, #tpu.memory_space<vmem>>, vector<1x32xf32>
    %259 = vector.broadcast %258 : vector<1x32xf32> to vector<2x32xf32>
    %260 = arith.addf %257, %259 : vector<2x32xf32>
    %cst_60 = arith.constant 0.000000e+00 : f32
    %261 = vector.broadcast %cst_60 : f32 to vector<2x32xf32>
    %262 = arith.maximumf %260, %261 : vector<2x32xf32>
    %263 = arith.truncf %262 : vector<2x32xf32> to vector<2x32xbf16>
    %c0_61 = arith.constant 0 : index
    %c0_62 = arith.constant 0 : index
    %264 = vector.load %arg6[%c0_61, %c0_62] : memref<32x32xbf16, #tpu.memory_space<vmem>>, vector<32x32xbf16>
    %cst_63 = arith.constant dense<0.000000e+00> : vector<2x32xf32>
    %265 = tpu.matmul %263, %264, %cst_63 {dimension_numbers = #tpu.dot_dimension_numbers<[1], [0], [0], [1], [0, 0, 1, 1], [], []>} : vector<2x32xbf16>, vector<32x32xbf16>, vector<2x32xf32> -> vector<2x32xf32>
    %c2 = arith.constant 2 : index
    %c0_64 = arith.constant 0 : index
    %266 = vector.load %arg8[%c2, %c0_64] : memref<4x32xf32, #tpu.memory_space<vmem>>, vector<1x32xf32>
    %267 = vector.broadcast %266 : vector<1x32xf32> to vector<2x32xf32>
    %268 = arith.addf %265, %267 : vector<2x32xf32>
    %cst_65 = arith.constant 0.000000e+00 : f32
    %269 = vector.broadcast %cst_65 : f32 to vector<2x32xf32>
    %270 = arith.maximumf %268, %269 : vector<2x32xf32>
    %271 = arith.truncf %270 : vector<2x32xf32> to vector<2x32xbf16>
    %c0_66 = arith.constant 0 : index
    %c0_67 = arith.constant 0 : index
    %272 = vector.load %arg7[%c0_66, %c0_67] : memref<32x1xbf16, #tpu.memory_space<vmem>>, vector<32x1xbf16>
    %cst_68 = arith.constant dense<0.000000e+00> : vector<2x1xf32>
    %273 = tpu.matmul %271, %272, %cst_68 {dimension_numbers = #tpu.dot_dimension_numbers<[1], [0], [0], [1], [0, 0, 1, 1], [], []>} : vector<2x32xbf16>, vector<32x1xbf16>, vector<2x1xf32> -> vector<2x1xf32>
    %c3 = arith.constant 3 : index
    %c0_69 = arith.constant 0 : index
    %274 = vector.load %arg8[%c3, %c0_69] : memref<4x32xf32, #tpu.memory_space<vmem>>, vector<1x1xf32>
    %275 = vector.broadcast %274 : vector<1x1xf32> to vector<2x1xf32>
    %276 = arith.addf %273, %275 : vector<2x1xf32>
    %c0_70 = arith.constant 0 : index
    %c0_71 = arith.constant 0 : index
    %277 = vector.load %arg9[%c0_70, %c0_71] : memref<2x1xf32, #tpu.memory_space<vmem>>, vector<2x1xf32>
    tpu.vector_store %arg9[%c0_70, %c0_71], %276 {strides = array<i32>} : memref<2x1xf32, #tpu.memory_space<vmem>>, vector<2x1xf32>,
    return
  }
  func.func @transform_0(%arg0: i32) -> (i32, i32) {
    %c0_i32 = arith.constant 0 : i32
    %c0_i32_0 = arith.constant 0 : i32
    %c0_i32_1 = arith.constant 0 : i32
    return %c0_i32, %c0_i32_0 : i32, i32
  }
  func.func @transform_1(%arg0: i32) -> (i32, i32) {
    %c0_i32 = arith.constant 0 : i32
    %c0_i32_0 = arith.constant 0 : i32
    %c0_i32_1 = arith.constant 0 : i32
    return %c0_i32, %c0_i32_0 : i32, i32
  }
  func.func @transform_2(%arg0: i32) -> (i32, i32) {
    %c0_i32 = arith.constant 0 : i32
    %c0_i32_0 = arith.constant 0 : i32
    %c0_i32_1 = arith.constant 0 : i32
    return %c0_i32, %c0_i32_0 : i32, i32
  }
  func.func @transform_3(%arg0: i32) -> (i32, i32) {
    %c0_i32 = arith.constant 0 : i32
    %c0_i32_0 = arith.constant 0 : i32
    %c0_i32_1 = arith.constant 0 : i32
    return %c0_i32, %c0_i32_0 : i32, i32
  }
  func.func @transform_4(%arg0: i32) -> (i32, i32) {
    %c0_i32 = arith.constant 0 : i32
    %c0_i32_0 = arith.constant 0 : i32
    %c0_i32_1 = arith.constant 0 : i32
    return %c0_i32, %c0_i32_0 : i32, i32
  }
  func.func @transform_5(%arg0: i32) -> (i32, i32) {
    %c0_i32 = arith.constant 0 : i32
    %c0_i32_0 = arith.constant 0 : i32
    %c0_i32_1 = arith.constant 0 : i32
    return %c0_i32, %c0_i32_0 : i32, i32
  }
  func.func @transform_6(%arg0: i32) -> (i32, i32) {
    %c0_i32 = arith.constant 0 : i32
    %c0_i32_0 = arith.constant 0 : i32
    %c0_i32_1 = arith.constant 0 : i32
    return %c0_i32, %c0_i32_0 : i32, i32
  }
  func.func @transform_7(%arg0: i32) -> (i32, i32) {
    %c0_i32 = arith.constant 0 : i32
    %c0_i32_0 = arith.constant 0 : i32
    %c0_i32_1 = arith.constant 0 : i32
    return %c0_i32, %c0_i32_0 : i32, i32
  }
  func.func @transform_8(%arg0: i32) -> (i32, i32) {
    %c0_i32 = arith.constant 0 : i32
    %c0_i32_0 = arith.constant 0 : i32
    %c0_i32_1 = arith.constant 0 : i32
    return %c0_i32, %c0_i32_0 : i32, i32
  }
}

</mosaic_0001>

<llo_original>
// kernel: deepfam_mha_forward.1
$region0: #{deepfam_mha_forward.1}
  #allocation0 [shape = 'u32[]', space=smem, size = 0x4, offset = 0x4, fixed_abs, tag = 'smem constant byte address 0x4 - core index']
  #allocation1 [shape = 'u32[144,128]{1,0:T(1,128)}', space=vmem, size = 0x12000, scoped, tag = 'internal scratch']
  %s0 = inlined_call_operand.vmem [shape: bf16[240,128], index: 0, kind: input, shape index: {}]
  %s1 = inlined_call_operand.vmem [shape: bf16[128,32], index: 1, kind: input, shape index: {}]
  %s2 = inlined_call_operand.vmem [shape: bf16[32,96], index: 2, kind: input, shape index: {}]
  %s3 = inlined_call_operand.vmem [shape: f32[36,96], index: 3, kind: input, shape index: {}]
  %s4 = inlined_call_operand.vmem [shape: bf16[32,1152], index: 4, kind: input, shape index: {}]
  %s5 = inlined_call_operand.vmem [shape: bf16[32,32], index: 5, kind: input, shape index: {}]
  %s6 = inlined_call_operand.vmem [shape: bf16[32,1], index: 6, kind: input, shape index: {}]
  %s7 = inlined_call_operand.vmem [shape: f32[4,32], index: 7, kind: input, shape index: {}]
  %s8 = inlined_call_operand.vmem [shape: f32[2,1], index: 8, kind: output, shape index: {}]
  %s9 = sld [smem:[#allocation0]]
  $region42: #{deepfam_mha_forward.1} parent=0
    _
  %s11 = ssub.s32 1, %s9
  %s12 = scalar_select 0, %s11, %s9
  // Predicated region
  $region2: #{deepfam_mha_forward.1} parent=0 // pred_check
    _
  $region3: #{deepfam_mha_forward.1} parent=0 // pred_check_branch
    %14 = sbr.rel (0) target = $region5
  $region4: #{deepfam_mha_forward.1} parent=0 // pred_region
    _
  $region5: #{deepfam_mha_forward.1} parent=0 // pred_fallthru
    _
  // Predicated region
  $region6: #{deepfam_mha_forward.1} parent=0 // pred_check
    _
  $region7: #{deepfam_mha_forward.1} parent=0 // pred_check_branch
    %16 = sbr.rel (0) target = $region9
  $region8: #{deepfam_mha_forward.1} parent=0 // pred_region
    _
  $region9: #{deepfam_mha_forward.1} parent=0 // pred_fallthru
    _
  // Predicated region
  $region10: #{deepfam_mha_forward.1} parent=0 // pred_check
    _
  $region11: #{deepfam_mha_forward.1} parent=0 // pred_check_branch
    %18 = sbr.rel (0) target = $region13
  $region12: #{deepfam_mha_forward.1} parent=0 // pred_region
    _
  $region13: #{deepfam_mha_forward.1} parent=0 // pred_fallthru
    _
  // Predicated region
  $region14: #{deepfam_mha_forward.1} parent=0 // pred_check
    _
  $region15: #{deepfam_mha_forward.1} parent=0 // pred_check_branch
    %20 = sbr.rel (0) target = $region17
  $region16: #{deepfam_mha_forward.1} parent=0 // pred_region
    _
  $region17: #{deepfam_mha_forward.1} parent=0 // pred_fallthru
    _
  // Predicated region
  $region18: #{deepfam_mha_forward.1} parent=0 // pred_check
    _
  $region19: #{deepfam_mha_forward.1} parent=0 // pred_check_branch
    %22 = sbr.rel (0) target = $region21
  $region20: #{deepfam_mha_forward.1} parent=0 // pred_region
    _
  $region21: #{deepfam_mha_forward.1} parent=0 // pred_fallthru
    _
  // Predicated region
  $region22: #{deepfam_mha_forward.1} parent=0 // pred_check
    _
  $region23: #{deepfam_mha_forward.1} parent=0 // pred_check_branch
    %24 = sbr.rel (0) target = $region25
  $region24: #{deepfam_mha_forward.1} parent=0 // pred_region
    _
  $region25: #{deepfam_mha_forward.1} parent=0 // pred_fallthru
    _
  // Predicated region
  $region26: #{deepfam_mha_forward.1} parent=0 // pred_check
    _
  $region27: #{deepfam_mha_forward.1} parent=0 // pred_check_branch
    %26 = sbr.rel (0) target = $region29
  $region28: #{deepfam_mha_forward.1} parent=0 // pred_region
    _
  $region29: #{deepfam_mha_forward.1} parent=0 // pred_fallthru
    _
  // Predicated region
  $region30: #{deepfam_mha_forward.1} parent=0 // pred_check
    _
  $region31: #{deepfam_mha_forward.1} parent=0 // pred_check_branch
    %28 = sbr.rel (0) target = $region33
  $region32: #{deepfam_mha_forward.1} parent=0 // pred_region
    _
  $region33: #{deepfam_mha_forward.1} parent=0 // pred_fallthru
    _
  %v30 = vld [vmem:[%s0] sm:$0xf]
  %v31 = vld [vmem:[%s0 + $0x4] sm:$0xf]
  %v32 = vld [vmem:[%s0 + $0x8] sm:$0xf]
  %v33 = vld [vmem:[%s0 + $0xc] sm:$0xf]
  %v34 = vld [vmem:[%s0 + $0x10] sm:$0xf]
  %v35 = vld [vmem:[%s0 + $0x14] sm:$0xf]
  %v36 = vld [vmem:[%s0 + $0x18] sm:$0xf]
  %v37 = vld [vmem:[%s0 + $0x1c] sm:$0xf]
  %v38 = vld [vmem:[%s0 + $0x20] sm:$0xf]
  %v39 = vld [vmem:[%s0 + $0x24] sm:$0xf]
  %v40 = vld [vmem:[%s0 + $0x28] sm:$0xf]
  %v41 = vld [vmem:[%s0 + $0x2c] sm:$0xf]
  %v42 = vld [vmem:[%s0 + $0x30] sm:$0xf]
  %v43 = vld [vmem:[%s0 + $0x34] sm:$0xf]
  %v44 = vld [vmem:[%s0 + $0x38] sm:$0xf]
  %v45 = vld [vmem:[%s0 + $0x3c] sm:$0xf]
  %v46 = vld [vmem:[%s0 + $0x40] sm:$0xf]
  %v47 = vld [vmem:[%s0 + $0x44] sm:$0xf]
  %v48 = vld [vmem:[%s0 + $0x48] sm:$0xf]
  %v49 = vld [vmem:[%s0 + $0x4c] sm:$0xf]
  %v50 = vld [vmem:[%s0 + $0x50] sm:$0xf]
  %v51 = vld [vmem:[%s0 + $0x54] sm:$0xf]
  %v52 = vld [vmem:[%s0 + $0x58] sm:$0xf]
  %v53 = vld [vmem:[%s0 + $0x5c] sm:$0xf]
  %v54 = vld [vmem:[%s0 + $0x60] sm:$0xf]
  %v55 = vld [vmem:[%s0 + $0x64] sm:$0xf]
  %v56 = vld [vmem:[%s0 + $0x68] sm:$0xf]
  %v57 = vld [vmem:[%s0 + $0x6c] sm:$0xf]
  %v58 = vld [vmem:[%s0 + $0x70] sm:$0xf]
  %v59 = vld [vmem:[%s0 + $0x74] sm:$0xf]
  %v60 = vld [vmem:[%s1] sm:$0xf]
  %v61 = vld [vmem:[%s1 + $0x4] sm:$0xf]
  %v62 = vld [vmem:[%s1 + $0x8] sm:$0xf]
  %v63 = vld [vmem:[%s1 + $0xc] sm:$0xf]
  %v64 = vld [vmem:[%s1 + $0x10] sm:$0xf]
  %v65 = vld [vmem:[%s1 + $0x14] sm:$0xf]
  %v66 = vld [vmem:[%s1 + $0x18] sm:$0xf]
  %v67 = vld [vmem:[%s1 + $0x1c] sm:$0xf]
  %v68 = vld [vmem:[%s1 + $0x20] sm:$0xf]
  %v69 = vld [vmem:[%s1 + $0x24] sm:$0xf]
  %v70 = vld [vmem:[%s1 + $0x28] sm:$0xf]
  %v71 = vld [vmem:[%s1 + $0x2c] sm:$0xf]
  %v72 = vld [vmem:[%s1 + $0x30] sm:$0xf]
  %v73 = vld [vmem:[%s1 + $0x34] sm:$0xf]
  %v74 = vld [vmem:[%s1 + $0x38] sm:$0xf]
  %v75 = vld [vmem:[%s1 + $0x3c] sm:$0xf]
  %v76 = vld [vmem:[%s7] sm:$0x1]
  %v77 = vlaneseq
  %v78 = vshrl.u32 %v77, 7
  %v79 = vsub.s32 0, %v78
  %v80 = vrot.slane %v76, %v79
  %v111 = vunpack.c.l.b16 %v30
  %v112 = vunpack.c.l.b16 %v31
  %v113 = vunpack.c.l.b16 %v32
  %v114 = vunpack.c.l.b16 %v33
  %v115 = vunpack.c.l.b16 %v34
  %v116 = vunpack.c.l.b16 %v35
  %v117 = vunpack.c.l.b16 %v36
  %v118 = vunpack.c.l.b16 %v37
  %v119 = vunpack.c.l.b16 %v38
  %v120 = vunpack.c.l.b16 %v39
  %v121 = vunpack.c.l.b16 %v40
  %v122 = vunpack.c.l.b16 %v41
  %v123 = vunpack.c.l.b16 %v42
  %v124 = vunpack.c.l.b16 %v43
  %v125 = vunpack.c.l.b16 %v44
  %v126 = vunpack.c.l.b16 %v45
  %v127 = vunpack.c.l.b16 %v46
  %v128 = vunpack.c.l.b16 %v47
  %v129 = vunpack.c.l.b16 %v48
  %v130 = vunpack.c.l.b16 %v49
  %v131 = vunpack.c.l.b16 %v50
  %v132 = vunpack.c.l.b16 %v51
  %v133 = vunpack.c.l.b16 %v52
  %v134 = vunpack.c.l.b16 %v53
  %v135 = vunpack.c.l.b16 %v54
  %v136 = vunpack.c.l.b16 %v55
  %v137 = vunpack.c.l.b16 %v56
  %v138 = vunpack.c.l.b16 %v57
  %v139 = vunpack.c.l.b16 %v58
  %v140 = vunpack.c.l.b16 %v59
  %v141 = vpack.c.b16 %v112, %v111
  %v142 = vpack.c.b16 %v114, %v113
  %v143 = vpack.c.b16 %v116, %v115
  %v144 = vpack.c.b16 %v118, %v117
  %v145 = vpack.c.b16 %v120, %v119
  %v146 = vpack.c.b16 %v122, %v121
  %v147 = vpack.c.b16 %v124, %v123
  %v148 = vpack.c.b16 %v126, %v125
  %v149 = vpack.c.b16 %v128, %v127
  %v150 = vpack.c.b16 %v130, %v129
  %v151 = vpack.c.b16 %v132, %v131
  %v152 = vpack.c.b16 %v134, %v133
  %v153 = vpack.c.b16 %v136, %v135
  %v154 = vpack.c.b16 %v138, %v137
  %v155 = vpack.c.b16 %v140, %v139
  %v187 = vunpack.c.l.b16 %v60
  %v188 = vunpack.c.l.b16 %v61
  %v189 = vunpack.c.l.b16 %v62
  %v190 = vunpack.c.l.b16 %v63
  %v191 = vunpack.c.l.b16 %v64
  %v192 = vunpack.c.l.b16 %v65
  %v193 = vunpack.c.l.b16 %v66
  %v194 = vunpack.c.l.b16 %v67
  %v195 = vunpack.c.l.b16 %v68
  %v196 = vunpack.c.l.b16 %v69
  %v197 = vunpack.c.l.b16 %v70
  %v198 = vunpack.c.l.b16 %v71
  %v199 = vunpack.c.l.b16 %v72
  %v200 = vunpack.c.l.b16 %v73
  %v201 = vunpack.c.l.b16 %v74
  %v202 = vunpack.c.l.b16 %v75
  %v203 = vpack.c.b16 %v188, %v187
  %v204 = vpack.c.b16 %v190, %v189
  %v205 = vpack.c.b16 %v192, %v191
  %v206 = vpack.c.b16 %v194, %v193
  %v207 = vpack.c.b16 %v196, %v195
  %v208 = vpack.c.b16 %v198, %v197
  %v209 = vpack.c.b16 %v200, %v199
  %v210 = vpack.c.b16 %v202, %v201
  %219 = vmatprep.subr.bf16.mxu0 0
  %220 = vmatpush1.bf16.msra.mxu0 %v203
  %221 = vmatprep.subr.bf16.mxu0 0
  %222 = vmatpush1.bf16.msra.mxu0 %v204
  %223 = vmatprep.subr.bf16.mxu0 0
  %224 = vmatpush1.bf16.msra.mxu0 %v205
  %225 = vmatprep.subr.bf16.mxu0 0
  %226 = vmatpush1.bf16.msra.mxu0 %v206
  %227 = vmatprep.subr.bf16.mxu0 0
  %228 = vmatpush1.bf16.msra.mxu0 %v207
  %229 = vmatprep.subr.bf16.mxu0 0
  %230 = vmatpush1.bf16.msra.mxu0 %v208
  %231 = vmatprep.subr.bf16.mxu0 0
  %232 = vmatpush1.bf16.msra.mxu0 %v209
  %233 = vmatprep.subr.bf16.mxu0 0
  %234 = vmatpush1.bf16.msra.mxu0 %v210
  %235 = vmatprep.subr.bf16.mxu0 0
  %236 = vmatpush1.bf16.msra.mxu0 0
  %237 = vmatprep.subr.bf16.mxu0 0
  %238 = vmatpush1.bf16.msra.mxu0 0
  %239 = vmatprep.subr.bf16.mxu0 0
  %240 = vmatpush1.bf16.msra.mxu0 0
  %241 = vmatprep.subr.bf16.mxu0 0
  %242 = vmatpush1.bf16.msra.mxu0 0
  %243 = vmatprep.subr.bf16.mxu0 0
  %244 = vmatpush1.bf16.msra.mxu0 0
  %245 = vmatprep.subr.bf16.mxu0 0
  %246 = vmatpush1.bf16.msra.mxu0 0
  %247 = vmatprep.subr.bf16.mxu0 0
  %248 = vmatpush1.bf16.msra.mxu0 0
  %249 = vmatprep.subr.bf16.mxu0 0
  %250 = vmatpush1.bf16.msra.mxu0 0
  %251 = vmatprep.mubr.bf16.mxu0 0
  %252 = vmatmul.mubr.bf16.gmra.mrb[0].mxu0 %v141
  %v253 = vpop.f32.mrb[0].mxu0
  %v254 = vadd.f32 %v80, %v253
  %v255 = vpop.f32.mrb[0].mxu0
  %v256 = vpop.f32.mrb[0].mxu0
  %v257 = vadd.f32 %v80, %v256
  %v258 = vpop.f32.mrb[0].mxu0
  %259 = vmatprep.mubr.bf16.mxu0 0
  %260 = vmatmul.mubr.bf16.gmra.mrb[0].mxu0 %v142
  %v261 = vpop.f32.mrb[0].mxu0
  %v262 = vadd.f32 %v80, %v261
  %v263 = vpop.f32.mrb[0].mxu0
  %v264 = vpop.f32.mrb[0].mxu0
  %v265 = vadd.f32 %v80, %v264
  %v266 = vpop.f32.mrb[0].mxu0
  %267 = vmatprep.mubr.bf16.mxu0 0
  %268 = vmatmul.mubr.bf16.gmra.mrb[0].mxu0 %v143
  %v269 = vpop.f32.mrb[0].mxu0
  %v270 = vadd.f32 %v80, %v269
  %v271 = vpop.f32.mrb[0].mxu0
  %v272 = vpop.f32.mrb[0].mxu0
  %v273 = vadd.f32 %v80, %v272
  %v274 = vpop.f32.mrb[0].mxu0
  %275 = vmatprep.mubr.bf16.mxu0 0
  %276 = vmatmul.mubr.bf16.gmra.mrb[0].mxu0 %v144
  %v277 = vpop.f32.mrb[0].mxu0
  %v278 = vadd.f32 %v80, %v277
  %v279 = vpop.f32.mrb[0].mxu0
  %v280 = vpop.f32.mrb[0].mxu0
  %v281 = vadd.f32 %v80, %v280
  %v282 = vpop.f32.mrb[0].mxu0
  %283 = vmatprep.mubr.bf16.mxu0 0
  %284 = vmatmul.mubr.bf16.gmra.mrb[0].mxu0 %v145
  %v285 = vpop.f32.mrb[0].mxu0
  %v286 = vadd.f32 %v80, %v285
  %v287 = vpop.f32.mrb[0].mxu0
  %v288 = vpop.f32.mrb[0].mxu0
  %v289 = vadd.f32 %v80, %v288
  %v290 = vpop.f32.mrb[0].mxu0
  %291 = vmatprep.mubr.bf16.mxu0 0
  %292 = vmatmul.mubr.bf16.gmra.mrb[0].mxu0 %v146
  %v293 = vpop.f32.mrb[0].mxu0
  %v294 = vadd.f32 %v80, %v293
  %v295 = vpop.f32.mrb[0].mxu0
  %v296 = vpop.f32.mrb[0].mxu0
  %v297 = vadd.f32 %v80, %v296
  %v298 = vpop.f32.mrb[0].mxu0
  %299 = vmatprep.mubr.bf16.mxu0 0
  %300 = vmatmul.mubr.bf16.gmra.mrb[0].mxu0 %v147
  %v301 = vpop.f32.mrb[0].mxu0
  %v302 = vadd.f32 %v80, %v301
  %v303 = vpop.f32.mrb[0].mxu0
  %v304 = vpop.f32.mrb[0].mxu0
  %v305 = vadd.f32 %v80, %v304
  %v306 = vpop.f32.mrb[0].mxu0
  %307 = vmatprep.mubr.bf16.mxu0 0
  %308 = vmatmul.mubr.bf16.gmra.mrb[0].mxu0 %v148
  %v309 = vpop.f32.mrb[0].mxu0
  %v310 = vadd.f32 %v80, %v309
  %v311 = vpop.f32.mrb[0].mxu0
  %v312 = vpop.f32.mrb[0].mxu0
  %v313 = vadd.f32 %v80, %v312
  %v314 = vpop.f32.mrb[0].mxu0
  %315 = vmatprep.mubr.bf16.mxu0 0
  %316 = vmatmul.mubr.bf16.gmra.mrb[0].mxu0 %v149
  %v317 = vpop.f32.mrb[0].mxu0
  %v318 = vadd.f32 %v80, %v317
  %v319 = vpop.f32.mrb[0].mxu0
  %v320 = vpop.f32.mrb[0].mxu0
  %v321 = vadd.f32 %v80, %v320
  %v322 = vpop.f32.mrb[0].mxu0
  %323 = vmatprep.mubr.bf16.mxu0 0
  %324 = vmatmul.mubr.bf16.gmra.mrb[0].mxu0 %v150
  %v325 = vpop.f32.mrb[0].mxu0
  %v326 = vadd.f32 %v80, %v325
  %v327 = vpop.f32.mrb[0].mxu0
  %v328 = vpop.f32.mrb[0].mxu0
  %v329 = vadd.f32 %v80, %v328
  %v330 = vpop.f32.mrb[0].mxu0
  %331 = vmatprep.mubr.bf16.mxu0 0
  %332 = vmatmul.mubr.bf16.gmra.mrb[0].mxu0 %v151
  %v333 = vpop.f32.mrb[0].mxu0
  %v334 = vadd.f32 %v80, %v333
  %v335 = vpop.f32.mrb[0].mxu0
  %v336 = vpop.f32.mrb[0].mxu0
  %v337 = vadd.f32 %v80, %v336
  %v338 = vpop.f32.mrb[0].mxu0
  %339 = vmatprep.mubr.bf16.mxu0 0
  %340 = vmatmul.mubr.bf16.gmra.mrb[0].mxu0 %v152
  %v341 = vpop.f32.mrb[0].mxu0
  %v342 = vadd.f32 %v80, %v341
  %v343 = vpop.f32.mrb[0].mxu0
  %v344 = vpop.f32.mrb[0].mxu0
  %v345 = vadd.f32 %v80, %v344
  %v346 = vpop.f32.mrb[0].mxu0
  %347 = vmatprep.mubr.bf16.mxu0 0
  %348 = vmatmul.mubr.bf16.gmra.mrb[0].mxu0 %v153
  %v349 = vpop.f32.mrb[0].mxu0
  %v350 = vadd.f32 %v80, %v349
  %v351 = vpop.f32.mrb[0].mxu0
  %v352 = vpop.f32.mrb[0].mxu0
  %v353 = vadd.f32 %v80, %v352
  %v354 = vpop.f32.mrb[0].mxu0
  %355 = vmatprep.mubr.bf16.mxu0 0
  %356 = vmatmul.mubr.bf16.gmra.mrb[0].mxu0 %v154
  %v357 = vpop.f32.mrb[0].mxu0
  %v358 = vadd.f32 %v80, %v357
  %v359 = vpop.f32.mrb[0].mxu0
  %v360 = vpop.f32.mrb[0].mxu0
  %v361 = vadd.f32 %v80, %v360
  %v362 = vpop.f32.mrb[0].mxu0
  %363 = vmatprep.mubr.bf16.mxu0 0
  %364 = vmatmul.mubr.bf16.gmra.mrb[0].mxu0 %v155
  %v365 = vpop.f32.mrb[0].mxu0
  %v366 = vadd.f32 %v80, %v365
  %v367 = vpop.f32.mrb[0].mxu0
  %v368 = vpop.f32.mrb[0].mxu0
  %v369 = vadd.f32 %v80, %v368
  %v370 = vpop.f32.mrb[0].mxu0
  %371 = vdwg.mxu0
  %v372 = vmax.f32 %v254, 0.0
  %v373 = vmax.f32 %v257, 0.0
  %v374 = vmax.f32 %v262, 0.0
  %v375 = vmax.f32 %v265, 0.0
  %v376 = vmax.f32 %v270, 0.0
  %v377 = vmax.f32 %v273, 0.0
  %v378 = vmax.f32 %v278, 0.0
  %v379 = vmax.f32 %v281, 0.0
  %v380 = vmax.f32 %v286, 0.0
  %v381 = vmax.f32 %v289, 0.0
  %v382 = vmax.f32 %v294, 0.0
  %v383 = vmax.f32 %v297, 0.0
  %v384 = vmax.f32 %v302, 0.0
  %v385 = vmax.f32 %v305, 0.0
  %v386 = vmax.f32 %v310, 0.0
  %v387 = vmax.f32 %v313, 0.0
  %v388 = vmax.f32 %v318, 0.0
  %v389 = vmax.f32 %v321, 0.0
  %v390 = vmax.f32 %v326, 0.0
  %v391 = vmax.f32 %v329, 0.0
  %v392 = vmax.f32 %v334, 0.0
  %v393 = vmax.f32 %v337, 0.0
  %v394 = vmax.f32 %v342, 0.0
  %v395 = vmax.f32 %v345, 0.0
  %v396 = vmax.f32 %v350, 0.0
  %v397 = vmax.f32 %v353, 0.0
  %v398 = vmax.f32 %v358, 0.0
  %v399 = vmax.f32 %v361, 0.0
  %v400 = vmax.f32 %v366, 0.0
  %v401 = vmax.f32 %v369, 0.0
  %v402 = vlaneseq
  %v403 = vshrl.u32 %v402, 7
  %v404 = vadd.s32 %v403, 8
  %v405 = vadd.s32 %v403, 16
  %v406 = vadd.s32 %v403, 24
  %v407 = vadd.s32 %v403, 32
  %v408 = vlaneseq
  %v409 = vand.u32 %v408, 127
  %v410 = vadd.s32 %v409, 128
  %v411 = vadd.s32 %v409, 256
  %v412 = vadd.s32 %v409, 384
  %v413 = vadd.s32 %v409, 512
  %v414 = vadd.s32 %v409, 640
  %v415 = vadd.s32 %v409, 768
  %v416 = vadd.s32 %v409, 896
  %v417 = vadd.s32 %v409, 1024
  %v418 = vmul.u32 %v403, 32
  %v419 = vmul.u32 %v404, 32
  %v420 = vmul.u32 %v405, 32
  %v421 = vmul.u32 %v406, 32
  %v422 = vmul.u32 %v407, 32
  %vm423 = vcmp.ge.s32.totalorder %v409, %v418
  %vm424 = vcmp.ge.s32.totalorder %v410, %v418
  %vm425 = vcmp.ge.s32.totalorder %v411, %v418
  %vm426 = vcmp.ge.s32.totalorder %v412, %v418
  %vm427 = vcmp.ge.s32.totalorder %v413, %v418
  %vm428 = vcmp.ge.s32.totalorder %v414, %v418
  %vm429 = vcmp.ge.s32.totalorder %v415, %v418
  %vm430 = vcmp.ge.s32.totalorder %v416, %v418
  %vm431 = vcmp.ge.s32.totalorder %v417, %v418
  %vm432 = vcmp.ge.s32.totalorder %v409, %v419
  %vm433 = vcmp.ge.s32.totalorder %v410, %v419
  %vm434 = vcmp.ge.s32.totalorder %v411, %v419
  %vm435 = vcmp.ge.s32.totalorder %v412, %v419
  %vm436 = vcmp.ge.s32.totalorder %v413, %v419
  %vm437 = vcmp.ge.s32.totalorder %v414, %v419
  %vm438 = vcmp.ge.s32.totalorder %v415, %v419
  %vm439 = vcmp.ge.s32.totalorder %v416, %v419
  %vm440 = vcmp.ge.s32.totalorder %v417, %v419
  %vm441 = vcmp.ge.s32.totalorder %v409, %v420
  %vm442 = vcmp.ge.s32.totalorder %v410, %v420
  %vm443 = vcmp.ge.s32.totalorder %v411, %v420
  %vm444 = vcmp.ge.s32.totalorder %v412, %v420
  %vm445 = vcmp.ge.s32.totalorder %v413, %v420
  %vm446 = vcmp.ge.s32.totalorder %v414, %v420
  %vm447 = vcmp.ge.s32.totalorder %v415, %v420
  %vm448 = vcmp.ge.s32.totalorder %v416, %v420
  %vm449 = vcmp.ge.s32.totalorder %v417, %v420
  %vm450 = vcmp.ge.s32.totalorder %v409, %v421
  %vm451 = vcmp.ge.s32.totalorder %v410, %v421
  %vm452 = vcmp.ge.s32.totalorder %v411, %v421
  %vm453 = vcmp.ge.s32.totalorder %v412, %v421
  %vm454 = vcmp.ge.s32.totalorder %v413, %v421
  %vm455 = vcmp.ge.s32.totalorder %v414, %v421
  %vm456 = vcmp.ge.s32.totalorder %v415, %v421
  %vm457 = vcmp.ge.s32.totalorder %v416, %v421
  %vm458 = vcmp.ge.s32.totalorder %v417, %v421
  %vm459 = vcmp.ge.s32.totalorder %v409, %v422
  %vm460 = vcmp.ge.s32.totalorder %v410, %v422
  %vm461 = vcmp.ge.s32.totalorder %v411, %v422
  %vm462 = vcmp.ge.s32.totalorder %v412, %v422
  %vm463 = vcmp.ge.s32.totalorder %v413, %v422
  %vm464 = vcmp.ge.s32.totalorder %v414, %v422
  %vm465 = vcmp.ge.s32.totalorder %v415, %v422
  %vm466 = vcmp.ge.s32.totalorder %v416, %v422
  %vm467 = vcmp.ge.s32.totalorder %v417, %v422
  %v468 = vadd.s32 %v403, 1
  %v469 = vadd.s32 %v404, 1
  %v470 = vadd.s32 %v405, 1
  %v471 = vadd.s32 %v406, 1
  %v472 = vadd.s32 %v407, 1
  %v473 = vmul.u32 %v468, 32
  %v474 = vmul.u32 %v469, 32
  %v475 = vmul.u32 %v470, 32
  %v476 = vmul.u32 %v471, 32
  %v477 = vmul.u32 %v472, 32
  %vm478 = vcmp.lt.s32.totalorder %v409, %v473
  %vm479 = vcmp.lt.s32.totalorder %v410, %v473
  %vm480 = vcmp.lt.s32.totalorder %v411, %v473
  %vm481 = vcmp.lt.s32.totalorder %v412, %v473
  %vm482 = vcmp.lt.s32.totalorder %v413, %v473
  %vm483 = vcmp.lt.s32.totalorder %v414, %v473
  %vm484 = vcmp.lt.s32.totalorder %v415, %v473
  %vm485 = vcmp.lt.s32.totalorder %v416, %v473
  %vm486 = vcmp.lt.s32.totalorder %v417, %v473
  %vm487 = vcmp.lt.s32.totalorder %v409, %v474
  %vm488 = vcmp.lt.s32.totalorder %v410, %v474
  %vm489 = vcmp.lt.s32.totalorder %v411, %v474
  %vm490 = vcmp.lt.s32.totalorder %v412, %v474
  %vm491 = vcmp.lt.s32.totalorder %v413, %v474
  %vm492 = vcmp.lt.s32.totalorder %v414, %v474
  %vm493 = vcmp.lt.s32.totalorder %v415, %v474
  %vm494 = vcmp.lt.s32.totalorder %v416, %v474
  %vm495 = vcmp.lt.s32.totalorder %v417, %v474
  %vm496 = vcmp.lt.s32.totalorder %v409, %v475
  %vm497 = vcmp.lt.s32.totalorder %v410, %v475
  %vm498 = vcmp.lt.s32.totalorder %v411, %v475
  %vm499 = vcmp.lt.s32.totalorder %v412, %v475
  %vm500 = vcmp.lt.s32.totalorder %v413, %v475
  %vm501 = vcmp.lt.s32.totalorder %v414, %v475
  %vm502 = vcmp.lt.s32.totalorder %v415, %v475
  %vm503 = vcmp.lt.s32.totalorder %v416, %v475
  %vm504 = vcmp.lt.s32.totalorder %v417, %v475
  %vm505 = vcmp.lt.s32.totalorder %v409, %v476
  %vm506 = vcmp.lt.s32.totalorder %v410, %v476
  %vm507 = vcmp.lt.s32.totalorder %v411, %v476
  %vm508 = vcmp.lt.s32.totalorder %v412, %v476
  %vm509 = vcmp.lt.s32.totalorder %v413, %v476
  %vm510 = vcmp.lt.s32.totalorder %v414, %v476
  %vm511 = vcmp.lt.s32.totalorder %v415, %v476
  %vm512 = vcmp.lt.s32.totalorder %v416, %v476
  %vm513 = vcmp.lt.s32.totalorder %v417, %v476
  %vm514 = vcmp.lt.s32.totalorder %v409, %v477
  %vm515 = vcmp.lt.s32.totalorder %v410, %v477
  %vm516 = vcmp.lt.s32.totalorder %v411, %v477
  %vm517 = vcmp.lt.s32.totalorder %v412, %v477
  %vm518 = vcmp.lt.s32.totalorder %v413, %v477
  %vm519 = vcmp.lt.s32.totalorder %v414, %v477
  %vm520 = vcmp.lt.s32.totalorder %v415, %v477
  %vm521 = vcmp.lt.s32.totalorder %v416, %v477
  %vm522 = vcmp.lt.s32.totalorder %v417, %v477
  %vm523 = vmand %vm423, %vm478
  %vm524 = vmand %vm424, %vm479
  %vm525 = vmand %vm425, %vm480
  %vm526 = vmand %vm426, %vm481
  %vm527 = vmand %vm427, %vm482
  %vm528 = vmand %vm428, %vm483
  %vm529 = vmand %vm429, %vm484
  %vm530 = vmand %vm430, %vm485
  %vm531 = vmand %vm431, %vm486
  %vm532 = vmand %vm432, %vm487
  %vm533 = vmand %vm433, %vm488
  %vm534 = vmand %vm434, %vm489
  %vm535 = vmand %vm435, %vm490
  %vm536 = vmand %vm436, %vm491
  %vm537 = vmand %vm437, %vm492
  %vm538 = vmand %vm438, %vm493
  %vm539 = vmand %vm439, %vm494
  %vm540 = vmand %vm440, %vm495
  %vm541 = vmand %vm441, %vm496
  %vm542 = vmand %vm442, %vm497
  %vm543 = vmand %vm443, %vm498
  %vm544 = vmand %vm444, %vm499
  %vm545 = vmand %vm445, %vm500
  %vm546 = vmand %vm446, %vm501
  %vm547 = vmand %vm447, %vm502
  %vm548 = vmand %vm448, %vm503
  %vm549 = vmand %vm449, %vm504
  %vm550 = vmand %vm450, %vm505
  %vm551 = vmand %vm451, %vm506
  %vm552 = vmand %vm452, %vm507
  %vm553 = vmand %vm453, %vm508
  %vm554 = vmand %vm454, %vm509
  %vm555 = vmand %vm455, %vm510
  %vm556 = vmand %vm456, %vm511
  %vm557 = vmand %vm457, %vm512
  %vm558 = vmand %vm458, %vm513
  %vm559 = vmand %vm459, %vm514
  %vm560 = vmand %vm460, %vm515
  %vm561 = vmand %vm461, %vm516
  %vm562 = vmand %vm462, %vm517
  %vm563 = vmand %vm463, %vm518
  %vm564 = vmand %vm464, %vm519
  %vm565 = vmand %vm465, %vm520
  %vm566 = vmand %vm466, %vm521
  %vm567 = vmand %vm467, %vm522
  %v568 = vmax.f32 %v372, %v377
  %v569 = vmax.f32 %v373, %v378
  %v570 = vmax.f32 %v374, %v379
  %v571 = vmax.f32 %v375, %v380
  %v572 = vmax.f32 %v376, %v381
  %v573 = vmax.f32 %v568, %v382
  %v574 = vmax.f32 %v569, %v383
  %v575 = vmax.f32 %v570, %v384
  %v576 = vmax.f32 %v571, %v385
  %v577 = vmax.f32 %v572, %v386
  %v578 = vpack.c.bf16 %v574, %v573
  %v579 = vpack.c.bf16 %v576, %v575
  %v580 = vpack.c.bf16 %v577, %v577
  %v581 = vld [vmem:[%s2] sm:$0xf]
  %v582 = vld [vmem:[%s2 + $0x4] sm:$0xf]
  %v583 = vld [vmem:[%s2 + $0x8] sm:$0xf]
  %v584 = vld [vmem:[%s2 + $0xc] sm:$0xf]
  %v585 = vld [vmem:[%s3] sm:$0xff]
  %v586 = vld [vmem:[%s3 + $0x8] sm:$0xff]
  %v587 = vld [vmem:[%s3 + $0x10] sm:$0xff]
  %v588 = vld [vmem:[%s3 + $0x18] sm:$0xff]
  %v589 = vld [vmem:[%s3 + $0x20] sm:$0xf]
  %v594 = vunpack.c.l.b16 %v581
  %v595 = vunpack.c.l.b16 %v582
  %v596 = vunpack.c.l.b16 %v583
  %v597 = vunpack.c.l.b16 %v584
  %v598 = vpack.c.b16 %v595, %v594
  %v599 = vpack.c.b16 %v597, %v596
  %vm602 = vcmask 261120
  %v604 = vsel %vm602, %v578, 0
  %v607 = vsel %vm602, %v579, 0
  %v610 = vsel %vm602, %v580, 0
  %612 = vmatprep.subr.bf16.mxu0 0
  %613 = vmatpush1.bf16.msra.mxu0 %v598
  %614 = vmatprep.subr.bf16.mxu0 0
  %615 = vmatpush1.bf16.msra.mxu0 %v599
  %616 = vmatprep.subr.bf16.mxu0 0
  %617 = vmatpush1.bf16.msra.mxu0 0
  %618 = vmatprep.subr.bf16.mxu0 0
  %619 = vmatpush1.bf16.msra.mxu0 0
  %620 = vmatprep.subr.bf16.mxu0 0
  %621 = vmatpush1.bf16.msra.mxu0 0
  %622 = vmatprep.subr.bf16.mxu0 0
  %623 = vmatpush1.bf16.msra.mxu0 0
  %624 = vmatprep.subr.bf16.mxu0 0
  %625 = vmatpush1.bf16.msra.mxu0 0
  %626 = vmatprep.subr.bf16.mxu0 0
  %627 = vmatpush1.bf16.msra.mxu0 0
  %628 = vmatprep.subr.bf16.mxu0 0
  %629 = vmatpush1.bf16.msra.mxu0 0
  %630 = vmatprep.subr.bf16.mxu0 0
  %631 = vmatpush1.bf16.msra.mxu0 0
  %632 = vmatprep.subr.bf16.mxu0 0
  %633 = vmatpush1.bf16.msra.mxu0 0
  %634 = vmatprep.subr.bf16.mxu0 0
  %635 = vmatpush1.bf16.msra.mxu0 0
  %636 = vmatprep.subr.bf16.mxu0 0
  %637 = vmatpush1.bf16.msra.mxu0 0
  %638 = vmatprep.subr.bf16.mxu0 0
  %639 = vmatpush1.bf16.msra.mxu0 0
  %640 = vmatprep.subr.bf16.mxu0 0
  %641 = vmatpush1.bf16.msra.mxu0 0
  %642 = vmatprep.subr.bf16.mxu0 0
  %643 = vmatpush1.bf16.msra.mxu0 0
  %644 = vmatprep.mubr.bf16.mxu0 0
  %645 = vmatmul.mubr.bf16.gmra.mrb[0].mxu0 %v604
  %v646 = vpop.f32.mrb[0].mxu0
  %v647 = vadd.f32 %v585, %v646
  %v648 = vpop.f32.mrb[0].mxu0
  %v649 = vpop.f32.mrb[0].mxu0
  %v650 = vadd.f32 %v586, %v649
  %v651 = vpop.f32.mrb[0].mxu0
  %652 = vmatprep.mubr.bf16.mxu0 0
  %653 = vmatmul.mubr.bf16.gmra.mrb[0].mxu0 %v607
  %v654 = vpop.f32.mrb[0].mxu0
  %v655 = vadd.f32 %v587, %v654
  %v656 = vpop.f32.mrb[0].mxu0
  %v657 = vpop.f32.mrb[0].mxu0
  %v658 = vadd.f32 %v588, %v657
  %v659 = vpop.f32.mrb[0].mxu0
  %660 = vmatprep.mubr.bf16.mxu0 0
  %661 = vmatmul.mubr.bf16.gmra.mrb[0].mxu0 %v610
  %v662 = vpop.f32.mrb[0].mxu0
  %v663 = vadd.f32 %v589, %v662
  %v664 = vpop.f32.mrb[0].mxu0
  %v665 = vpop.f32.mrb[0].mxu0
  %v666 = vpop.f32.mrb[0].mxu0
  %667 = vdwg.mxu0
  %v668 = vpack.c.bf16 %v650, %v647
  %v669 = vpack.c.bf16 %v658, %v655
  %v670 = vpack.c.bf16 %v663, %v663
  %674 = vrot.lane.b32.xlu0 %v668, 96
  %v675 = vpop.permute.xlu0 %674
  %676 = vrot.lane.b32.xlu0 %v669, 96
  %v677 = vpop.permute.xlu0 %676
  %678 = vrot.lane.b32.xlu0 %v670, 96
  %v679 = vpop.permute.xlu0 %678
  %vm680 = vcmask 64512
  %v682 = vsel %vm680, %v668, 0
  %v685 = vsel %vm680, %v669, 0
  %v688 = vsel %vm680, %v670, 0
  %v691 = vsel %vm680, %v675, 0
  %v694 = vsel %vm680, %v677, 0
  %v697 = vsel %vm680, %v679, 0
  %699 = vmatprep.subr.bf16.mxu0 0
  %700 = vmatpush1.bf16.xpose.msra.mxu0 %v691
  %701 = vmatprep.subr.bf16.mxu0 0
  %702 = vmatpush1.bf16.xpose.msra.mxu0 %v694
  %703 = vmatprep.subr.bf16.mxu0 0
  %704 = vmatpush1.bf16.xpose.msra.mxu0 %v697
  %705 = vmatprep.subr.bf16.mxu0 0
  %706 = vmatpush1.bf16.xpose.msra.mxu0 0
  %707 = vmatprep.subr.bf16.mxu0 0
  %708 = vmatpush1.bf16.xpose.msra.mxu0 0
  %709 = vmatprep.subr.bf16.mxu0 0
  %710 = vmatpush1.bf16.xpose.msra.mxu0 0
  %711 = vmatprep.subr.bf16.mxu0 0
  %712 = vmatpush1.bf16.xpose.msra.mxu0 0
  %713 = vmatprep.subr.bf16.mxu0 0
  %714 = vmatpush1.bf16.xpose.msra.mxu0 0
  %715 = vmatprep.subr.bf16.mxu0 0
  %716 = vmatpush1.bf16.xpose.msra.mxu0 0
  %717 = vmatprep.subr.bf16.mxu0 0
  %718 = vmatpush1.bf16.xpose.msra.mxu0 0
  %719 = vmatprep.subr.bf16.mxu0 0
  %720 = vmatpush1.bf16.xpose.msra.mxu0 0
  %721 = vmatprep.subr.bf16.mxu0 0
  %722 = vmatpush1.bf16.xpose.msra.mxu0 0
  %723 = vmatprep.subr.bf16.mxu0 0
  %724 = vmatpush1.bf16.xpose.msra.mxu0 0
  %725 = vmatprep.subr.bf16.mxu0 0
  %726 = vmatpush1.bf16.xpose.msra.mxu0 0
  %727 = vmatprep.subr.bf16.mxu0 0
  %728 = vmatpush1.bf16.xpose.msra.mxu0 0
  %729 = vmatprep.subr.bf16.mxu0 0
  %730 = vmatpush1.bf16.xpose.msra.mxu0 0
  %731 = vmatprep.mubr.bf16.mxu0 0
  %732 = vmatmul.mubr.bf16.gmra.mrb[0].mxu0 %v682
  %v733 = vpop.f32.mrb[0].mxu0
  %v734 = vadd.f32 0.0, %v733
  %v735 = vpop.f32.mrb[0].mxu0
  %v736 = vpop.f32.mrb[0].mxu0
  %v737 = vadd.f32 0.0, %v736
  %v738 = vpop.f32.mrb[0].mxu0
  %739 = vmatprep.mubr.bf16.mxu0 0
  %740 = vmatmul.mubr.bf16.gmra.mrb[0].mxu0 %v685
  %v741 = vpop.f32.mrb[0].mxu0
  %v742 = vadd.f32 0.0, %v741
  %v743 = vpop.f32.mrb[0].mxu0
  %v744 = vpop.f32.mrb[0].mxu0
  %v745 = vadd.f32 0.0, %v744
  %v746 = vpop.f32.mrb[0].mxu0
  %747 = vmatprep.mubr.bf16.mxu0 0
  %748 = vmatmul.mubr.bf16.gmra.mrb[0].mxu0 %v688
  %v749 = vpop.f32.mrb[0].mxu0
  %v750 = vadd.f32 0.0, %v749
  %v751 = vpop.f32.mrb[0].mxu0
  %v752 = vpop.f32.mrb[0].mxu0
  %v753 = vpop.f32.mrb[0].mxu0
  %754 = vdwg.mxu0
  %vm755 = vcmask 293888
  %v756 = vsel %vm755, %v734, -inf
  %757 = vmax.xlane.f32.xlu0 %v756
  %v758 = vpop.xlane.xlu0 %757
  %v759 = vsel %vm755, %v737, -inf
  %760 = vmax.xlane.f32.xlu0 %v759
  %v761 = vpop.xlane.xlu0 %760
  %v762 = vsel %vm755, %v742, -inf
  %763 = vmax.xlane.f32.xlu0 %v762
  %v764 = vpop.xlane.xlu0 %763
  %v765 = vsel %vm755, %v745, -inf
  %766 = vmax.xlane.f32.xlu0 %v765
  %v767 = vpop.xlane.xlu0 %766
  %vm768 = vcmask 289792
  %v769 = vsel %vm768, %v750, -inf
  %770 = vmax.xlane.f32.xlu0 %v769
  %v771 = vpop.xlane.xlu0 %770
  %v772 = vsub.f32 %v734, %v758
  %v773 = vsub.f32 %v737, %v761
  %v774 = vsub.f32 %v742, %v764
  %v775 = vsub.f32 %v745, %v767
  %v776 = vsub.f32 %v750, %v771
  %v777 = vmul.f32 %v772, 1.442695
  %v778 = vpow.pop %v777
  %v779 = vmul.f32 %v773, 1.442695
  %v780 = vpow.pop %v779
  %v781 = vmul.f32 %v774, 1.442695
  %v782 = vpow.pop %v781
  %v783 = vmul.f32 %v775, 1.442695
  %v784 = vpow.pop %v783
  %v785 = vmul.f32 %v776, 1.442695
  %v786 = vpow.pop %v785
  %v787 = vsel %vm755, %v778, 0.0
  %788 = vadd.xlane.f32.xlu0 %v787
  %v789 = vpop.xlane.xlu0 %788
  %v790 = vsel %vm755, %v780, 0.0
  %791 = vadd.xlane.f32.xlu0 %v790
  %v792 = vpop.xlane.xlu0 %791
  %v793 = vsel %vm755, %v782, 0.0
  %794 = vadd.xlane.f32.xlu0 %v793
  %v795 = vpop.xlane.xlu0 %794
  %v796 = vsel %vm755, %v784, 0.0
  %797 = vadd.xlane.f32.xlu0 %v796
  %v798 = vpop.xlane.xlu0 %797
  %v799 = vsel %vm768, %v786, 0.0
  %800 = vadd.xlane.f32.xlu0 %v799
  %v801 = vpop.xlane.xlu0 %800
  %v802 = vrcp.pop %v789
  %v803 = vrcp.pop %v792
  %v804 = vrcp.pop %v795
  %v805 = vrcp.pop %v798
  %v806 = vrcp.pop %v801
  %v807 = vmul.f32 %v778, %v802
  %v808 = vmul.f32 %v780, %v803
  %v809 = vmul.f32 %v782, %v804
  %v810 = vmul.f32 %v784, %v805
  %v811 = vmul.f32 %v786, %v806
  %v812 = vpack.c.bf16 %v808, %v807
  %v813 = vpack.c.bf16 %v810, %v809
  %v814 = vpack.c.bf16 %v811, %v811
  %815 = vrot.lane.b32.xlu0 %v668, 64
  %v816 = vpop.permute.xlu0 %815
  %817 = vrot.lane.b32.xlu0 %v669, 64
  %v818 = vpop.permute.xlu0 %817
  %819 = vrot.lane.b32.xlu0 %v670, 64
  %v820 = vpop.permute.xlu0 %819
  %v824 = vsel %vm755, %v812, 0
  %v827 = vsel %vm755, %v813, 0
  %v830 = vsel %vm755, %v814, 0
  %vm832 = vcmask 1041408
  %v834 = vsel %vm832, %v820, 0
  %836 = vmatprep.subr.bf16.mxu0 0
  %837 = vmatpush1.bf16.msra.mxu0 %v816
  %838 = vmatprep.subr.bf16.mxu0 0
  %839 = vmatpush1.bf16.msra.mxu0 %v818
  %840 = vmatprep.subr.bf16.mxu0 0
  %841 = vmatpush1.bf16.msra.mxu0 %v834
  %842 = vmatprep.subr.bf16.mxu0 0
  %843 = vmatpush1.bf16.msra.mxu0 0
  %844 = vmatprep.subr.bf16.mxu0 0
  %845 = vmatpush1.bf16.msra.mxu0 0
  %846 = vmatprep.subr.bf16.mxu0 0
  %847 = vmatpush1.bf16.msra.mxu0 0
  %848 = vmatprep.subr.bf16.mxu0 0
  %849 = vmatpush1.bf16.msra.mxu0 0
  %850 = vmatprep.subr.bf16.mxu0 0
  %851 = vmatpush1.bf16.msra.mxu0 0
  %852 = vmatprep.subr.bf16.mxu0 0
  %853 = vmatpush1.bf16.msra.mxu0 0
  %854 = vmatprep.subr.bf16.mxu0 0
  %855 = vmatpush1.bf16.msra.mxu0 0
  %856 = vmatprep.subr.bf16.mxu0 0
  %857 = vmatpush1.bf16.msra.mxu0 0
  %858 = vmatprep.subr.bf16.mxu0 0
  %859 = vmatpush1.bf16.msra.mxu0 0
  %860 = vmatprep.subr.bf16.mxu0 0
  %861 = vmatpush1.bf16.msra.mxu0 0
  %862 = vmatprep.subr.bf16.mxu0 0
  %863 = vmatpush1.bf16.msra.mxu0 0
  %864 = vmatprep.subr.bf16.mxu0 0
  %865 = vmatpush1.bf16.msra.mxu0 0
  %866 = vmatprep.subr.bf16.mxu0 0
  %867 = vmatpush1.bf16.msra.mxu0 0
  %868 = vmatprep.mubr.bf16.mxu0 0
  %869 = vmatmul.mubr.bf16.gmra.mrb[0].mxu0 %v824
  %v870 = vpop.f32.mrb[0].mxu0
  %v871 = vadd.f32 0.0, %v870
  %v872 = vpop.f32.mrb[0].mxu0
  %v873 = vpop.f32.mrb[0].mxu0
  %v874 = vadd.f32 0.0, %v873
  %v875 = vpop.f32.mrb[0].mxu0
  %876 = vmatprep.mubr.bf16.mxu0 0
  %877 = vmatmul.mubr.bf16.gmra.mrb[0].mxu0 %v827
  %v878 = vpop.f32.mrb[0].mxu0
  %v879 = vadd.f32 0.0, %v878
  %v880 = vpop.f32.mrb[0].mxu0
  %v881 = vpop.f32.mrb[0].mxu0
  %v882 = vadd.f32 0.0, %v881
  %v883 = vpop.f32.mrb[0].mxu0
  %884 = vmatprep.mubr.bf16.mxu0 0
  %885 = vmatmul.mubr.bf16.gmra.mrb[0].mxu0 %v830
  %v886 = vpop.f32.mrb[0].mxu0
  %v887 = vadd.f32 0.0, %v886
  %v888 = vpop.f32.mrb[0].mxu0
  %v889 = vpop.f32.mrb[0].mxu0
  %v890 = vpop.f32.mrb[0].mxu0
  %891 = vdwg.mxu0
  %892 = vrot.lane.b32.xlu0 %v668, 120
  %v893 = vpop.permute.xlu0 %892
  %894 = vrot.lane.b32.xlu0 %v669, 120
  %v895 = vpop.permute.xlu0 %894
  %896 = vrot.lane.b32.xlu0 %v670, 120
  %v897 = vpop.permute.xlu0 %896
  %898 = vrot.lane.b32.xlu0 %v668, 88
  %v899 = vpop.permute.xlu0 %898
  %900 = vrot.lane.b32.xlu0 %v669, 88
  %v901 = vpop.permute.xlu0 %900
  %902 = vrot.lane.b32.xlu0 %v670, 88
  %v903 = vpop.permute.xlu0 %902
  %v905 = vsel %vm680, %v893, 0
  %v908 = vsel %vm680, %v895, 0
  %v911 = vsel %vm680, %v897, 0
  %v914 = vsel %vm680, %v899, 0
  %v917 = vsel %vm680, %v901, 0
  %v920 = vsel %vm680, %v903, 0
  %922 = vmatprep.subr.bf16.mxu0 0
  %923 = vmatpush1.bf16.xpose.msra.mxu0 %v914
  %924 = vmatprep.subr.bf16.mxu0 0
  %925 = vmatpush1.bf16.xpose.msra.mxu0 %v917
  %926 = vmatprep.subr.bf16.mxu0 0
  %927 = vmatpush1.bf16.xpose.msra.mxu0 %v920
  %928 = vmatprep.subr.bf16.mxu0 0
  %929 = vmatpush1.bf16.xpose.msra.mxu0 0
  %930 = vmatprep.subr.bf16.mxu0 0
  %931 = vmatpush1.bf16.xpose.msra.mxu0 0
  %932 = vmatprep.subr.bf16.mxu0 0
  %933 = vmatpush1.bf16.xpose.msra.mxu0 0
  %934 = vmatprep.subr.bf16.mxu0 0
  %935 = vmatpush1.bf16.xpose.msra.mxu0 0
  %936 = vmatprep.subr.bf16.mxu0 0
  %937 = vmatpush1.bf16.xpose.msra.mxu0 0
  %938 = vmatprep.subr.bf16.mxu0 0
  %939 = vmatpush1.bf16.xpose.msra.mxu0 0
  %940 = vmatprep.subr.bf16.mxu0 0
  %941 = vmatpush1.bf16.xpose.msra.mxu0 0
  %942 = vmatprep.subr.bf16.mxu0 0
  %943 = vmatpush1.bf16.xpose.msra.mxu0 0
  %944 = vmatprep.subr.bf16.mxu0 0
  %945 = vmatpush1.bf16.xpose.msra.mxu0 0
  %946 = vmatprep.subr.bf16.mxu0 0
  %947 = vmatpush1.bf16.xpose.msra.mxu0 0
  %948 = vmatprep.subr.bf16.mxu0 0
  %949 = vmatpush1.bf16.xpose.msra.mxu0 0
  %950 = vmatprep.subr.bf16.mxu0 0
  %951 = vmatpush1.bf16.xpose.msra.mxu0 0
  %952 = vmatprep.subr.bf16.mxu0 0
  %953 = vmatpush1.bf16.xpose.msra.mxu0 0
  %954 = vmatprep.mubr.bf16.mxu0 0
  %955 = vmatmul.mubr.bf16.gmra.mrb[0].mxu0 %v905
  %v956 = vpop.f32.mrb[0].mxu0
  %v957 = vadd.f32 0.0, %v956
  %v958 = vpop.f32.mrb[0].mxu0
  %v959 = vpop.f32.mrb[0].mxu0
  %v960 = vadd.f32 0.0, %v959
  %v961 = vpop.f32.mrb[0].mxu0
  %962 = vmatprep.mubr.bf16.mxu0 0
  %963 = vmatmul.mubr.bf16.gmra.mrb[0].mxu0 %v908
  %v964 = vpop.f32.mrb[0].mxu0
  %v965 = vadd.f32 0.0, %v964
  %v966 = vpop.f32.mrb[0].mxu0
  %v967 = vpop.f32.mrb[0].mxu0
  %v968 = vadd.f32 0.0, %v967
  %v969 = vpop.f32.mrb[0].mxu0
  %970 = vmatprep.mubr.bf16.mxu0 0
  %971 = vmatmul.mubr.bf16.gmra.mrb[0].mxu0 %v911
  %v972 = vpop.f32.mrb[0].mxu0
  %v973 = vadd.f32 0.0, %v972
  %v974 = vpop.f32.mrb[0].mxu0
  %v975 = vpop.f32.mrb[0].mxu0
  %v976 = vpop.f32.mrb[0].mxu0
  %977 = vdwg.mxu0
  %v978 = vsel %vm755, %v957, -inf
  %979 = vmax.xlane.f32.xlu0 %v978
  %v980 = vpop.xlane.xlu0 %979
  %v981 = vsel %vm755, %v960, -inf
  %982 = vmax.xlane.f32.xlu0 %v981
  %v983 = vpop.xlane.xlu0 %982
  %v984 = vsel %vm755, %v965, -inf
  %985 = vmax.xlane.f32.xlu0 %v984
  %v986 = vpop.xlane.xlu0 %985
  %v987 = vsel %vm755, %v968, -inf
  %988 = vmax.xlane.f32.xlu0 %v987
  %v989 = vpop.xlane.xlu0 %988
  %v990 = vsel %vm768, %v973, -inf
  %991 = vmax.xlane.f32.xlu0 %v990
  %v992 = vpop.xlane.xlu0 %991
  %v993 = vsub.f32 %v957, %v980
  %v994 = vsub.f32 %v960, %v983
  %v995 = vsub.f32 %v965, %v986
  %v996 = vsub.f32 %v968, %v989
  %v997 = vsub.f32 %v973, %v992
  %v998 = vmul.f32 %v993, 1.442695
  %v999 = vpow.pop %v998
  %v1000 = vmul.f32 %v994, 1.442695
  %v1001 = vpow.pop %v1000
  %v1002 = vmul.f32 %v995, 1.442695
  %v1003 = vpow.pop %v1002
  %v1004 = vmul.f32 %v996, 1.442695
  %v1005 = vpow.pop %v1004
  %v1006 = vmul.f32 %v997, 1.442695
  %v1007 = vpow.pop %v1006
  %v1008 = vsel %vm755, %v999, 0.0
  %1009 = vadd.xlane.f32.xlu0 %v1008
  %v1010 = vpop.xlane.xlu0 %1009
  %v1011 = vsel %vm755, %v1001, 0.0
  %1012 = vadd.xlane.f32.xlu0 %v1011
  %v1013 = vpop.xlane.xlu0 %1012
  %v1014 = vsel %vm755, %v1003, 0.0
  %1015 = vadd.xlane.f32.xlu0 %v1014
  %v1016 = vpop.xlane.xlu0 %1015
  %v1017 = vsel %vm755, %v1005, 0.0
  %1018 = vadd.xlane.f32.xlu0 %v1017
  %v1019 = vpop.xlane.xlu0 %1018
  %v1020 = vsel %vm768, %v1007, 0.0
  %1021 = vadd.xlane.f32.xlu0 %v1020
  %v1022 = vpop.xlane.xlu0 %1021
  %v1023 = vrcp.pop %v1010
  %v1024 = vrcp.pop %v1013
  %v1025 = vrcp.pop %v1016
  %v1026 = vrcp.pop %v1019
  %v1027 = vrcp.pop %v1022
  %v1028 = vmul.f32 %v999, %v1023
  %v1029 = vmul.f32 %v1001, %v1024
  %v1030 = vmul.f32 %v1003, %v1025
  %v1031 = vmul.f32 %v1005, %v1026
  %v1032 = vmul.f32 %v1007, %v1027
  %v1033 = vpack.c.bf16 %v1029, %v1028
  %v1034 = vpack.c.bf16 %v1031, %v1030
  %v1035 = vpack.c.bf16 %v1032, %v1032
  %1036 = vrot.lane.b32.xlu0 %v668, 56
  %v1037 = vpop.permute.xlu0 %1036
  %1038 = vrot.lane.b32.xlu0 %v669, 56
  %v1039 = vpop.permute.xlu0 %1038
  %1040 = vrot.lane.b32.xlu0 %v670, 56
  %v1041 = vpop.permute.xlu0 %1040
  %v1045 = vsel %vm755, %v1033, 0
  %v1048 = vsel %vm755, %v1034, 0
  %v1051 = vsel %vm755, %v1035, 0
  %v1054 = vsel %vm832, %v1041, 0
  %1056 = vmatprep.subr.bf16.mxu0 0
  %1057 = vmatpush1.bf16.msra.mxu0 %v1037
  %1058 = vmatprep.subr.bf16.mxu0 0
  %1059 = vmatpush1.bf16.msra.mxu0 %v1039
  %1060 = vmatprep.subr.bf16.mxu0 0
  %1061 = vmatpush1.bf16.msra.mxu0 %v1054
  %1062 = vmatprep.subr.bf16.mxu0 0
  %1063 = vmatpush1.bf16.msra.mxu0 0
  %1064 = vmatprep.subr.bf16.mxu0 0
  %1065 = vmatpush1.bf16.msra.mxu0 0
  %1066 = vmatprep.subr.bf16.mxu0 0
  %1067 = vmatpush1.bf16.msra.mxu0 0
  %1068 = vmatprep.subr.bf16.mxu0 0
  %1069 = vmatpush1.bf16.msra.mxu0 0
  %1070 = vmatprep.subr.bf16.mxu0 0
  %1071 = vmatpush1.bf16.msra.mxu0 0
  %1072 = vmatprep.subr.bf16.mxu0 0
  %1073 = vmatpush1.bf16.msra.mxu0 0
  %1074 = vmatprep.subr.bf16.mxu0 0
  %1075 = vmatpush1.bf16.msra.mxu0 0
  %1076 = vmatprep.subr.bf16.mxu0 0
  %1077 = vmatpush1.bf16.msra.mxu0 0
  %1078 = vmatprep.subr.bf16.mxu0 0
  %1079 = vmatpush1.bf16.msra.mxu0 0
  %1080 = vmatprep.subr.bf16.mxu0 0
  %1081 = vmatpush1.bf16.msra.mxu0 0
  %1082 = vmatprep.subr.bf16.mxu0 0
  %1083 = vmatpush1.bf16.msra.mxu0 0
  %1084 = vmatprep.subr.bf16.mxu0 0
  %1085 = vmatpush1.bf16.msra.mxu0 0
  %1086 = vmatprep.subr.bf16.mxu0 0
  %1087 = vmatpush1.bf16.msra.mxu0 0
  %1088 = vmatprep.mubr.bf16.mxu0 0
  %1089 = vmatmul.mubr.bf16.gmra.mrb[0].mxu0 %v1045
  %v1090 = vpop.f32.mrb[0].mxu0
  %v1091 = vadd.f32 0.0, %v1090
  %v1092 = vpop.f32.mrb[0].mxu0
  %v1093 = vpop.f32.mrb[0].mxu0
  %v1094 = vadd.f32 0.0, %v1093
  %v1095 = vpop.f32.mrb[0].mxu0
  %1096 = vmatprep.mubr.bf16.mxu0 0
  %1097 = vmatmul.mubr.bf16.gmra.mrb[0].mxu0 %v1048
  %v1098 = vpop.f32.mrb[0].mxu0
  %v1099 = vadd.f32 0.0, %v1098
  %v1100 = vpop.f32.mrb[0].mxu0
  %v1101 = vpop.f32.mrb[0].mxu0
  %v1102 = vadd.f32 0.0, %v1101
  %v1103 = vpop.f32.mrb[0].mxu0
  %1104 = vmatprep.mubr.bf16.mxu0 0
  %1105 = vmatmul.mubr.bf16.gmra.mrb[0].mxu0 %v1051
  %v1106 = vpop.f32.mrb[0].mxu0
  %v1107 = vadd.f32 0.0, %v1106
  %v1108 = vpop.f32.mrb[0].mxu0
  %v1109 = vpop.f32.mrb[0].mxu0
  %v1110 = vpop.f32.mrb[0].mxu0
  %1111 = vdwg.mxu0
  %1112 = vrot.lane.b32.xlu0 %v668, 112
  %v1113 = vpop.permute.xlu0 %1112
  %1114 = vrot.lane.b32.xlu0 %v669, 112
  %v1115 = vpop.permute.xlu0 %1114
  %1116 = vrot.lane.b32.xlu0 %v670, 112
  %v1117 = vpop.permute.xlu0 %1116
  %1118 = vrot.lane.b32.xlu0 %v668, 80
  %v1119 = vpop.permute.xlu0 %1118
  %1120 = vrot.lane.b32.xlu0 %v669, 80
  %v1121 = vpop.permute.xlu0 %1120
  %1122 = vrot.lane.b32.xlu0 %v670, 80
  %v1123 = vpop.permute.xlu0 %1122
  %v1125 = vsel %vm680, %v1113, 0
  %v1128 = vsel %vm680, %v1115, 0
  %v1131 = vsel %vm680, %v1117, 0
  %v1134 = vsel %vm680, %v1119, 0
  %v1137 = vsel %vm680, %v1121, 0
  %v1140 = vsel %vm680, %v1123, 0
  %1142 = vmatprep.subr.bf16.mxu0 0
  %1143 = vmatpush1.bf16.xpose.msra.mxu0 %v1134
  %1144 = vmatprep.subr.bf16.mxu0 0
  %1145 = vmatpush1.bf16.xpose.msra.mxu0 %v1137
  %1146 = vmatprep.subr.bf16.mxu0 0
  %1147 = vmatpush1.bf16.xpose.msra.mxu0 %v1140
  %1148 = vmatprep.subr.bf16.mxu0 0
  %1149 = vmatpush1.bf16.xpose.msra.mxu0 0
  %1150 = vmatprep.subr.bf16.mxu0 0
  %1151 = vmatpush1.bf16.xpose.msra.mxu0 0
  %1152 = vmatprep.subr.bf16.mxu0 0
  %1153 = vmatpush1.bf16.xpose.msra.mxu0 0
  %1154 = vmatprep.subr.bf16.mxu0 0
  %1155 = vmatpush1.bf16.xpose.msra.mxu0 0
  %1156 = vmatprep.subr.bf16.mxu0 0
  %1157 = vmatpush1.bf16.xpose.msra.mxu0 0
  %1158 = vmatprep.subr.bf16.mxu0 0
  %1159 = vmatpush1.bf16.xpose.msra.mxu0 0
  %1160 = vmatprep.subr.bf16.mxu0 0
  %1161 = vmatpush1.bf16.xpose.msra.mxu0 0
  %1162 = vmatprep.subr.bf16.mxu0 0
  %1163 = vmatpush1.bf16.xpose.msra.mxu0 0
  %1164 = vmatprep.subr.bf16.mxu0 0
  %1165 = vmatpush1.bf16.xpose.msra.mxu0 0
  %1166 = vmatprep.subr.bf16.mxu0 0
  %1167 = vmatpush1.bf16.xpose.msra.mxu0 0
  %1168 = vmatprep.subr.bf16.mxu0 0
  %1169 = vmatpush1.bf16.xpose.msra.mxu0 0
  %1170 = vmatprep.subr.bf16.mxu0 0
  %1171 = vmatpush1.bf16.xpose.msra.mxu0 0
  %1172 = vmatprep.subr.bf16.mxu0 0
  %1173 = vmatpush1.bf16.xpose.msra.mxu0 0
  %1174 = vmatprep.mubr.bf16.mxu0 0
  %1175 = vmatmul.mubr.bf16.gmra.mrb[0].mxu0 %v1125
  %v1176 = vpop.f32.mrb[0].mxu0
  %v1177 = vadd.f32 0.0, %v1176
  %v1178 = vpop.f32.mrb[0].mxu0
  %v1179 = vpop.f32.mrb[0].mxu0
  %v1180 = vadd.f32 0.0, %v1179
  %v1181 = vpop.f32.mrb[0].mxu0
  %1182 = vmatprep.mubr.bf16.mxu0 0
  %1183 = vmatmul.mubr.bf16.gmra.mrb[0].mxu0 %v1128
  %v1184 = vpop.f32.mrb[0].mxu0
  %v1185 = vadd.f32 0.0, %v1184
  %v1186 = vpop.f32.mrb[0].mxu0
  %v1187 = vpop.f32.mrb[0].mxu0
  %v1188 = vadd.f32 0.0, %v1187
  %v1189 = vpop.f32.mrb[0].mxu0
  %1190 = vmatprep.mubr.bf16.mxu0 0
  %1191 = vmatmul.mubr.bf16.gmra.mrb[0].mxu0 %v1131
  %v1192 = vpop.f32.mrb[0].mxu0
  %v1193 = vadd.f32 0.0, %v1192
  %v1194 = vpop.f32.mrb[0].mxu0
  %v1195 = vpop.f32.mrb[0].mxu0
  %v1196 = vpop.f32.mrb[0].mxu0
  %1197 = vdwg.mxu0
  %v1198 = vsel %vm755, %v1177, -inf
  %1199 = vmax.xlane.f32.xlu0 %v1198
  %v1200 = vpop.xlane.xlu0 %1199
  %v1201 = vsel %vm755, %v1180, -inf
  %1202 = vmax.xlane.f32.xlu0 %v1201
  %v1203 = vpop.xlane.xlu0 %1202
  %v1204 = vsel %vm755, %v1185, -inf
  %1205 = vmax.xlane.f32.xlu0 %v1204
  %v1206 = vpop.xlane.xlu0 %1205
  %v1207 = vsel %vm755, %v1188, -inf
  %1208 = vmax.xlane.f32.xlu0 %v1207
  %v1209 = vpop.xlane.xlu0 %1208
  %v1210 = vsel %vm768, %v1193, -inf
  %1211 = vmax.xlane.f32.xlu0 %v1210
  %v1212 = vpop.xlane.xlu0 %1211
  %v1213 = vsub.f32 %v1177, %v1200
  %v1214 = vsub.f32 %v1180, %v1203
  %v1215 = vsub.f32 %v1185, %v1206
  %v1216 = vsub.f32 %v1188, %v1209
  %v1217 = vsub.f32 %v1193, %v1212
  %v1218 = vmul.f32 %v1213, 1.442695
  %v1219 = vpow.pop %v1218
  %v1220 = vmul.f32 %v1214, 1.442695
  %v1221 = vpow.pop %v1220
  %v1222 = vmul.f32 %v1215, 1.442695
  %v1223 = vpow.pop %v1222
  %v1224 = vmul.f32 %v1216, 1.442695
  %v1225 = vpow.pop %v1224
  %v1226 = vmul.f32 %v1217, 1.442695
  %v1227 = vpow.pop %v1226
  %v1228 = vsel %vm755, %v1219, 0.0
  %1229 = vadd.xlane.f32.xlu0 %v1228
  %v1230 = vpop.xlane.xlu0 %1229
  %v1231 = vsel %vm755, %v1221, 0.0
  %1232 = vadd.xlane.f32.xlu0 %v1231
  %v1233 = vpop.xlane.xlu0 %1232
  %v1234 = vsel %vm755, %v1223, 0.0
  %1235 = vadd.xlane.f32.xlu0 %v1234
  %v1236 = vpop.xlane.xlu0 %1235
  %v1237 = vsel %vm755, %v1225, 0.0
  %1238 = vadd.xlane.f32.xlu0 %v1237
  %v1239 = vpop.xlane.xlu0 %1238
  %v1240 = vsel %vm768, %v1227, 0.0
  %1241 = vadd.xlane.f32.xlu0 %v1240
  %v1242 = vpop.xlane.xlu0 %1241
  %v1243 = vrcp.pop %v1230
  %v1244 = vrcp.pop %v1233
  %v1245 = vrcp.pop %v1236
  %v1246 = vrcp.pop %v1239
  %v1247 = vrcp.pop %v1242
  %v1248 = vmul.f32 %v1219, %v1243
  %v1249 = vmul.f32 %v1221, %v1244
  %v1250 = vmul.f32 %v1223, %v1245
  %v1251 = vmul.f32 %v1225, %v1246
  %v1252 = vmul.f32 %v1227, %v1247
  %v1253 = vpack.c.bf16 %v1249, %v1248
  %v1254 = vpack.c.bf16 %v1251, %v1250
  %v1255 = vpack.c.bf16 %v1252, %v1252
  %1256 = vrot.lane.b32.xlu0 %v668, 48
  %v1257 = vpop.permute.xlu0 %1256
  %1258 = vrot.lane.b32.xlu0 %v669, 48
  %v1259 = vpop.permute.xlu0 %1258
  %1260 = vrot.lane.b32.xlu0 %v670, 48
  %v1261 = vpop.permute.xlu0 %1260
  %v1265 = vsel %vm755, %v1253, 0
  %v1268 = vsel %vm755, %v1254, 0
  %v1271 = vsel %vm755, %v1255, 0
  %v1274 = vsel %vm832, %v1261, 0
  %1276 = vmatprep.subr.bf16.mxu0 0
  %1277 = vmatpush1.bf16.msra.mxu0 %v1257
  %1278 = vmatprep.subr.bf16.mxu0 0
  %1279 = vmatpush1.bf16.msra.mxu0 %v1259
  %1280 = vmatprep.subr.bf16.mxu0 0
  %1281 = vmatpush1.bf16.msra.mxu0 %v1274
  %1282 = vmatprep.subr.bf16.mxu0 0
  %1283 = vmatpush1.bf16.msra.mxu0 0
  %1284 = vmatprep.subr.bf16.mxu0 0
  %1285 = vmatpush1.bf16.msra.mxu0 0
  %1286 = vmatprep.subr.bf16.mxu0 0
  %1287 = vmatpush1.bf16.msra.mxu0 0
  %1288 = vmatprep.subr.bf16.mxu0 0
  %1289 = vmatpush1.bf16.msra.mxu0 0
  %1290 = vmatprep.subr.bf16.mxu0 0
  %1291 = vmatpush1.bf16.msra.mxu0 0
  %1292 = vmatprep.subr.bf16.mxu0 0
  %1293 = vmatpush1.bf16.msra.mxu0 0
  %1294 = vmatprep.subr.bf16.mxu0 0
  %1295 = vmatpush1.bf16.msra.mxu0 0
  %1296 = vmatprep.subr.bf16.mxu0 0
  %1297 = vmatpush1.bf16.msra.mxu0 0
  %1298 = vmatprep.subr.bf16.mxu0 0
  %1299 = vmatpush1.bf16.msra.mxu0 0
  %1300 = vmatprep.subr.bf16.mxu0 0
  %1301 = vmatpush1.bf16.msra.mxu0 0
  %1302 = vmatprep.subr.bf16.mxu0 0
  %1303 = vmatpush1.bf16.msra.mxu0 0
  %1304 = vmatprep.subr.bf16.mxu0 0
  %1305 = vmatpush1.bf16.msra.mxu0 0
  %1306 = vmatprep.subr.bf16.mxu0 0
  %1307 = vmatpush1.bf16.msra.mxu0 0
  %1308 = vmatprep.mubr.bf16.mxu0 0
  %1309 = vmatmul.mubr.bf16.gmra.mrb[0].mxu0 %v1265
  %v1310 = vpop.f32.mrb[0].mxu0
  %v1311 = vadd.f32 0.0, %v1310
  %v1312 = vpop.f32.mrb[0].mxu0
  %v1313 = vpop.f32.mrb[0].mxu0
  %v1314 = vadd.f32 0.0, %v1313
  %v1315 = vpop.f32.mrb[0].mxu0
  %1316 = vmatprep.mubr.bf16.mxu0 0
  %1317 = vmatmul.mubr.bf16.gmra.mrb[0].mxu0 %v1268
  %v1318 = vpop.f32.mrb[0].mxu0
  %v1319 = vadd.f32 0.0, %v1318
  %v1320 = vpop.f32.mrb[0].mxu0
  %v1321 = vpop.f32.mrb[0].mxu0
  %v1322 = vadd.f32 0.0, %v1321
  %v1323 = vpop.f32.mrb[0].mxu0
  %1324 = vmatprep.mubr.bf16.mxu0 0
  %1325 = vmatmul.mubr.bf16.gmra.mrb[0].mxu0 %v1271
  %v1326 = vpop.f32.mrb[0].mxu0
  %v1327 = vadd.f32 0.0, %v1326
  %v1328 = vpop.f32.mrb[0].mxu0
  %v1329 = vpop.f32.mrb[0].mxu0
  %v1330 = vpop.f32.mrb[0].mxu0
  %1331 = vdwg.mxu0
  %1332 = vrot.lane.b32.xlu0 %v668, 104
  %v1333 = vpop.permute.xlu0 %1332
  %1334 = vrot.lane.b32.xlu0 %v669, 104
  %v1335 = vpop.permute.xlu0 %1334
  %1336 = vrot.lane.b32.xlu0 %v670, 104
  %v1337 = vpop.permute.xlu0 %1336
  %1338 = vrot.lane.b32.xlu0 %v668, 72
  %v1339 = vpop.permute.xlu0 %1338
  %1340 = vrot.lane.b32.xlu0 %v669, 72
  %v1341 = vpop.permute.xlu0 %1340
  %1342 = vrot.lane.b32.xlu0 %v670, 72
  %v1343 = vpop.permute.xlu0 %1342
  %v1345 = vsel %vm680, %v1333, 0
  %v1348 = vsel %vm680, %v1335, 0
  %v1351 = vsel %vm680, %v1337, 0
  %v1354 = vsel %vm680, %v1339, 0
  %v1357 = vsel %vm680, %v1341, 0
  %v1360 = vsel %vm680, %v1343, 0
  %1362 = vmatprep.subr.bf16.mxu0 0
  %1363 = vmatpush1.bf16.xpose.msra.mxu0 %v1354
  %1364 = vmatprep.subr.bf16.mxu0 0
  %1365 = vmatpush1.bf16.xpose.msra.mxu0 %v1357
  %1366 = vmatprep.subr.bf16.mxu0 0
  %1367 = vmatpush1.bf16.xpose.msra.mxu0 %v1360
  %1368 = vmatprep.subr.bf16.mxu0 0
  %1369 = vmatpush1.bf16.xpose.msra.mxu0 0
  %1370 = vmatprep.subr.bf16.mxu0 0
  %1371 = vmatpush1.bf16.xpose.msra.mxu0 0
  %1372 = vmatprep.subr.bf16.mxu0 0
  %1373 = vmatpush1.bf16.xpose.msra.mxu0 0
  %1374 = vmatprep.subr.bf16.mxu0 0
  %1375 = vmatpush1.bf16.xpose.msra.mxu0 0
  %1376 = vmatprep.subr.bf16.mxu0 0
  %1377 = vmatpush1.bf16.xpose.msra.mxu0 0
  %1378 = vmatprep.subr.bf16.mxu0 0
  %1379 = vmatpush1.bf16.xpose.msra.mxu0 0
  %1380 = vmatprep.subr.bf16.mxu0 0
  %1381 = vmatpush1.bf16.xpose.msra.mxu0 0
  %1382 = vmatprep.subr.bf16.mxu0 0
  %1383 = vmatpush1.bf16.xpose.msra.mxu0 0
  %1384 = vmatprep.subr.bf16.mxu0 0
  %1385 = vmatpush1.bf16.xpose.msra.mxu0 0
  %1386 = vmatprep.subr.bf16.mxu0 0
  %1387 = vmatpush1.bf16.xpose.msra.mxu0 0
  %1388 = vmatprep.subr.bf16.mxu0 0
  %1389 = vmatpush1.bf16.xpose.msra.mxu0 0
  %1390 = vmatprep.subr.bf16.mxu0 0
  %1391 = vmatpush1.bf16.xpose.msra.mxu0 0
  %1392 = vmatprep.subr.bf16.mxu0 0
  %1393 = vmatpush1.bf16.xpose.msra.mxu0 0
  %1394 = vmatprep.mubr.bf16.mxu0 0
  %1395 = vmatmul.mubr.bf16.gmra.mrb[0].mxu0 %v1345
  %v1396 = vpop.f32.mrb[0].mxu0
  %v1397 = vadd.f32 0.0, %v1396
  %v1398 = vpop.f32.mrb[0].mxu0
  %v1399 = vpop.f32.mrb[0].mxu0
  %v1400 = vadd.f32 0.0, %v1399
  %v1401 = vpop.f32.mrb[0].mxu0
  %1402 = vmatprep.mubr.bf16.mxu0 0
  %1403 = vmatmul.mubr.bf16.gmra.mrb[0].mxu0 %v1348
  %v1404 = vpop.f32.mrb[0].mxu0
  %v1405 = vadd.f32 0.0, %v1404
  %v1406 = vpop.f32.mrb[0].mxu0
  %v1407 = vpop.f32.mrb[0].mxu0
  %v1408 = vadd.f32 0.0, %v1407
  %v1409 = vpop.f32.mrb[0].mxu0
  %1410 = vmatprep.mubr.bf16.mxu0 0
  %1411 = vmatmul.mubr.bf16.gmra.mrb[0].mxu0 %v1351
  %v1412 = vpop.f32.mrb[0].mxu0
  %v1413 = vadd.f32 0.0, %v1412
  %v1414 = vpop.f32.mrb[0].mxu0
  %v1415 = vpop.f32.mrb[0].mxu0
  %v1416 = vpop.f32.mrb[0].mxu0
  %1417 = vdwg.mxu0
  %v1418 = vsel %vm755, %v1397, -inf
  %1419 = vmax.xlane.f32.xlu0 %v1418
  %v1420 = vpop.xlane.xlu0 %1419
  %v1421 = vsel %vm755, %v1400, -inf
  %1422 = vmax.xlane.f32.xlu0 %v1421
  %v1423 = vpop.xlane.xlu0 %1422
  %v1424 = vsel %vm755, %v1405, -inf
  %1425 = vmax.xlane.f32.xlu0 %v1424
  %v1426 = vpop.xlane.xlu0 %1425
  %v1427 = vsel %vm755, %v1408, -inf
  %1428 = vmax.xlane.f32.xlu0 %v1427
  %v1429 = vpop.xlane.xlu0 %1428
  %v1430 = vsel %vm768, %v1413, -inf
  %1431 = vmax.xlane.f32.xlu0 %v1430
  %v1432 = vpop.xlane.xlu0 %1431
  %v1433 = vsub.f32 %v1397, %v1420
  %v1434 = vsub.f32 %v1400, %v1423
  %v1435 = vsub.f32 %v1405, %v1426
  %v1436 = vsub.f32 %v1408, %v1429
  %v1437 = vsub.f32 %v1413, %v1432
  %v1438 = vmul.f32 %v1433, 1.442695
  %v1439 = vpow.pop %v1438
  %v1440 = vmul.f32 %v1434, 1.442695
  %v1441 = vpow.pop %v1440
  %v1442 = vmul.f32 %v1435, 1.442695
  %v1443 = vpow.pop %v1442
  %v1444 = vmul.f32 %v1436, 1.442695
  %v1445 = vpow.pop %v1444
  %v1446 = vmul.f32 %v1437, 1.442695
  %v1447 = vpow.pop %v1446
  %v1448 = vsel %vm755, %v1439, 0.0
  %1449 = vadd.xlane.f32.xlu0 %v1448
  %v1450 = vpop.xlane.xlu0 %1449
  %v1451 = vsel %vm755, %v1441, 0.0
  %1452 = vadd.xlane.f32.xlu0 %v1451
  %v1453 = vpop.xlane.xlu0 %1452
  %v1454 = vsel %vm755, %v1443, 0.0
  %1455 = vadd.xlane.f32.xlu0 %v1454
  %v1456 = vpop.xlane.xlu0 %1455
  %v1457 = vsel %vm755, %v1445, 0.0
  %1458 = vadd.xlane.f32.xlu0 %v1457
  %v1459 = vpop.xlane.xlu0 %1458
  %v1460 = vsel %vm768, %v1447, 0.0
  %1461 = vadd.xlane.f32.xlu0 %v1460
  %v1462 = vpop.xlane.xlu0 %1461
  %v1463 = vrcp.pop %v1450
  %v1464 = vrcp.pop %v1453
  %v1465 = vrcp.pop %v1456
  %v1466 = vrcp.pop %v1459
  %v1467 = vrcp.pop %v1462
  %v1468 = vmul.f32 %v1439, %v1463
  %v1469 = vmul.f32 %v1441, %v1464
  %v1470 = vmul.f32 %v1443, %v1465
  %v1471 = vmul.f32 %v1445, %v1466
  %v1472 = vmul.f32 %v1447, %v1467
  %v1473 = vpack.c.bf16 %v1469, %v1468
  %v1474 = vpack.c.bf16 %v1471, %v1470
  %v1475 = vpack.c.bf16 %v1472, %v1472
  %1476 = vrot.lane.b32.xlu0 %v668, 40
  %v1477 = vpop.permute.xlu0 %1476
  %1478 = vrot.lane.b32.xlu0 %v669, 40
  %v1479 = vpop.permute.xlu0 %1478
  %1480 = vrot.lane.b32.xlu0 %v670, 40
  %v1481 = vpop.permute.xlu0 %1480
  %v1485 = vsel %vm755, %v1473, 0
  %v1488 = vsel %vm755, %v1474, 0
  %v1491 = vsel %vm755, %v1475, 0
  %v1494 = vsel %vm832, %v1481, 0
  %1496 = vmatprep.subr.bf16.mxu0 0
  %1497 = vmatpush1.bf16.msra.mxu0 %v1477
  %1498 = vmatprep.subr.bf16.mxu0 0
  %1499 = vmatpush1.bf16.msra.mxu0 %v1479
  %1500 = vmatprep.subr.bf16.mxu0 0
  %1501 = vmatpush1.bf16.msra.mxu0 %v1494
  %1502 = vmatprep.subr.bf16.mxu0 0
  %1503 = vmatpush1.bf16.msra.mxu0 0
  %1504 = vmatprep.subr.bf16.mxu0 0
  %1505 = vmatpush1.bf16.msra.mxu0 0
  %1506 = vmatprep.subr.bf16.mxu0 0
  %1507 = vmatpush1.bf16.msra.mxu0 0
  %1508 = vmatprep.subr.bf16.mxu0 0
  %1509 = vmatpush1.bf16.msra.mxu0 0
  %1510 = vmatprep.subr.bf16.mxu0 0
  %1511 = vmatpush1.bf16.msra.mxu0 0
  %1512 = vmatprep.subr.bf16.mxu0 0
  %1513 = vmatpush1.bf16.msra.mxu0 0
  %1514 = vmatprep.subr.bf16.mxu0 0
  %1515 = vmatpush1.bf16.msra.mxu0 0
  %1516 = vmatprep.subr.bf16.mxu0 0
  %1517 = vmatpush1.bf16.msra.mxu0 0
  %1518 = vmatprep.subr.bf16.mxu0 0
  %1519 = vmatpush1.bf16.msra.mxu0 0
  %1520 = vmatprep.subr.bf16.mxu0 0
  %1521 = vmatpush1.bf16.msra.mxu0 0
  %1522 = vmatprep.subr.bf16.mxu0 0
  %1523 = vmatpush1.bf16.msra.mxu0 0
  %1524 = vmatprep.subr.bf16.mxu0 0
  %1525 = vmatpush1.bf16.msra.mxu0 0
  %1526 = vmatprep.subr.bf16.mxu0 0
  %1527 = vmatpush1.bf16.msra.mxu0 0
  %1528 = vmatprep.mubr.bf16.mxu0 0
  %1529 = vmatmul.mubr.bf16.gmra.mrb[0].mxu0 %v1485
  %v1530 = vpop.f32.mrb[0].mxu0
  %v1531 = vadd.f32 0.0, %v1530
  %v1532 = vpop.f32.mrb[0].mxu0
  %v1533 = vpop.f32.mrb[0].mxu0
  %v1534 = vadd.f32 0.0, %v1533
  %v1535 = vpop.f32.mrb[0].mxu0
  %1536 = vmatprep.mubr.bf16.mxu0 0
  %1537 = vmatmul.mubr.bf16.gmra.mrb[0].mxu0 %v1488
  %v1538 = vpop.f32.mrb[0].mxu0
  %v1539 = vadd.f32 0.0, %v1538
  %v1540 = vpop.f32.mrb[0].mxu0
  %v1541 = vpop.f32.mrb[0].mxu0
  %v1542 = vadd.f32 0.0, %v1541
  %v1543 = vpop.f32.mrb[0].mxu0
  %1544 = vmatprep.mubr.bf16.mxu0 0
  %1545 = vmatmul.mubr.bf16.gmra.mrb[0].mxu0 %v1491
  %v1546 = vpop.f32.mrb[0].mxu0
  %v1547 = vadd.f32 0.0, %v1546
  %v1548 = vpop.f32.mrb[0].mxu0
  %v1549 = vpop.f32.mrb[0].mxu0
  %v1550 = vpop.f32.mrb[0].mxu0
  %1551 = vdwg.mxu0
  %1557 = vrot.lane.b32.xlu0 %v1091, 8
  %v1558 = vpop.permute.xlu0 %1557
  %1559 = vrot.lane.b32.xlu0 %v1094, 8
  %v1560 = vpop.permute.xlu0 %1559
  %1561 = vrot.lane.b32.xlu0 %v1099, 8
  %v1562 = vpop.permute.xlu0 %1561
  %1563 = vrot.lane.b32.xlu0 %v1102, 8
  %v1564 = vpop.permute.xlu0 %1563
  %1565 = vrot.lane.b32.xlu0 %v1107, 8
  %v1566 = vpop.permute.xlu0 %1565
  %1577 = vrot.lane.b32.xlu0 %v1311, 16
  %v1578 = vpop.permute.xlu0 %1577
  %1579 = vrot.lane.b32.xlu0 %v1314, 16
  %v1580 = vpop.permute.xlu0 %1579
  %1581 = vrot.lane.b32.xlu0 %v1319, 16
  %v1582 = vpop.permute.xlu0 %1581
  %1583 = vrot.lane.b32.xlu0 %v1322, 16
  %v1584 = vpop.permute.xlu0 %1583
  %1585 = vrot.lane.b32.xlu0 %v1327, 16
  %v1586 = vpop.permute.xlu0 %1585
  %1597 = vrot.lane.b32.xlu0 %v1531, 24
  %v1598 = vpop.permute.xlu0 %1597
  %1599 = vrot.lane.b32.xlu0 %v1534, 24
  %v1600 = vpop.permute.xlu0 %1599
  %1601 = vrot.lane.b32.xlu0 %v1539, 24
  %v1602 = vpop.permute.xlu0 %1601
  %1603 = vrot.lane.b32.xlu0 %v1542, 24
  %v1604 = vpop.permute.xlu0 %1603
  %1605 = vrot.lane.b32.xlu0 %v1547, 24
  %v1606 = vpop.permute.xlu0 %1605
  %v1612 = vsel %vm680, %v871, %v1558
  %v1613 = vsel %vm680, %v874, %v1560
  %v1614 = vsel %vm680, %v879, %v1562
  %v1615 = vsel %vm680, %v882, %v1564
  %v1616 = vsel %vm680, %v887, %v1566
  %vm1617 = vcmask 130048
  %v1618 = vsel %vm1617, %v1612, %v1578
  %v1619 = vsel %vm1617, %v1613, %v1580
  %v1620 = vsel %vm1617, %v1614, %v1582
  %v1621 = vsel %vm1617, %v1615, %v1584
  %v1622 = vsel %vm1617, %v1616, %v1586
  %vm1623 = vcmask 195584
  %v1624 = vsel %vm1623, %v1618, %v1598
  %v1625 = vsel %vm1623, %v1619, %v1600
  %v1626 = vsel %vm1623, %v1620, %v1602
  %v1627 = vsel %vm1623, %v1621, %v1604
  %v1628 = vsel %vm1623, %v1622, %v1606
  %v1629 = vpack.c.bf16 %v1625, %v1624
  %v1630 = vpack.c.bf16 %v1627, %v1626
  %v1631 = vpack.c.bf16 %v1628, %v1628
  %v1632 = vld [vmem:[%s4] sm:$0xff]
  %v1633 = vld [vmem:[%s4 + $0x8] sm:$0xff]
  %v1634 = vld [vmem:[%s4 + $0x10] sm:$0xff]
  %v1635 = vld [vmem:[%s4 + $0x18] sm:$0xff]
  %v1636 = vld [vmem:[%s4 + $0x20] sm:$0xf]
  %v1637 = vld [vmem:[%s4 + $0x24] sm:$0xff]
  %v1638 = vld [vmem:[%s4 + $0x2c] sm:$0xff]
  %v1639 = vld [vmem:[%s4 + $0x34] sm:$0xff]
  %v1640 = vld [vmem:[%s4 + $0x3c] sm:$0xff]
  %v1641 = vld [vmem:[%s4 + $0x44] sm:$0xf]
  %v1642 = vld [vmem:[%s4 + $0x48] sm:$0xff]
  %v1643 = vld [vmem:[%s4 + $0x50] sm:$0xff]
  %v1644 = vld [vmem:[%s4 + $0x58] sm:$0xff]
  %v1645 = vld [vmem:[%s4 + $0x60] sm:$0xff]
  %v1646 = vld [vmem:[%s4 + $0x68] sm:$0xf]
  %v1647 = vld [vmem:[%s4 + $0x6c] sm:$0xff]
  %v1648 = vld [vmem:[%s4 + $0x74] sm:$0xff]
  %v1649 = vld [vmem:[%s4 + $0x7c] sm:$0xff]
  %v1650 = vld [vmem:[%s4 + $0x84] sm:$0xff]
  %v1651 = vld [vmem:[%s4 + $0x8c] sm:$0xf]
  %v1672 = vunpack.c.l.b16 %v1632
  %v1673 = vunpack.c.h.b16 %v1632
  %v1674 = vunpack.c.l.b16 %v1633
  %v1675 = vunpack.c.h.b16 %v1633
  %v1676 = vunpack.c.l.b16 %v1634
  %v1677 = vunpack.c.h.b16 %v1634
  %v1678 = vunpack.c.l.b16 %v1635
  %v1679 = vunpack.c.h.b16 %v1635
  %v1680 = vunpack.c.l.b16 %v1636
  %v1681 = vunpack.c.l.b16 %v1637
  %v1682 = vunpack.c.h.b16 %v1637
  %v1683 = vunpack.c.l.b16 %v1638
  %v1684 = vunpack.c.h.b16 %v1638
  %v1685 = vunpack.c.l.b16 %v1639
  %v1686 = vunpack.c.h.b16 %v1639
  %v1687 = vunpack.c.l.b16 %v1640
  %v1688 = vunpack.c.h.b16 %v1640
  %v1689 = vunpack.c.l.b16 %v1641
  %v1690 = vunpack.c.l.b16 %v1642
  %v1691 = vunpack.c.h.b16 %v1642
  %v1692 = vunpack.c.l.b16 %v1643
  %v1693 = vunpack.c.h.b16 %v1643
  %v1694 = vunpack.c.l.b16 %v1644
  %v1695 = vunpack.c.h.b16 %v1644
  %v1696 = vunpack.c.l.b16 %v1645
  %v1697 = vunpack.c.h.b16 %v1645
  %v1698 = vunpack.c.l.b16 %v1646
  %v1699 = vunpack.c.l.b16 %v1647
  %v1700 = vunpack.c.h.b16 %v1647
  %v1701 = vunpack.c.l.b16 %v1648
  %v1702 = vunpack.c.h.b16 %v1648
  %v1703 = vunpack.c.l.b16 %v1649
  %v1704 = vunpack.c.h.b16 %v1649
  %v1705 = vunpack.c.l.b16 %v1650
  %v1706 = vunpack.c.h.b16 %v1650
  %v1707 = vunpack.c.l.b16 %v1651
  %v1708 = vpack.c.b16 %v1681, %v1672
  %v1709 = vpack.c.b16 %v1682, %v1673
  %v1710 = vpack.c.b16 %v1683, %v1674
  %v1711 = vpack.c.b16 %v1684, %v1675
  %v1712 = vpack.c.b16 %v1685, %v1676
  %v1713 = vpack.c.b16 %v1686, %v1677
  %v1714 = vpack.c.b16 %v1687, %v1678
  %v1715 = vpack.c.b16 %v1688, %v1679
  %v1716 = vpack.c.b16 %v1689, %v1680
  %v1717 = vpack.c.b16 %v1699, %v1690
  %v1718 = vpack.c.b16 %v1700, %v1691
  %v1719 = vpack.c.b16 %v1701, %v1692
  %v1720 = vpack.c.b16 %v1702, %v1693
  %v1721 = vpack.c.b16 %v1703, %v1694
  %v1722 = vpack.c.b16 %v1704, %v1695
  %v1723 = vpack.c.b16 %v1705, %v1696
  %v1724 = vpack.c.b16 %v1706, %v1697
  %v1725 = vpack.c.b16 %v1707, %v1698
  %v1745 = vsel %vm602, %v1629, 0
  %v1748 = vsel %vm602, %v1630, 0
  %v1751 = vsel %vm602, %v1631, 0
  %1753 = vmatprep.subr.bf16.mxu0 %v1709
  %1754 = vmatpush1.bf16.msra.mxu0 %v1708
  %1755 = vmatprep.subr.bf16.mxu0 %v1718
  %1756 = vmatpush1.bf16.msra.mxu0 %v1717
  %1757 = vmatprep.subr.bf16.mxu0 0
  %1758 = vmatpush1.bf16.msra.mxu0 0
  %1759 = vmatprep.subr.bf16.mxu0 0
  %1760 = vmatpush1.bf16.msra.mxu0 0
  %1761 = vmatprep.subr.bf16.mxu0 0
  %1762 = vmatpush1.bf16.msra.mxu0 0
  %1763 = vmatprep.subr.bf16.mxu0 0
  %1764 = vmatpush1.bf16.msra.mxu0 0
  %1765 = vmatprep.subr.bf16.mxu0 0
  %1766 = vmatpush1.bf16.msra.mxu0 0
  %1767 = vmatprep.subr.bf16.mxu0 0
  %1768 = vmatpush1.bf16.msra.mxu0 0
  %1769 = vmatprep.subr.bf16.mxu0 0
  %1770 = vmatpush1.bf16.msra.mxu0 0
  %1771 = vmatprep.subr.bf16.mxu0 0
  %1772 = vmatpush1.bf16.msra.mxu0 0
  %1773 = vmatprep.subr.bf16.mxu0 0
  %1774 = vmatpush1.bf16.msra.mxu0 0
  %1775 = vmatprep.subr.bf16.mxu0 0
  %1776 = vmatpush1.bf16.msra.mxu0 0
  %1777 = vmatprep.subr.bf16.mxu0 0
  %1778 = vmatpush1.bf16.msra.mxu0 0
  %1779 = vmatprep.subr.bf16.mxu0 0
  %1780 = vmatpush1.bf16.msra.mxu0 0
  %1781 = vmatprep.subr.bf16.mxu0 0
  %1782 = vmatpush1.bf16.msra.mxu0 0
  %1783 = vmatprep.subr.bf16.mxu0 0
  %1784 = vmatpush1.bf16.msra.mxu0 0
  %1785 = vmatprep.mubr.bf16.mxu0 0
  %1786 = vmatmul.mubr.bf16.gmra.mrb[0].mxu0 %v1745
  %v1787 = vpop.f32.mrb[0].mxu0
  %v1788 = vadd.f32 0.0, %v1787
  %v1789 = vpop.f32.mrb[0].mxu0
  %v1790 = vadd.f32 0.0, %v1789
  %v1791 = vpop.f32.mrb[0].mxu0
  %v1792 = vadd.f32 0.0, %v1791
  %v1793 = vpop.f32.mrb[0].mxu0
  %v1794 = vadd.f32 0.0, %v1793
  %1795 = vmatprep.mubr.bf16.mxu0 0
  %1796 = vmatmul.mubr.bf16.gmra.mrb[0].mxu0 %v1748
  %v1797 = vpop.f32.mrb[0].mxu0
  %v1798 = vadd.f32 0.0, %v1797
  %v1799 = vpop.f32.mrb[0].mxu0
  %v1800 = vadd.f32 0.0, %v1799
  %v1801 = vpop.f32.mrb[0].mxu0
  %v1802 = vadd.f32 0.0, %v1801
  %v1803 = vpop.f32.mrb[0].mxu0
  %v1804 = vadd.f32 0.0, %v1803
  %1805 = vmatprep.mubr.bf16.mxu0 0
  %1806 = vmatmul.mubr.bf16.gmra.mrb[0].mxu0 %v1751
  %v1807 = vpop.f32.mrb[0].mxu0
  %v1808 = vadd.f32 0.0, %v1807
  %v1809 = vpop.f32.mrb[0].mxu0
  %v1810 = vadd.f32 0.0, %v1809
  %v1811 = vpop.f32.mrb[0].mxu0
  %v1812 = vpop.f32.mrb[0].mxu0
  %1813 = vdwg.mxu0
  %1814 = vmatprep.subr.bf16.mxu0 %v1711
  %1815 = vmatpush1.bf16.msra.mxu0 %v1710
  %1816 = vmatprep.subr.bf16.mxu0 %v1720
  %1817 = vmatpush1.bf16.msra.mxu0 %v1719
  %1818 = vmatprep.subr.bf16.mxu0 0
  %1819 = vmatpush1.bf16.msra.mxu0 0
  %1820 = vmatprep.subr.bf16.mxu0 0
  %1821 = vmatpush1.bf16.msra.mxu0 0
  %1822 = vmatprep.subr.bf16.mxu0 0
  %1823 = vmatpush1.bf16.msra.mxu0 0
  %1824 = vmatprep.subr.bf16.mxu0 0
  %1825 = vmatpush1.bf16.msra.mxu0 0
  %1826 = vmatprep.subr.bf16.mxu0 0
  %1827 = vmatpush1.bf16.msra.mxu0 0
  %1828 = vmatprep.subr.bf16.mxu0 0
  %1829 = vmatpush1.bf16.msra.mxu0 0
  %1830 = vmatprep.subr.bf16.mxu0 0
  %1831 = vmatpush1.bf16.msra.mxu0 0
  %1832 = vmatprep.subr.bf16.mxu0 0
  %1833 = vmatpush1.bf16.msra.mxu0 0
  %1834 = vmatprep.subr.bf16.mxu0 0
  %1835 = vmatpush1.bf16.msra.mxu0 0
  %1836 = vmatprep.subr.bf16.mxu0 0
  %1837 = vmatpush1.bf16.msra.mxu0 0
  %1838 = vmatprep.subr.bf16.mxu0 0
  %1839 = vmatpush1.bf16.msra.mxu0 0
  %1840 = vmatprep.subr.bf16.mxu0 0
  %1841 = vmatpush1.bf16.msra.mxu0 0
  %1842 = vmatprep.subr.bf16.mxu0 0
  %1843 = vmatpush1.bf16.msra.mxu0 0
  %1844 = vmatprep.subr.bf16.mxu0 0
  %1845 = vmatpush1.bf16.msra.mxu0 0
  %1846 = vmatprep.mubr.bf16.mxu0 0
  %1847 = vmatmul.mubr.bf16.gmra.mrb[0].mxu0 %v1745
  %v1848 = vpop.f32.mrb[0].mxu0
  %v1849 = vadd.f32 0.0, %v1848
  %v1850 = vpop.f32.mrb[0].mxu0
  %v1851 = vadd.f32 0.0, %v1850
  %v1852 = vpop.f32.mrb[0].mxu0
  %v1853 = vadd.f32 0.0, %v1852
  %v1854 = vpop.f32.mrb[0].mxu0
  %v1855 = vadd.f32 0.0, %v1854
  %1856 = vmatprep.mubr.bf16.mxu0 0
  %1857 = vmatmul.mubr.bf16.gmra.mrb[0].mxu0 %v1748
  %v1858 = vpop.f32.mrb[0].mxu0
  %v1859 = vadd.f32 0.0, %v1858
  %v1860 = vpop.f32.mrb[0].mxu0
  %v1861 = vadd.f32 0.0, %v1860
  %v1862 = vpop.f32.mrb[0].mxu0
  %v1863 = vadd.f32 0.0, %v1862
  %v1864 = vpop.f32.mrb[0].mxu0
  %v1865 = vadd.f32 0.0, %v1864
  %1866 = vmatprep.mubr.bf16.mxu0 0
  %1867 = vmatmul.mubr.bf16.gmra.mrb[0].mxu0 %v1751
  %v1868 = vpop.f32.mrb[0].mxu0
  %v1869 = vadd.f32 0.0, %v1868
  %v1870 = vpop.f32.mrb[0].mxu0
  %v1871 = vadd.f32 0.0, %v1870
  %v1872 = vpop.f32.mrb[0].mxu0
  %v1873 = vpop.f32.mrb[0].mxu0
  %1874 = vdwg.mxu0
  %1875 = vmatprep.subr.bf16.mxu0 %v1713
  %1876 = vmatpush1.bf16.msra.mxu0 %v1712
  %1877 = vmatprep.subr.bf16.mxu0 %v1722
  %1878 = vmatpush1.bf16.msra.mxu0 %v1721
  %1879 = vmatprep.subr.bf16.mxu0 0
  %1880 = vmatpush1.bf16.msra.mxu0 0
  %1881 = vmatprep.subr.bf16.mxu0 0
  %1882 = vmatpush1.bf16.msra.mxu0 0
  %1883 = vmatprep.subr.bf16.mxu0 0
  %1884 = vmatpush1.bf16.msra.mxu0 0
  %1885 = vmatprep.subr.bf16.mxu0 0
  %1886 = vmatpush1.bf16.msra.mxu0 0
  %1887 = vmatprep.subr.bf16.mxu0 0
  %1888 = vmatpush1.bf16.msra.mxu0 0
  %1889 = vmatprep.subr.bf16.mxu0 0
  %1890 = vmatpush1.bf16.msra.mxu0 0
  %1891 = vmatprep.subr.bf16.mxu0 0
  %1892 = vmatpush1.bf16.msra.mxu0 0
  %1893 = vmatprep.subr.bf16.mxu0 0
  %1894 = vmatpush1.bf16.msra.mxu0 0
  %1895 = vmatprep.subr.bf16.mxu0 0
  %1896 = vmatpush1.bf16.msra.mxu0 0
  %1897 = vmatprep.subr.bf16.mxu0 0
  %1898 = vmatpush1.bf16.msra.mxu0 0
  %1899 = vmatprep.subr.bf16.mxu0 0
  %1900 = vmatpush1.bf16.msra.mxu0 0
  %1901 = vmatprep.subr.bf16.mxu0 0
  %1902 = vmatpush1.bf16.msra.mxu0 0
  %1903 = vmatprep.subr.bf16.mxu0 0
  %1904 = vmatpush1.bf16.msra.mxu0 0
  %1905 = vmatprep.subr.bf16.mxu0 0
  %1906 = vmatpush1.bf16.msra.mxu0 0
  %1907 = vmatprep.mubr.bf16.mxu0 0
  %1908 = vmatmul.mubr.bf16.gmra.mrb[0].mxu0 %v1745
  %v1909 = vpop.f32.mrb[0].mxu0
  %v1910 = vadd.f32 0.0, %v1909
  %v1911 = vpop.f32.mrb[0].mxu0
  %v1912 = vadd.f32 0.0, %v1911
  %v1913 = vpop.f32.mrb[0].mxu0
  %v1914 = vadd.f32 0.0, %v1913
  %v1915 = vpop.f32.mrb[0].mxu0
  %v1916 = vadd.f32 0.0, %v1915
  %1917 = vmatprep.mubr.bf16.mxu0 0
  %1918 = vmatmul.mubr.bf16.gmra.mrb[0].mxu0 %v1748
  %v1919 = vpop.f32.mrb[0].mxu0
  %v1920 = vadd.f32 0.0, %v1919
  %v1921 = vpop.f32.mrb[0].mxu0
  %v1922 = vadd.f32 0.0, %v1921
  %v1923 = vpop.f32.mrb[0].mxu0
  %v1924 = vadd.f32 0.0, %v1923
  %v1925 = vpop.f32.mrb[0].mxu0
  %v1926 = vadd.f32 0.0, %v1925
  %1927 = vmatprep.mubr.bf16.mxu0 0
  %1928 = vmatmul.mubr.bf16.gmra.mrb[0].mxu0 %v1751
  %v1929 = vpop.f32.mrb[0].mxu0
  %v1930 = vadd.f32 0.0, %v1929
  %v1931 = vpop.f32.mrb[0].mxu0
  %v1932 = vadd.f32 0.0, %v1931
  %v1933 = vpop.f32.mrb[0].mxu0
  %v1934 = vpop.f32.mrb[0].mxu0
  %1935 = vdwg.mxu0
  %1936 = vmatprep.subr.bf16.mxu0 %v1715
  %1937 = vmatpush1.bf16.msra.mxu0 %v1714
  %1938 = vmatprep.subr.bf16.mxu0 %v1724
  %1939 = vmatpush1.bf16.msra.mxu0 %v1723
  %1940 = vmatprep.subr.bf16.mxu0 0
  %1941 = vmatpush1.bf16.msra.mxu0 0
  %1942 = vmatprep.subr.bf16.mxu0 0
  %1943 = vmatpush1.bf16.msra.mxu0 0
  %1944 = vmatprep.subr.bf16.mxu0 0
  %1945 = vmatpush1.bf16.msra.mxu0 0
  %1946 = vmatprep.subr.bf16.mxu0 0
  %1947 = vmatpush1.bf16.msra.mxu0 0
  %1948 = vmatprep.subr.bf16.mxu0 0
  %1949 = vmatpush1.bf16.msra.mxu0 0
  %1950 = vmatprep.subr.bf16.mxu0 0
  %1951 = vmatpush1.bf16.msra.mxu0 0
  %1952 = vmatprep.subr.bf16.mxu0 0
  %1953 = vmatpush1.bf16.msra.mxu0 0
  %1954 = vmatprep.subr.bf16.mxu0 0
  %1955 = vmatpush1.bf16.msra.mxu0 0
  %1956 = vmatprep.subr.bf16.mxu0 0
  %1957 = vmatpush1.bf16.msra.mxu0 0
  %1958 = vmatprep.subr.bf16.mxu0 0
  %1959 = vmatpush1.bf16.msra.mxu0 0
  %1960 = vmatprep.subr.bf16.mxu0 0
  %1961 = vmatpush1.bf16.msra.mxu0 0
  %1962 = vmatprep.subr.bf16.mxu0 0
  %1963 = vmatpush1.bf16.msra.mxu0 0
  %1964 = vmatprep.subr.bf16.mxu0 0
  %1965 = vmatpush1.bf16.msra.mxu0 0
  %1966 = vmatprep.subr.bf16.mxu0 0
  %1967 = vmatpush1.bf16.msra.mxu0 0
  %1968 = vmatprep.mubr.bf16.mxu0 0
  %1969 = vmatmul.mubr.bf16.gmra.mrb[0].mxu0 %v1745
  %v1970 = vpop.f32.mrb[0].mxu0
  %v1971 = vadd.f32 0.0, %v1970
  %v1972 = vpop.f32.mrb[0].mxu0
  %v1973 = vadd.f32 0.0, %v1972
  %v1974 = vpop.f32.mrb[0].mxu0
  %v1975 = vadd.f32 0.0, %v1974
  %v1976 = vpop.f32.mrb[0].mxu0
  %v1977 = vadd.f32 0.0, %v1976
  %1978 = vmatprep.mubr.bf16.mxu0 0
  %1979 = vmatmul.mubr.bf16.gmra.mrb[0].mxu0 %v1748
  %v1980 = vpop.f32.mrb[0].mxu0
  %v1981 = vadd.f32 0.0, %v1980
  %v1982 = vpop.f32.mrb[0].mxu0
  %v1983 = vadd.f32 0.0, %v1982
  %v1984 = vpop.f32.mrb[0].mxu0
  %v1985 = vadd.f32 0.0, %v1984
  %v1986 = vpop.f32.mrb[0].mxu0
  %v1987 = vadd.f32 0.0, %v1986
  %1988 = vmatprep.mubr.bf16.mxu0 0
  %1989 = vmatmul.mubr.bf16.gmra.mrb[0].mxu0 %v1751
  %v1990 = vpop.f32.mrb[0].mxu0
  %v1991 = vadd.f32 0.0, %v1990
  %v1992 = vpop.f32.mrb[0].mxu0
  %v1993 = vadd.f32 0.0, %v1992
  %v1994 = vpop.f32.mrb[0].mxu0
  %v1995 = vpop.f32.mrb[0].mxu0
  %1996 = vdwg.mxu0
  %1997 = vmatprep.subr.bf16.mxu0 0
  %1998 = vmatpush1.bf16.msra.mxu0 %v1716
  %1999 = vmatprep.subr.bf16.mxu0 0
  %2000 = vmatpush1.bf16.msra.mxu0 %v1725
  %2001 = vmatprep.subr.bf16.mxu0 0
  %2002 = vmatpush1.bf16.msra.mxu0 0
  %2003 = vmatprep.subr.bf16.mxu0 0
  %2004 = vmatpush1.bf16.msra.mxu0 0
  %2005 = vmatprep.subr.bf16.mxu0 0
  %2006 = vmatpush1.bf16.msra.mxu0 0
  %2007 = vmatprep.subr.bf16.mxu0 0
  %2008 = vmatpush1.bf16.msra.mxu0 0
  %2009 = vmatprep.subr.bf16.mxu0 0
  %2010 = vmatpush1.bf16.msra.mxu0 0
  %2011 = vmatprep.subr.bf16.mxu0 0
  %2012 = vmatpush1.bf16.msra.mxu0 0
  %2013 = vmatprep.subr.bf16.mxu0 0
  %2014 = vmatpush1.bf16.msra.mxu0 0
  %2015 = vmatprep.subr.bf16.mxu0 0
  %2016 = vmatpush1.bf16.msra.mxu0 0
  %2017 = vmatprep.subr.bf16.mxu0 0
  %2018 = vmatpush1.bf16.msra.mxu0 0
  %2019 = vmatprep.subr.bf16.mxu0 0
  %2020 = vmatpush1.bf16.msra.mxu0 0
  %2021 = vmatprep.subr.bf16.mxu0 0
  %2022 = vmatpush1.bf16.msra.mxu0 0
  %2023 = vmatprep.subr.bf16.mxu0 0
  %2024 = vmatpush1.bf16.msra.mxu0 0
  %2025 = vmatprep.subr.bf16.mxu0 0
  %2026 = vmatpush1.bf16.msra.mxu0 0
  %2027 = vmatprep.subr.bf16.mxu0 0
  %2028 = vmatpush1.bf16.msra.mxu0 0
  %2029 = vmatprep.mubr.bf16.mxu0 0
  %2030 = vmatmul.mubr.bf16.gmra.mrb[0].mxu0 %v1745
  %v2031 = vpop.f32.mrb[0].mxu0
  %v2032 = vadd.f32 0.0, %v2031
  %v2033 = vpop.f32.mrb[0].mxu0
  %v2034 = vpop.f32.mrb[0].mxu0
  %v2035 = vadd.f32 0.0, %v2034
  %v2036 = vpop.f32.mrb[0].mxu0
  %2037 = vmatprep.mubr.bf16.mxu0 0
  %2038 = vmatmul.mubr.bf16.gmra.mrb[0].mxu0 %v1748
  %v2039 = vpop.f32.mrb[0].mxu0
  %v2040 = vadd.f32 0.0, %v2039
  %v2041 = vpop.f32.mrb[0].mxu0
  %v2042 = vpop.f32.mrb[0].mxu0
  %v2043 = vadd.f32 0.0, %v2042
  %v2044 = vpop.f32.mrb[0].mxu0
  %2045 = vmatprep.mubr.bf16.mxu0 0
  %2046 = vmatmul.mubr.bf16.gmra.mrb[0].mxu0 %v1751
  %v2047 = vpop.f32.mrb[0].mxu0
  %v2048 = vadd.f32 0.0, %v2047
  %v2049 = vpop.f32.mrb[0].mxu0
  %v2050 = vpop.f32.mrb[0].mxu0
  %v2051 = vpop.f32.mrb[0].mxu0
  %2052 = vdwg.mxu0
  %v2053 = vsel %vm523, %v1788, 0.0
  %v2054 = vsel %vm524, %v1790, 0.0
  %v2055 = vsel %vm525, %v1849, 0.0
  %v2056 = vsel %vm526, %v1851, 0.0
  %v2057 = vsel %vm527, %v1910, 0.0
  %v2058 = vsel %vm528, %v1912, 0.0
  %v2059 = vsel %vm529, %v1971, 0.0
  %v2060 = vsel %vm530, %v1973, 0.0
  %v2061 = vsel %vm531, %v2032, 0.0
  %v2062 = vsel %vm532, %v1792, 0.0
  %v2063 = vsel %vm533, %v1794, 0.0
  %v2064 = vsel %vm534, %v1853, 0.0
  %v2065 = vsel %vm535, %v1855, 0.0
  %v2066 = vsel %vm536, %v1914, 0.0
  %v2067 = vsel %vm537, %v1916, 0.0
  %v2068 = vsel %vm538, %v1975, 0.0
  %v2069 = vsel %vm539, %v1977, 0.0
  %v2070 = vsel %vm540, %v2035, 0.0
  %v2071 = vsel %vm541, %v1798, 0.0
  %v2072 = vsel %vm542, %v1800, 0.0
  %v2073 = vsel %vm543, %v1859, 0.0
  %v2074 = vsel %vm544, %v1861, 0.0
  %v2075 = vsel %vm545, %v1920, 0.0
  %v2076 = vsel %vm546, %v1922, 0.0
  %v2077 = vsel %vm547, %v1981, 0.0
  %v2078 = vsel %vm548, %v1983, 0.0
  %v2079 = vsel %vm549, %v2040, 0.0
  %v2080 = vsel %vm550, %v1802, 0.0
  %v2081 = vsel %vm551, %v1804, 0.0
  %v2082 = vsel %vm552, %v1863, 0.0
  %v2083 = vsel %vm553, %v1865, 0.0
  %v2084 = vsel %vm554, %v1924, 0.0
  %v2085 = vsel %vm555, %v1926, 0.0
  %v2086 = vsel %vm556, %v1985, 0.0
  %v2087 = vsel %vm557, %v1987, 0.0
  %v2088 = vsel %vm558, %v2043, 0.0
  %v2089 = vsel %vm559, %v1808, 0.0
  %v2090 = vsel %vm560, %v1810, 0.0
  %v2091 = vsel %vm561, %v1869, 0.0
  %v2092 = vsel %vm562, %v1871, 0.0
  %v2093 = vsel %vm563, %v1930, 0.0
  %v2094 = vsel %vm564, %v1932, 0.0
  %v2095 = vsel %vm565, %v1991, 0.0
  %v2096 = vsel %vm566, %v1993, 0.0
  %v2097 = vsel %vm567, %v2048, 0.0
  %v2098 = vadd.f32 %v2053, %v2062
  %v2099 = vadd.f32 %v2098, %v2071
  %v2100 = vadd.f32 %v2099, %v2080
  %vm2101 = vcmask 1043456
  %v2102 = vsel %vm2101, %v2089, 0.0
  %v2103 = vadd.f32 %v2100, %v2102
  %v2104 = vrot.slane %v2103, 4
  %v2105 = vadd.f32 %v2103, %v2104
  %v2106 = vrot.slane %v2105, 2
  %v2107 = vadd.f32 %v2105, %v2106
  %v2108 = vrot.slane %v2107, 1
  %v2109 = vadd.f32 %v2107, %v2108
  %v2110 = vadd.f32 %v2054, %v2063
  %v2111 = vadd.f32 %v2110, %v2072
  %v2112 = vadd.f32 %v2111, %v2081
  %v2113 = vsel %vm2101, %v2090, 0.0
  %v2114 = vadd.f32 %v2112, %v2113
  %v2115 = vrot.slane %v2114, 4
  %v2116 = vadd.f32 %v2114, %v2115
  %v2117 = vrot.slane %v2116, 2
  %v2118 = vadd.f32 %v2116, %v2117
  %v2119 = vrot.slane %v2118, 1
  %v2120 = vadd.f32 %v2118, %v2119
  %v2121 = vadd.f32 %v2055, %v2064
  %v2122 = vadd.f32 %v2121, %v2073
  %v2123 = vadd.f32 %v2122, %v2082
  %v2124 = vsel %vm2101, %v2091, 0.0
  %v2125 = vadd.f32 %v2123, %v2124
  %v2126 = vrot.slane %v2125, 4
  %v2127 = vadd.f32 %v2125, %v2126
  %v2128 = vrot.slane %v2127, 2
  %v2129 = vadd.f32 %v2127, %v2128
  %v2130 = vrot.slane %v2129, 1
  %v2131 = vadd.f32 %v2129, %v2130
  %v2132 = vadd.f32 %v2056, %v2065
  %v2133 = vadd.f32 %v2132, %v2074
  %v2134 = vadd.f32 %v2133, %v2083
  %v2135 = vsel %vm2101, %v2092, 0.0
  %v2136 = vadd.f32 %v2134, %v2135
  %v2137 = vrot.slane %v2136, 4
  %v2138 = vadd.f32 %v2136, %v2137
  %v2139 = vrot.slane %v2138, 2
  %v2140 = vadd.f32 %v2138, %v2139
  %v2141 = vrot.slane %v2140, 1
  %v2142 = vadd.f32 %v2140, %v2141
  %v2143 = vadd.f32 %v2057, %v2066
  %v2144 = vadd.f32 %v2143, %v2075
  %v2145 = vadd.f32 %v2144, %v2084
  %v2146 = vsel %vm2101, %v2093, 0.0
  %v2147 = vadd.f32 %v2145, %v2146
  %v2148 = vrot.slane %v2147, 4
  %v2149 = vadd.f32 %v2147, %v2148
  %v2150 = vrot.slane %v2149, 2
  %v2151 = vadd.f32 %v2149, %v2150
  %v2152 = vrot.slane %v2151, 1
  %v2153 = vadd.f32 %v2151, %v2152
  %v2154 = vadd.f32 %v2058, %v2067
  %v2155 = vadd.f32 %v2154, %v2076
  %v2156 = vadd.f32 %v2155, %v2085
  %v2157 = vsel %vm2101, %v2094, 0.0
  %v2158 = vadd.f32 %v2156, %v2157
  %v2159 = vrot.slane %v2158, 4
  %v2160 = vadd.f32 %v2158, %v2159
  %v2161 = vrot.slane %v2160, 2
  %v2162 = vadd.f32 %v2160, %v2161
  %v2163 = vrot.slane %v2162, 1
  %v2164 = vadd.f32 %v2162, %v2163
  %v2165 = vadd.f32 %v2059, %v2068
  %v2166 = vadd.f32 %v2165, %v2077
  %v2167 = vadd.f32 %v2166, %v2086
  %v2168 = vsel %vm2101, %v2095, 0.0
  %v2169 = vadd.f32 %v2167, %v2168
  %v2170 = vrot.slane %v2169, 4
  %v2171 = vadd.f32 %v2169, %v2170
  %v2172 = vrot.slane %v2171, 2
  %v2173 = vadd.f32 %v2171, %v2172
  %v2174 = vrot.slane %v2173, 1
  %v2175 = vadd.f32 %v2173, %v2174
  %v2176 = vadd.f32 %v2060, %v2069
  %v2177 = vadd.f32 %v2176, %v2078
  %v2178 = vadd.f32 %v2177, %v2087
  %v2179 = vsel %vm2101, %v2096, 0.0
  %v2180 = vadd.f32 %v2178, %v2179
  %v2181 = vrot.slane %v2180, 4
  %v2182 = vadd.f32 %v2180, %v2181
  %v2183 = vrot.slane %v2182, 2
  %v2184 = vadd.f32 %v2182, %v2183
  %v2185 = vrot.slane %v2184, 1
  %v2186 = vadd.f32 %v2184, %v2185
  %v2187 = vadd.f32 %v2061, %v2070
  %v2188 = vadd.f32 %v2187, %v2079
  %v2189 = vadd.f32 %v2188, %v2088
  %v2190 = vsel %vm2101, %v2097, 0.0
  %v2191 = vadd.f32 %v2189, %v2190
  %v2192 = vrot.slane %v2191, 4
  %v2193 = vadd.f32 %v2191, %v2192
  %v2194 = vrot.slane %v2193, 2
  %v2195 = vadd.f32 %v2193, %v2194
  %v2196 = vrot.slane %v2195, 1
  %v2197 = vadd.f32 %v2195, %v2196
  %v2198 = vadd.f32 %v2109, %v2120
  %v2199 = vadd.f32 %v2198, %v2131
  %v2200 = vadd.f32 %v2199, %v2142
  %v2201 = vadd.f32 %v2200, %v2153
  %v2202 = vadd.f32 %v2201, %v2164
  %v2203 = vadd.f32 %v2202, %v2175
  %v2204 = vadd.f32 %v2203, %v2186
  %v2205 = vadd.f32 %v2204, %v2197
  %2207 = vrot.lane.b32.xlu0 %v2205, 96
  %v2208 = vpop.permute.xlu0 %2207
  %v2210 = vadd.f32 %v2205, %v2208
  %2211 = vrot.lane.b32.xlu0 %v2205, 64
  %v2212 = vpop.permute.xlu0 %2211
  %v2214 = vadd.f32 %v2210, %v2212
  %2215 = vrot.lane.b32.xlu0 %v2205, 32
  %v2216 = vpop.permute.xlu0 %2215
  %v2218 = vadd.f32 %v2214, %v2216
  %v2219 = vmax.f32 %v387, %v392
  %v2220 = vmax.f32 %v388, %v393
  %v2221 = vmax.f32 %v389, %v394
  %v2222 = vmax.f32 %v390, %v395
  %v2223 = vmax.f32 %v391, %v396
  %v2224 = vmax.f32 %v2219, %v397
  %v2225 = vmax.f32 %v2220, %v398
  %v2226 = vmax.f32 %v2221, %v399
  %v2227 = vmax.f32 %v2222, %v400
  %v2228 = vmax.f32 %v2223, %v401
  %v2229 = vpack.c.bf16 %v2225, %v2224
  %v2230 = vpack.c.bf16 %v2227, %v2226
  %v2231 = vpack.c.bf16 %v2228, %v2228
  %v2233 = vsel %vm602, %v2229, 0
  %v2236 = vsel %vm602, %v2230, 0
  %v2239 = vsel %vm602, %v2231, 0
  %2241 = vmatprep.subr.bf16.mxu0 0
  %2242 = vmatpush1.bf16.msra.mxu0 %v598
  %2243 = vmatprep.subr.bf16.mxu0 0
  %2244 = vmatpush1.bf16.msra.mxu0 %v599
  %2245 = vmatprep.subr.bf16.mxu0 0
  %2246 = vmatpush1.bf16.msra.mxu0 0
  %2247 = vmatprep.subr.bf16.mxu0 0
  %2248 = vmatpush1.bf16.msra.mxu0 0
  %2249 = vmatprep.subr.bf16.mxu0 0
  %2250 = vmatpush1.bf16.msra.mxu0 0
  %2251 = vmatprep.subr.bf16.mxu0 0
  %2252 = vmatpush1.bf16.msra.mxu0 0
  %2253 = vmatprep.subr.bf16.mxu0 0
  %2254 = vmatpush1.bf16.msra.mxu0 0
  %2255 = vmatprep.subr.bf16.mxu0 0
  %2256 = vmatpush1.bf16.msra.mxu0 0
  %2257 = vmatprep.subr.bf16.mxu0 0
  %2258 = vmatpush1.bf16.msra.mxu0 0
  %2259 = vmatprep.subr.bf16.mxu0 0
  %2260 = vmatpush1.bf16.msra.mxu0 0
  %2261 = vmatprep.subr.bf16.mxu0 0
  %2262 = vmatpush1.bf16.msra.mxu0 0
  %2263 = vmatprep.subr.bf16.mxu0 0
  %2264 = vmatpush1.bf16.msra.mxu0 0
  %2265 = vmatprep.subr.bf16.mxu0 0
  %2266 = vmatpush1.bf16.msra.mxu0 0
  %2267 = vmatprep.subr.bf16.mxu0 0
  %2268 = vmatpush1.bf16.msra.mxu0 0
  %2269 = vmatprep.subr.bf16.mxu0 0
  %2270 = vmatpush1.bf16.msra.mxu0 0
  %2271 = vmatprep.subr.bf16.mxu0 0
  %2272 = vmatpush1.bf16.msra.mxu0 0
  %2273 = vmatprep.mubr.bf16.mxu0 0
  %2274 = vmatmul.mubr.bf16.gmra.mrb[0].mxu0 %v2233
  %v2275 = vpop.f32.mrb[0].mxu0
  %v2276 = vadd.f32 %v585, %v2275
  %v2277 = vpop.f32.mrb[0].mxu0
  %v2278 = vpop.f32.mrb[0].mxu0
  %v2279 = vadd.f32 %v586, %v2278
  %v2280 = vpop.f32.mrb[0].mxu0
  %2281 = vmatprep.mubr.bf16.mxu0 0
  %2282 = vmatmul.mubr.bf16.gmra.mrb[0].mxu0 %v2236
  %v2283 = vpop.f32.mrb[0].mxu0
  %v2284 = vadd.f32 %v587, %v2283
  %v2285 = vpop.f32.mrb[0].mxu0
  %v2286 = vpop.f32.mrb[0].mxu0
  %v2287 = vadd.f32 %v588, %v2286
  %v2288 = vpop.f32.mrb[0].mxu0
  %2289 = vmatprep.mubr.bf16.mxu0 0
  %2290 = vmatmul.mubr.bf16.gmra.mrb[0].mxu0 %v2239
  %v2291 = vpop.f32.mrb[0].mxu0
  %v2292 = vadd.f32 %v589, %v2291
  %v2293 = vpop.f32.mrb[0].mxu0
  %v2294 = vpop.f32.mrb[0].mxu0
  %v2295 = vpop.f32.mrb[0].mxu0
  %2296 = vdwg.mxu0
  %v2297 = vpack.c.bf16 %v2279, %v2276
  %v2298 = vpack.c.bf16 %v2287, %v2284
  %v2299 = vpack.c.bf16 %v2292, %v2292
  %2303 = vrot.lane.b32.xlu0 %v2297, 96
  %v2304 = vpop.permute.xlu0 %2303
  %2305 = vrot.lane.b32.xlu0 %v2298, 96
  %v2306 = vpop.permute.xlu0 %2305
  %2307 = vrot.lane.b32.xlu0 %v2299, 96
  %v2308 = vpop.permute.xlu0 %2307
  %v2310 = vsel %vm680, %v2297, 0
  %v2313 = vsel %vm680, %v2298, 0
  %v2316 = vsel %vm680, %v2299, 0
  %v2319 = vsel %vm680, %v2304, 0
  %v2322 = vsel %vm680, %v2306, 0
  %v2325 = vsel %vm680, %v2308, 0
  %2327 = vmatprep.subr.bf16.mxu0 0
  %2328 = vmatpush1.bf16.xpose.msra.mxu0 %v2319
  %2329 = vmatprep.subr.bf16.mxu0 0
  %2330 = vmatpush1.bf16.xpose.msra.mxu0 %v2322
  %2331 = vmatprep.subr.bf16.mxu0 0
  %2332 = vmatpush1.bf16.xpose.msra.mxu0 %v2325
  %2333 = vmatprep.subr.bf16.mxu0 0
  %2334 = vmatpush1.bf16.xpose.msra.mxu0 0
  %2335 = vmatprep.subr.bf16.mxu0 0
  %2336 = vmatpush1.bf16.xpose.msra.mxu0 0
  %2337 = vmatprep.subr.bf16.mxu0 0
  %2338 = vmatpush1.bf16.xpose.msra.mxu0 0
  %2339 = vmatprep.subr.bf16.mxu0 0
  %2340 = vmatpush1.bf16.xpose.msra.mxu0 0
  %2341 = vmatprep.subr.bf16.mxu0 0
  %2342 = vmatpush1.bf16.xpose.msra.mxu0 0
  %2343 = vmatprep.subr.bf16.mxu0 0
  %2344 = vmatpush1.bf16.xpose.msra.mxu0 0
  %2345 = vmatprep.subr.bf16.mxu0 0
  %2346 = vmatpush1.bf16.xpose.msra.mxu0 0
  %2347 = vmatprep.subr.bf16.mxu0 0
  %2348 = vmatpush1.bf16.xpose.msra.mxu0 0
  %2349 = vmatprep.subr.bf16.mxu0 0
  %2350 = vmatpush1.bf16.xpose.msra.mxu0 0
  %2351 = vmatprep.subr.bf16.mxu0 0
  %2352 = vmatpush1.bf16.xpose.msra.mxu0 0
  %2353 = vmatprep.subr.bf16.mxu0 0
  %2354 = vmatpush1.bf16.xpose.msra.mxu0 0
  %2355 = vmatprep.subr.bf16.mxu0 0
  %2356 = vmatpush1.bf16.xpose.msra.mxu0 0
  %2357 = vmatprep.subr.bf16.mxu0 0
  %2358 = vmatpush1.bf16.xpose.msra.mxu0 0
  %2359 = vmatprep.mubr.bf16.mxu0 0
  %2360 = vmatmul.mubr.bf16.gmra.mrb[0].mxu0 %v2310
  %v2361 = vpop.f32.mrb[0].mxu0
  %v2362 = vadd.f32 0.0, %v2361
  %v2363 = vpop.f32.mrb[0].mxu0
  %v2364 = vpop.f32.mrb[0].mxu0
  %v2365 = vadd.f32 0.0, %v2364
  %v2366 = vpop.f32.mrb[0].mxu0
  %2367 = vmatprep.mubr.bf16.mxu0 0
  %2368 = vmatmul.mubr.bf16.gmra.mrb[0].mxu0 %v2313
  %v2369 = vpop.f32.mrb[0].mxu0
  %v2370 = vadd.f32 0.0, %v2369
  %v2371 = vpop.f32.mrb[0].mxu0
  %v2372 = vpop.f32.mrb[0].mxu0
  %v2373 = vadd.f32 0.0, %v2372
  %v2374 = vpop.f32.mrb[0].mxu0
  %2375 = vmatprep.mubr.bf16.mxu0 0
  %2376 = vmatmul.mubr.bf16.gmra.mrb[0].mxu0 %v2316
  %v2377 = vpop.f32.mrb[0].mxu0
  %v2378 = vadd.f32 0.0, %v2377
  %v2379 = vpop.f32.mrb[0].mxu0
  %v2380 = vpop.f32.mrb[0].mxu0
  %v2381 = vpop.f32.mrb[0].mxu0
  %2382 = vdwg.mxu0
  %v2383 = vsel %vm755, %v2362, -inf
  %2384 = vmax.xlane.f32.xlu0 %v2383
  %v2385 = vpop.xlane.xlu0 %2384
  %v2386 = vsel %vm755, %v2365, -inf
  %2387 = vmax.xlane.f32.xlu0 %v2386
  %v2388 = vpop.xlane.xlu0 %2387
  %v2389 = vsel %vm755, %v2370, -inf
  %2390 = vmax.xlane.f32.xlu0 %v2389
  %v2391 = vpop.xlane.xlu0 %2390
  %v2392 = vsel %vm755, %v2373, -inf
  %2393 = vmax.xlane.f32.xlu0 %v2392
  %v2394 = vpop.xlane.xlu0 %2393
  %v2395 = vsel %vm768, %v2378, -inf
  %2396 = vmax.xlane.f32.xlu0 %v2395
  %v2397 = vpop.xlane.xlu0 %2396
  %v2398 = vsub.f32 %v2362, %v2385
  %v2399 = vsub.f32 %v2365, %v2388
  %v2400 = vsub.f32 %v2370, %v2391
  %v2401 = vsub.f32 %v2373, %v2394
  %v2402 = vsub.f32 %v2378, %v2397
  %v2403 = vmul.f32 %v2398, 1.442695
  %v2404 = vpow.pop %v2403
  %v2405 = vmul.f32 %v2399, 1.442695
  %v2406 = vpow.pop %v2405
  %v2407 = vmul.f32 %v2400, 1.442695
  %v2408 = vpow.pop %v2407
  %v2409 = vmul.f32 %v2401, 1.442695
  %v2410 = vpow.pop %v2409
  %v2411 = vmul.f32 %v2402, 1.442695
  %v2412 = vpow.pop %v2411
  %v2413 = vsel %vm755, %v2404, 0.0
  %2414 = vadd.xlane.f32.xlu0 %v2413
  %v2415 = vpop.xlane.xlu0 %2414
  %v2416 = vsel %vm755, %v2406, 0.0
  %2417 = vadd.xlane.f32.xlu0 %v2416
  %v2418 = vpop.xlane.xlu0 %2417
  %v2419 = vsel %vm755, %v2408, 0.0
  %2420 = vadd.xlane.f32.xlu0 %v2419
  %v2421 = vpop.xlane.xlu0 %2420
  %v2422 = vsel %vm755, %v2410, 0.0
  %2423 = vadd.xlane.f32.xlu0 %v2422
  %v2424 = vpop.xlane.xlu0 %2423
  %v2425 = vsel %vm768, %v2412, 0.0
  %2426 = vadd.xlane.f32.xlu0 %v2425
  %v2427 = vpop.xlane.xlu0 %2426
  %v2428 = vrcp.pop %v2415
  %v2429 = vrcp.pop %v2418
  %v2430 = vrcp.pop %v2421
  %v2431 = vrcp.pop %v2424
  %v2432 = vrcp.pop %v2427
  %v2433 = vmul.f32 %v2404, %v2428
  %v2434 = vmul.f32 %v2406, %v2429
  %v2435 = vmul.f32 %v2408, %v2430
  %v2436 = vmul.f32 %v2410, %v2431
  %v2437 = vmul.f32 %v2412, %v2432
  %v2438 = vpack.c.bf16 %v2434, %v2433
  %v2439 = vpack.c.bf16 %v2436, %v2435
  %v2440 = vpack.c.bf16 %v2437, %v2437
  %2441 = vrot.lane.b32.xlu0 %v2297, 64
  %v2442 = vpop.permute.xlu0 %2441
  %2443 = vrot.lane.b32.xlu0 %v2298, 64
  %v2444 = vpop.permute.xlu0 %2443
  %2445 = vrot.lane.b32.xlu0 %v2299, 64
  %v2446 = vpop.permute.xlu0 %2445
  %v2450 = vsel %vm755, %v2438, 0
  %v2453 = vsel %vm755, %v2439, 0
  %v2456 = vsel %vm755, %v2440, 0
  %v2459 = vsel %vm832, %v2446, 0
  %2461 = vmatprep.subr.bf16.mxu0 0
  %2462 = vmatpush1.bf16.msra.mxu0 %v2442
  %2463 = vmatprep.subr.bf16.mxu0 0
  %2464 = vmatpush1.bf16.msra.mxu0 %v2444
  %2465 = vmatprep.subr.bf16.mxu0 0
  %2466 = vmatpush1.bf16.msra.mxu0 %v2459
  %2467 = vmatprep.subr.bf16.mxu0 0
  %2468 = vmatpush1.bf16.msra.mxu0 0
  %2469 = vmatprep.subr.bf16.mxu0 0
  %2470 = vmatpush1.bf16.msra.mxu0 0
  %2471 = vmatprep.subr.bf16.mxu0 0
  %2472 = vmatpush1.bf16.msra.mxu0 0
  %2473 = vmatprep.subr.bf16.mxu0 0
  %2474 = vmatpush1.bf16.msra.mxu0 0
  %2475 = vmatprep.subr.bf16.mxu0 0
  %2476 = vmatpush1.bf16.msra.mxu0 0
  %2477 = vmatprep.subr.bf16.mxu0 0
  %2478 = vmatpush1.bf16.msra.mxu0 0
  %2479 = vmatprep.subr.bf16.mxu0 0
  %2480 = vmatpush1.bf16.msra.mxu0 0
  %2481 = vmatprep.subr.bf16.mxu0 0
  %2482 = vmatpush1.bf16.msra.mxu0 0
  %2483 = vmatprep.subr.bf16.mxu0 0
  %2484 = vmatpush1.bf16.msra.mxu0 0
  %2485 = vmatprep.subr.bf16.mxu0 0
  %2486 = vmatpush1.bf16.msra.mxu0 0
  %2487 = vmatprep.subr.bf16.mxu0 0
  %2488 = vmatpush1.bf16.msra.mxu0 0
  %2489 = vmatprep.subr.bf16.mxu0 0
  %2490 = vmatpush1.bf16.msra.mxu0 0
  %2491 = vmatprep.subr.bf16.mxu0 0
  %2492 = vmatpush1.bf16.msra.mxu0 0
  %2493 = vmatprep.mubr.bf16.mxu0 0
  %2494 = vmatmul.mubr.bf16.gmra.mrb[0].mxu0 %v2450
  %v2495 = vpop.f32.mrb[0].mxu0
  %v2496 = vadd.f32 0.0, %v2495
  %v2497 = vpop.f32.mrb[0].mxu0
  %v2498 = vpop.f32.mrb[0].mxu0
  %v2499 = vadd.f32 0.0, %v2498
  %v2500 = vpop.f32.mrb[0].mxu0
  %2501 = vmatprep.mubr.bf16.mxu0 0
  %2502 = vmatmul.mubr.bf16.gmra.mrb[0].mxu0 %v2453
  %v2503 = vpop.f32.mrb[0].mxu0
  %v2504 = vadd.f32 0.0, %v2503
  %v2505 = vpop.f32.mrb[0].mxu0
  %v2506 = vpop.f32.mrb[0].mxu0
  %v2507 = vadd.f32 0.0, %v2506
  %v2508 = vpop.f32.mrb[0].mxu0
  %2509 = vmatprep.mubr.bf16.mxu0 0
  %2510 = vmatmul.mubr.bf16.gmra.mrb[0].mxu0 %v2456
  %v2511 = vpop.f32.mrb[0].mxu0
  %v2512 = vadd.f32 0.0, %v2511
  %v2513 = vpop.f32.mrb[0].mxu0
  %v2514 = vpop.f32.mrb[0].mxu0
  %v2515 = vpop.f32.mrb[0].mxu0
  %2516 = vdwg.mxu0
  %2517 = vrot.lane.b32.xlu0 %v2297, 120
  %v2518 = vpop.permute.xlu0 %2517
  %2519 = vrot.lane.b32.xlu0 %v2298, 120
  %v2520 = vpop.permute.xlu0 %2519
  %2521 = vrot.lane.b32.xlu0 %v2299, 120
  %v2522 = vpop.permute.xlu0 %2521
  %2523 = vrot.lane.b32.xlu0 %v2297, 88
  %v2524 = vpop.permute.xlu0 %2523
  %2525 = vrot.lane.b32.xlu0 %v2298, 88
  %v2526 = vpop.permute.xlu0 %2525
  %2527 = vrot.lane.b32.xlu0 %v2299, 88
  %v2528 = vpop.permute.xlu0 %2527
  %v2530 = vsel %vm680, %v2518, 0
  %v2533 = vsel %vm680, %v2520, 0
  %v2536 = vsel %vm680, %v2522, 0
  %v2539 = vsel %vm680, %v2524, 0
  %v2542 = vsel %vm680, %v2526, 0
  %v2545 = vsel %vm680, %v2528, 0
  %2547 = vmatprep.subr.bf16.mxu0 0
  %2548 = vmatpush1.bf16.xpose.msra.mxu0 %v2539
  %2549 = vmatprep.subr.bf16.mxu0 0
  %2550 = vmatpush1.bf16.xpose.msra.mxu0 %v2542
  %2551 = vmatprep.subr.bf16.mxu0 0
  %2552 = vmatpush1.bf16.xpose.msra.mxu0 %v2545
  %2553 = vmatprep.subr.bf16.mxu0 0
  %2554 = vmatpush1.bf16.xpose.msra.mxu0 0
  %2555 = vmatprep.subr.bf16.mxu0 0
  %2556 = vmatpush1.bf16.xpose.msra.mxu0 0
  %2557 = vmatprep.subr.bf16.mxu0 0
  %2558 = vmatpush1.bf16.xpose.msra.mxu0 0
  %2559 = vmatprep.subr.bf16.mxu0 0
  %2560 = vmatpush1.bf16.xpose.msra.mxu0 0
  %2561 = vmatprep.subr.bf16.mxu0 0
  %2562 = vmatpush1.bf16.xpose.msra.mxu0 0
  %2563 = vmatprep.subr.bf16.mxu0 0
  %2564 = vmatpush1.bf16.xpose.msra.mxu0 0
  %2565 = vmatprep.subr.bf16.mxu0 0
  %2566 = vmatpush1.bf16.xpose.msra.mxu0 0
  %2567 = vmatprep.subr.bf16.mxu0 0
  %2568 = vmatpush1.bf16.xpose.msra.mxu0 0
  %2569 = vmatprep.subr.bf16.mxu0 0
  %2570 = vmatpush1.bf16.xpose.msra.mxu0 0
  %2571 = vmatprep.subr.bf16.mxu0 0
  %2572 = vmatpush1.bf16.xpose.msra.mxu0 0
  %2573 = vmatprep.subr.bf16.mxu0 0
  %2574 = vmatpush1.bf16.xpose.msra.mxu0 0
  %2575 = vmatprep.subr.bf16.mxu0 0
  %2576 = vmatpush1.bf16.xpose.msra.mxu0 0
  %2577 = vmatprep.subr.bf16.mxu0 0
  %2578 = vmatpush1.bf16.xpose.msra.mxu0 0
  %2579 = vmatprep.mubr.bf16.mxu0 0
  %2580 = vmatmul.mubr.bf16.gmra.mrb[0].mxu0 %v2530
  %v2581 = vpop.f32.mrb[0].mxu0
  %v2582 = vadd.f32 0.0, %v2581
  %v2583 = vpop.f32.mrb[0].mxu0
  %v2584 = vpop.f32.mrb[0].mxu0
  %v2585 = vadd.f32 0.0, %v2584
  %v2586 = vpop.f32.mrb[0].mxu0
  %2587 = vmatprep.mubr.bf16.mxu0 0
  %2588 = vmatmul.mubr.bf16.gmra.mrb[0].mxu0 %v2533
  %v2589 = vpop.f32.mrb[0].mxu0
  %v2590 = vadd.f32 0.0, %v2589
  %v2591 = vpop.f32.mrb[0].mxu0
  %v2592 = vpop.f32.mrb[0].mxu0
  %v2593 = vadd.f32 0.0, %v2592
  %v2594 = vpop.f32.mrb[0].mxu0
  %2595 = vmatprep.mubr.bf16.mxu0 0
  %2596 = vmatmul.mubr.bf16.gmra.mrb[0].mxu0 %v2536
  %v2597 = vpop.f32.mrb[0].mxu0
  %v2598 = vadd.f32 0.0, %v2597
  %v2599 = vpop.f32.mrb[0].mxu0
  %v2600 = vpop.f32.mrb[0].mxu0
  %v2601 = vpop.f32.mrb[0].mxu0
  %2602 = vdwg.mxu0
  %v2603 = vsel %vm755, %v2582, -inf
  %2604 = vmax.xlane.f32.xlu0 %v2603
  %v2605 = vpop.xlane.xlu0 %2604
  %v2606 = vsel %vm755, %v2585, -inf
  %2607 = vmax.xlane.f32.xlu0 %v2606
  %v2608 = vpop.xlane.xlu0 %2607
  %v2609 = vsel %vm755, %v2590, -inf
  %2610 = vmax.xlane.f32.xlu0 %v2609
  %v2611 = vpop.xlane.xlu0 %2610
  %v2612 = vsel %vm755, %v2593, -inf
  %2613 = vmax.xlane.f32.xlu0 %v2612
  %v2614 = vpop.xlane.xlu0 %2613
  %v2615 = vsel %vm768, %v2598, -inf
  %2616 = vmax.xlane.f32.xlu0 %v2615
  %v2617 = vpop.xlane.xlu0 %2616
  %v2618 = vsub.f32 %v2582, %v2605
  %v2619 = vsub.f32 %v2585, %v2608
  %v2620 = vsub.f32 %v2590, %v2611
  %v2621 = vsub.f32 %v2593, %v2614
  %v2622 = vsub.f32 %v2598, %v2617
  %v2623 = vmul.f32 %v2618, 1.442695
  %v2624 = vpow.pop %v2623
  %v2625 = vmul.f32 %v2619, 1.442695
  %v2626 = vpow.pop %v2625
  %v2627 = vmul.f32 %v2620, 1.442695
  %v2628 = vpow.pop %v2627
  %v2629 = vmul.f32 %v2621, 1.442695
  %v2630 = vpow.pop %v2629
  %v2631 = vmul.f32 %v2622, 1.442695
  %v2632 = vpow.pop %v2631
  %v2633 = vsel %vm755, %v2624, 0.0
  %2634 = vadd.xlane.f32.xlu0 %v2633
  %v2635 = vpop.xlane.xlu0 %2634
  %v2636 = vsel %vm755, %v2626, 0.0
  %2637 = vadd.xlane.f32.xlu0 %v2636
  %v2638 = vpop.xlane.xlu0 %2637
  %v2639 = vsel %vm755, %v2628, 0.0
  %2640 = vadd.xlane.f32.xlu0 %v2639
  %v2641 = vpop.xlane.xlu0 %2640
  %v2642 = vsel %vm755, %v2630, 0.0
  %2643 = vadd.xlane.f32.xlu0 %v2642
  %v2644 = vpop.xlane.xlu0 %2643
  %v2645 = vsel %vm768, %v2632, 0.0
  %2646 = vadd.xlane.f32.xlu0 %v2645
  %v2647 = vpop.xlane.xlu0 %2646
  %v2648 = vrcp.pop %v2635
  %v2649 = vrcp.pop %v2638
  %v2650 = vrcp.pop %v2641
  %v2651 = vrcp.pop %v2644
  %v2652 = vrcp.pop %v2647
  %v2653 = vmul.f32 %v2624, %v2648
  %v2654 = vmul.f32 %v2626, %v2649
  %v2655 = vmul.f32 %v2628, %v2650
  %v2656 = vmul.f32 %v2630, %v2651
  %v2657 = vmul.f32 %v2632, %v2652
  %v2658 = vpack.c.bf16 %v2654, %v2653
  %v2659 = vpack.c.bf16 %v2656, %v2655
  %v2660 = vpack.c.bf16 %v2657, %v2657
  %2661 = vrot.lane.b32.xlu0 %v2297, 56
  %v2662 = vpop.permute.xlu0 %2661
  %2663 = vrot.lane.b32.xlu0 %v2298, 56
  %v2664 = vpop.permute.xlu0 %2663
  %2665 = vrot.lane.b32.xlu0 %v2299, 56
  %v2666 = vpop.permute.xlu0 %2665
  %v2670 = vsel %vm755, %v2658, 0
  %v2673 = vsel %vm755, %v2659, 0
  %v2676 = vsel %vm755, %v2660, 0
  %v2679 = vsel %vm832, %v2666, 0
  %2681 = vmatprep.subr.bf16.mxu0 0
  %2682 = vmatpush1.bf16.msra.mxu0 %v2662
  %2683 = vmatprep.subr.bf16.mxu0 0
  %2684 = vmatpush1.bf16.msra.mxu0 %v2664
  %2685 = vmatprep.subr.bf16.mxu0 0
  %2686 = vmatpush1.bf16.msra.mxu0 %v2679
  %2687 = vmatprep.subr.bf16.mxu0 0
  %2688 = vmatpush1.bf16.msra.mxu0 0
  %2689 = vmatprep.subr.bf16.mxu0 0
  %2690 = vmatpush1.bf16.msra.mxu0 0
  %2691 = vmatprep.subr.bf16.mxu0 0
  %2692 = vmatpush1.bf16.msra.mxu0 0
  %2693 = vmatprep.subr.bf16.mxu0 0
  %2694 = vmatpush1.bf16.msra.mxu0 0
  %2695 = vmatprep.subr.bf16.mxu0 0
  %2696 = vmatpush1.bf16.msra.mxu0 0
  %2697 = vmatprep.subr.bf16.mxu0 0
  %2698 = vmatpush1.bf16.msra.mxu0 0
  %2699 = vmatprep.subr.bf16.mxu0 0
  %2700 = vmatpush1.bf16.msra.mxu0 0
  %2701 = vmatprep.subr.bf16.mxu0 0
  %2702 = vmatpush1.bf16.msra.mxu0 0
  %2703 = vmatprep.subr.bf16.mxu0 0
  %2704 = vmatpush1.bf16.msra.mxu0 0
  %2705 = vmatprep.subr.bf16.mxu0 0
  %2706 = vmatpush1.bf16.msra.mxu0 0
  %2707 = vmatprep.subr.bf16.mxu0 0
  %2708 = vmatpush1.bf16.msra.mxu0 0
  %2709 = vmatprep.subr.bf16.mxu0 0
  %2710 = vmatpush1.bf16.msra.mxu0 0
  %2711 = vmatprep.subr.bf16.mxu0 0
  %2712 = vmatpush1.bf16.msra.mxu0 0
  %2713 = vmatprep.mubr.bf16.mxu0 0
  %2714 = vmatmul.mubr.bf16.gmra.mrb[0].mxu0 %v2670
  %v2715 = vpop.f32.mrb[0].mxu0
  %v2716 = vadd.f32 0.0, %v2715
  %v2717 = vpop.f32.mrb[0].mxu0
  %v2718 = vpop.f32.mrb[0].mxu0
  %v2719 = vadd.f32 0.0, %v2718
  %v2720 = vpop.f32.mrb[0].mxu0
  %2721 = vmatprep.mubr.bf16.mxu0 0
  %2722 = vmatmul.mubr.bf16.gmra.mrb[0].mxu0 %v2673
  %v2723 = vpop.f32.mrb[0].mxu0
  %v2724 = vadd.f32 0.0, %v2723
  %v2725 = vpop.f32.mrb[0].mxu0
  %v2726 = vpop.f32.mrb[0].mxu0
  %v2727 = vadd.f32 0.0, %v2726
  %v2728 = vpop.f32.mrb[0].mxu0
  %2729 = vmatprep.mubr.bf16.mxu0 0
  %2730 = vmatmul.mubr.bf16.gmra.mrb[0].mxu0 %v2676
  %v2731 = vpop.f32.mrb[0].mxu0
  %v2732 = vadd.f32 0.0, %v2731
  %v2733 = vpop.f32.mrb[0].mxu0
  %v2734 = vpop.f32.mrb[0].mxu0
  %v2735 = vpop.f32.mrb[0].mxu0
  %2736 = vdwg.mxu0
  %2737 = vrot.lane.b32.xlu0 %v2297, 112
  %v2738 = vpop.permute.xlu0 %2737
  %2739 = vrot.lane.b32.xlu0 %v2298, 112
  %v2740 = vpop.permute.xlu0 %2739
  %2741 = vrot.lane.b32.xlu0 %v2299, 112
  %v2742 = vpop.permute.xlu0 %2741
  %2743 = vrot.lane.b32.xlu0 %v2297, 80
  %v2744 = vpop.permute.xlu0 %2743
  %2745 = vrot.lane.b32.xlu0 %v2298, 80
  %v2746 = vpop.permute.xlu0 %2745
  %2747 = vrot.lane.b32.xlu0 %v2299, 80
  %v2748 = vpop.permute.xlu0 %2747
  %v2750 = vsel %vm680, %v2738, 0
  %v2753 = vsel %vm680, %v2740, 0
  %v2756 = vsel %vm680, %v2742, 0
  %v2759 = vsel %vm680, %v2744, 0
  %v2762 = vsel %vm680, %v2746, 0
  %v2765 = vsel %vm680, %v2748, 0
  %2767 = vmatprep.subr.bf16.mxu0 0
  %2768 = vmatpush1.bf16.xpose.msra.mxu0 %v2759
  %2769 = vmatprep.subr.bf16.mxu0 0
  %2770 = vmatpush1.bf16.xpose.msra.mxu0 %v2762
  %2771 = vmatprep.subr.bf16.mxu0 0
  %2772 = vmatpush1.bf16.xpose.msra.mxu0 %v2765
  %2773 = vmatprep.subr.bf16.mxu0 0
  %2774 = vmatpush1.bf16.xpose.msra.mxu0 0
  %2775 = vmatprep.subr.bf16.mxu0 0
  %2776 = vmatpush1.bf16.xpose.msra.mxu0 0
  %2777 = vmatprep.subr.bf16.mxu0 0
  %2778 = vmatpush1.bf16.xpose.msra.mxu0 0
  %2779 = vmatprep.subr.bf16.mxu0 0
  %2780 = vmatpush1.bf16.xpose.msra.mxu0 0
  %2781 = vmatprep.subr.bf16.mxu0 0
  %2782 = vmatpush1.bf16.xpose.msra.mxu0 0
  %2783 = vmatprep.subr.bf16.mxu0 0
  %2784 = vmatpush1.bf16.xpose.msra.mxu0 0
  %2785 = vmatprep.subr.bf16.mxu0 0
  %2786 = vmatpush1.bf16.xpose.msra.mxu0 0
  %2787 = vmatprep.subr.bf16.mxu0 0
  %2788 = vmatpush1.bf16.xpose.msra.mxu0 0
  %2789 = vmatprep.subr.bf16.mxu0 0
  %2790 = vmatpush1.bf16.xpose.msra.mxu0 0
  %2791 = vmatprep.subr.bf16.mxu0 0
  %2792 = vmatpush1.bf16.xpose.msra.mxu0 0
  %2793 = vmatprep.subr.bf16.mxu0 0
  %2794 = vmatpush1.bf16.xpose.msra.mxu0 0
  %2795 = vmatprep.subr.bf16.mxu0 0
  %2796 = vmatpush1.bf16.xpose.msra.mxu0 0
  %2797 = vmatprep.subr.bf16.mxu0 0
  %2798 = vmatpush1.bf16.xpose.msra.mxu0 0
  %2799 = vmatprep.mubr.bf16.mxu0 0
  %2800 = vmatmul.mubr.bf16.gmra.mrb[0].mxu0 %v2750
  %v2801 = vpop.f32.mrb[0].mxu0
  %v2802 = vadd.f32 0.0, %v2801
  %v2803 = vpop.f32.mrb[0].mxu0
  %v2804 = vpop.f32.mrb[0].mxu0
  %v2805 = vadd.f32 0.0, %v2804
  %v2806 = vpop.f32.mrb[0].mxu0
  %2807 = vmatprep.mubr.bf16.mxu0 0
  %2808 = vmatmul.mubr.bf16.gmra.mrb[0].mxu0 %v2753
  %v2809 = vpop.f32.mrb[0].mxu0
  %v2810 = vadd.f32 0.0, %v2809
  %v2811 = vpop.f32.mrb[0].mxu0
  %v2812 = vpop.f32.mrb[0].mxu0
  %v2813 = vadd.f32 0.0, %v2812
  %v2814 = vpop.f32.mrb[0].mxu0
  %2815 = vmatprep.mubr.bf16.mxu0 0
  %2816 = vmatmul.mubr.bf16.gmra.mrb[0].mxu0 %v2756
  %v2817 = vpop.f32.mrb[0].mxu0
  %v2818 = vadd.f32 0.0, %v2817
  %v2819 = vpop.f32.mrb[0].mxu0
  %v2820 = vpop.f32.mrb[0].mxu0
  %v2821 = vpop.f32.mrb[0].mxu0
  %2822 = vdwg.mxu0
  %v2823 = vsel %vm755, %v2802, -inf
  %2824 = vmax.xlane.f32.xlu0 %v2823
  %v2825 = vpop.xlane.xlu0 %2824
  %v2826 = vsel %vm755, %v2805, -inf
  %2827 = vmax.xlane.f32.xlu0 %v2826
  %v2828 = vpop.xlane.xlu0 %2827
  %v2829 = vsel %vm755, %v2810, -inf
  %2830 = vmax.xlane.f32.xlu0 %v2829
  %v2831 = vpop.xlane.xlu0 %2830
  %v2832 = vsel %vm755, %v2813, -inf
  %2833 = vmax.xlane.f32.xlu0 %v2832
  %v2834 = vpop.xlane.xlu0 %2833
  %v2835 = vsel %vm768, %v2818, -inf
  %2836 = vmax.xlane.f32.xlu0 %v2835
  %v2837 = vpop.xlane.xlu0 %2836
  %v2838 = vsub.f32 %v2802, %v2825
  %v2839 = vsub.f32 %v2805, %v2828
  %v2840 = vsub.f32 %v2810, %v2831
  %v2841 = vsub.f32 %v2813, %v2834
  %v2842 = vsub.f32 %v2818, %v2837
  %v2843 = vmul.f32 %v2838, 1.442695
  %v2844 = vpow.pop %v2843
  %v2845 = vmul.f32 %v2839, 1.442695
  %v2846 = vpow.pop %v2845
  %v2847 = vmul.f32 %v2840, 1.442695
  %v2848 = vpow.pop %v2847
  %v2849 = vmul.f32 %v2841, 1.442695
  %v2850 = vpow.pop %v2849
  %v2851 = vmul.f32 %v2842, 1.442695
  %v2852 = vpow.pop %v2851
  %v2853 = vsel %vm755, %v2844, 0.0
  %2854 = vadd.xlane.f32.xlu0 %v2853
  %v2855 = vpop.xlane.xlu0 %2854
  %v2856 = vsel %vm755, %v2846, 0.0
  %2857 = vadd.xlane.f32.xlu0 %v2856
  %v2858 = vpop.xlane.xlu0 %2857
  %v2859 = vsel %vm755, %v2848, 0.0
  %2860 = vadd.xlane.f32.xlu0 %v2859
  %v2861 = vpop.xlane.xlu0 %2860
  %v2862 = vsel %vm755, %v2850, 0.0
  %2863 = vadd.xlane.f32.xlu0 %v2862
  %v2864 = vpop.xlane.xlu0 %2863
  %v2865 = vsel %vm768, %v2852, 0.0
  %2866 = vadd.xlane.f32.xlu0 %v2865
  %v2867 = vpop.xlane.xlu0 %2866
  %v2868 = vrcp.pop %v2855
  %v2869 = vrcp.pop %v2858
  %v2870 = vrcp.pop %v2861
  %v2871 = vrcp.pop %v2864
  %v2872 = vrcp.pop %v2867
  %v2873 = vmul.f32 %v2844, %v2868
  %v2874 = vmul.f32 %v2846, %v2869
  %v2875 = vmul.f32 %v2848, %v2870
  %v2876 = vmul.f32 %v2850, %v2871
  %v2877 = vmul.f32 %v2852, %v2872
  %v2878 = vpack.c.bf16 %v2874, %v2873
  %v2879 = vpack.c.bf16 %v2876, %v2875
  %v2880 = vpack.c.bf16 %v2877, %v2877
  %2881 = vrot.lane.b32.xlu0 %v2297, 48
  %v2882 = vpop.permute.xlu0 %2881
  %2883 = vrot.lane.b32.xlu0 %v2298, 48
  %v2884 = vpop.permute.xlu0 %2883
  %2885 = vrot.lane.b32.xlu0 %v2299, 48
  %v2886 = vpop.permute.xlu0 %2885
  %v2890 = vsel %vm755, %v2878, 0
  %v2893 = vsel %vm755, %v2879, 0
  %v2896 = vsel %vm755, %v2880, 0
  %v2899 = vsel %vm832, %v2886, 0
  %2901 = vmatprep.subr.bf16.mxu0 0
  %2902 = vmatpush1.bf16.msra.mxu0 %v2882
  %2903 = vmatprep.subr.bf16.mxu0 0
  %2904 = vmatpush1.bf16.msra.mxu0 %v2884
  %2905 = vmatprep.subr.bf16.mxu0 0
  %2906 = vmatpush1.bf16.msra.mxu0 %v2899
  %2907 = vmatprep.subr.bf16.mxu0 0
  %2908 = vmatpush1.bf16.msra.mxu0 0
  %2909 = vmatprep.subr.bf16.mxu0 0
  %2910 = vmatpush1.bf16.msra.mxu0 0
  %2911 = vmatprep.subr.bf16.mxu0 0
  %2912 = vmatpush1.bf16.msra.mxu0 0
  %2913 = vmatprep.subr.bf16.mxu0 0
  %2914 = vmatpush1.bf16.msra.mxu0 0
  %2915 = vmatprep.subr.bf16.mxu0 0
  %2916 = vmatpush1.bf16.msra.mxu0 0
  %2917 = vmatprep.subr.bf16.mxu0 0
  %2918 = vmatpush1.bf16.msra.mxu0 0
  %2919 = vmatprep.subr.bf16.mxu0 0
  %2920 = vmatpush1.bf16.msra.mxu0 0
  %2921 = vmatprep.subr.bf16.mxu0 0
  %2922 = vmatpush1.bf16.msra.mxu0 0
  %2923 = vmatprep.subr.bf16.mxu0 0
  %2924 = vmatpush1.bf16.msra.mxu0 0
  %2925 = vmatprep.subr.bf16.mxu0 0
  %2926 = vmatpush1.bf16.msra.mxu0 0
  %2927 = vmatprep.subr.bf16.mxu0 0
  %2928 = vmatpush1.bf16.msra.mxu0 0
  %2929 = vmatprep.subr.bf16.mxu0 0
  %2930 = vmatpush1.bf16.msra.mxu0 0
  %2931 = vmatprep.subr.bf16.mxu0 0
  %2932 = vmatpush1.bf16.msra.mxu0 0
  %2933 = vmatprep.mubr.bf16.mxu0 0
  %2934 = vmatmul.mubr.bf16.gmra.mrb[0].mxu0 %v2890
  %v2935 = vpop.f32.mrb[0].mxu0
  %v2936 = vadd.f32 0.0, %v2935
  %v2937 = vpop.f32.mrb[0].mxu0
  %v2938 = vpop.f32.mrb[0].mxu0
  %v2939 = vadd.f32 0.0, %v2938
  %v2940 = vpop.f32.mrb[0].mxu0
  %2941 = vmatprep.mubr.bf16.mxu0 0
  %2942 = vmatmul.mubr.bf16.gmra.mrb[0].mxu0 %v2893
  %v2943 = vpop.f32.mrb[0].mxu0
  %v2944 = vadd.f32 0.0, %v2943
  %v2945 = vpop.f32.mrb[0].mxu0
  %v2946 = vpop.f32.mrb[0].mxu0
  %v2947 = vadd.f32 0.0, %v2946
  %v2948 = vpop.f32.mrb[0].mxu0
  %2949 = vmatprep.mubr.bf16.mxu0 0
  %2950 = vmatmul.mubr.bf16.gmra.mrb[0].mxu0 %v2896
  %v2951 = vpop.f32.mrb[0].mxu0
  %v2952 = vadd.f32 0.0, %v2951
  %v2953 = vpop.f32.mrb[0].mxu0
  %v2954 = vpop.f32.mrb[0].mxu0
  %v2955 = vpop.f32.mrb[0].mxu0
  %2956 = vdwg.mxu0
  %2957 = vrot.lane.b32.xlu0 %v2297, 104
  %v2958 = vpop.permute.xlu0 %2957
  %2959 = vrot.lane.b32.xlu0 %v2298, 104
  %v2960 = vpop.permute.xlu0 %2959
  %2961 = vrot.lane.b32.xlu0 %v2299, 104
  %v2962 = vpop.permute.xlu0 %2961
  %2963 = vrot.lane.b32.xlu0 %v2297, 72
  %v2964 = vpop.permute.xlu0 %2963
  %2965 = vrot.lane.b32.xlu0 %v2298, 72
  %v2966 = vpop.permute.xlu0 %2965
  %2967 = vrot.lane.b32.xlu0 %v2299, 72
  %v2968 = vpop.permute.xlu0 %2967
  %v2970 = vsel %vm680, %v2958, 0
  %v2973 = vsel %vm680, %v2960, 0
  %v2976 = vsel %vm680, %v2962, 0
  %v2979 = vsel %vm680, %v2964, 0
  %v2982 = vsel %vm680, %v2966, 0
  %v2985 = vsel %vm680, %v2968, 0
  %2987 = vmatprep.subr.bf16.mxu0 0
  %2988 = vmatpush1.bf16.xpose.msra.mxu0 %v2979
  %2989 = vmatprep.subr.bf16.mxu0 0
  %2990 = vmatpush1.bf16.xpose.msra.mxu0 %v2982
  %2991 = vmatprep.subr.bf16.mxu0 0
  %2992 = vmatpush1.bf16.xpose.msra.mxu0 %v2985
  %2993 = vmatprep.subr.bf16.mxu0 0
  %2994 = vmatpush1.bf16.xpose.msra.mxu0 0
  %2995 = vmatprep.subr.bf16.mxu0 0
  %2996 = vmatpush1.bf16.xpose.msra.mxu0 0
  %2997 = vmatprep.subr.bf16.mxu0 0
  %2998 = vmatpush1.bf16.xpose.msra.mxu0 0
  %2999 = vmatprep.subr.bf16.mxu0 0
  %3000 = vmatpush1.bf16.xpose.msra.mxu0 0
  %3001 = vmatprep.subr.bf16.mxu0 0
  %3002 = vmatpush1.bf16.xpose.msra.mxu0 0
  %3003 = vmatprep.subr.bf16.mxu0 0
  %3004 = vmatpush1.bf16.xpose.msra.mxu0 0
  %3005 = vmatprep.subr.bf16.mxu0 0
  %3006 = vmatpush1.bf16.xpose.msra.mxu0 0
  %3007 = vmatprep.subr.bf16.mxu0 0
  %3008 = vmatpush1.bf16.xpose.msra.mxu0 0
  %3009 = vmatprep.subr.bf16.mxu0 0
  %3010 = vmatpush1.bf16.xpose.msra.mxu0 0
  %3011 = vmatprep.subr.bf16.mxu0 0
  %3012 = vmatpush1.bf16.xpose.msra.mxu0 0
  %3013 = vmatprep.subr.bf16.mxu0 0
  %3014 = vmatpush1.bf16.xpose.msra.mxu0 0
  %3015 = vmatprep.subr.bf16.mxu0 0
  %3016 = vmatpush1.bf16.xpose.msra.mxu0 0
  %3017 = vmatprep.subr.bf16.mxu0 0
  %3018 = vmatpush1.bf16.xpose.msra.mxu0 0
  %3019 = vmatprep.mubr.bf16.mxu0 0
  %3020 = vmatmul.mubr.bf16.gmra.mrb[0].mxu0 %v2970
  %v3021 = vpop.f32.mrb[0].mxu0
  %v3022 = vadd.f32 0.0, %v3021
  %v3023 = vpop.f32.mrb[0].mxu0
  %v3024 = vpop.f32.mrb[0].mxu0
  %v3025 = vadd.f32 0.0, %v3024
  %v3026 = vpop.f32.mrb[0].mxu0
  %3027 = vmatprep.mubr.bf16.mxu0 0
  %3028 = vmatmul.mubr.bf16.gmra.mrb[0].mxu0 %v2973
  %v3029 = vpop.f32.mrb[0].mxu0
  %v3030 = vadd.f32 0.0, %v3029
  %v3031 = vpop.f32.mrb[0].mxu0
  %v3032 = vpop.f32.mrb[0].mxu0
  %v3033 = vadd.f32 0.0, %v3032
  %v3034 = vpop.f32.mrb[0].mxu0
  %3035 = vmatprep.mubr.bf16.mxu0 0
  %3036 = vmatmul.mubr.bf16.gmra.mrb[0].mxu0 %v2976
  %v3037 = vpop.f32.mrb[0].mxu0
  %v3038 = vadd.f32 0.0, %v3037
  %v3039 = vpop.f32.mrb[0].mxu0
  %v3040 = vpop.f32.mrb[0].mxu0
  %v3041 = vpop.f32.mrb[0].mxu0
  %3042 = vdwg.mxu0
  %v3043 = vsel %vm755, %v3022, -inf
  %3044 = vmax.xlane.f32.xlu0 %v3043
  %v3045 = vpop.xlane.xlu0 %3044
  %v3046 = vsel %vm755, %v3025, -inf
  %3047 = vmax.xlane.f32.xlu0 %v3046
  %v3048 = vpop.xlane.xlu0 %3047
  %v3049 = vsel %vm755, %v3030, -inf
  %3050 = vmax.xlane.f32.xlu0 %v3049
  %v3051 = vpop.xlane.xlu0 %3050
  %v3052 = vsel %vm755, %v3033, -inf
  %3053 = vmax.xlane.f32.xlu0 %v3052
  %v3054 = vpop.xlane.xlu0 %3053
  %v3055 = vsel %vm768, %v3038, -inf
  %3056 = vmax.xlane.f32.xlu0 %v3055
  %v3057 = vpop.xlane.xlu0 %3056
  %v3058 = vsub.f32 %v3022, %v3045
  %v3059 = vsub.f32 %v3025, %v3048
  %v3060 = vsub.f32 %v3030, %v3051
  %v3061 = vsub.f32 %v3033, %v3054
  %v3062 = vsub.f32 %v3038, %v3057
  %v3063 = vmul.f32 %v3058, 1.442695
  %v3064 = vpow.pop %v3063
  %v3065 = vmul.f32 %v3059, 1.442695
  %v3066 = vpow.pop %v3065
  %v3067 = vmul.f32 %v3060, 1.442695
  %v3068 = vpow.pop %v3067
  %v3069 = vmul.f32 %v3061, 1.442695
  %v3070 = vpow.pop %v3069
  %v3071 = vmul.f32 %v3062, 1.442695
  %v3072 = vpow.pop %v3071
  %v3073 = vsel %vm755, %v3064, 0.0
  %3074 = vadd.xlane.f32.xlu0 %v3073
  %v3075 = vpop.xlane.xlu0 %3074
  %v3076 = vsel %vm755, %v3066, 0.0
  %3077 = vadd.xlane.f32.xlu0 %v3076
  %v3078 = vpop.xlane.xlu0 %3077
  %v3079 = vsel %vm755, %v3068, 0.0
  %3080 = vadd.xlane.f32.xlu0 %v3079
  %v3081 = vpop.xlane.xlu0 %3080
  %v3082 = vsel %vm755, %v3070, 0.0
  %3083 = vadd.xlane.f32.xlu0 %v3082
  %v3084 = vpop.xlane.xlu0 %3083
  %v3085 = vsel %vm768, %v3072, 0.0
  %3086 = vadd.xlane.f32.xlu0 %v3085
  %v3087 = vpop.xlane.xlu0 %3086
  %v3088 = vrcp.pop %v3075
  %v3089 = vrcp.pop %v3078
  %v3090 = vrcp.pop %v3081
  %v3091 = vrcp.pop %v3084
  %v3092 = vrcp.pop %v3087
  %v3093 = vmul.f32 %v3064, %v3088
  %v3094 = vmul.f32 %v3066, %v3089
  %v3095 = vmul.f32 %v3068, %v3090
  %v3096 = vmul.f32 %v3070, %v3091
  %v3097 = vmul.f32 %v3072, %v3092
  %v3098 = vpack.c.bf16 %v3094, %v3093
  %v3099 = vpack.c.bf16 %v3096, %v3095
  %v3100 = vpack.c.bf16 %v3097, %v3097
  %3101 = vrot.lane.b32.xlu0 %v2297, 40
  %v3102 = vpop.permute.xlu0 %3101
  %3103 = vrot.lane.b32.xlu0 %v2298, 40
  %v3104 = vpop.permute.xlu0 %3103
  %3105 = vrot.lane.b32.xlu0 %v2299, 40
  %v3106 = vpop.permute.xlu0 %3105
  %v3110 = vsel %vm755, %v3098, 0
  %v3113 = vsel %vm755, %v3099, 0
  %v3116 = vsel %vm755, %v3100, 0
  %v3119 = vsel %vm832, %v3106, 0
  %3121 = vmatprep.subr.bf16.mxu0 0
  %3122 = vmatpush1.bf16.msra.mxu0 %v3102
  %3123 = vmatprep.subr.bf16.mxu0 0
  %3124 = vmatpush1.bf16.msra.mxu0 %v3104
  %3125 = vmatprep.subr.bf16.mxu0 0
  %3126 = vmatpush1.bf16.msra.mxu0 %v3119
  %3127 = vmatprep.subr.bf16.mxu0 0
  %3128 = vmatpush1.bf16.msra.mxu0 0
  %3129 = vmatprep.subr.bf16.mxu0 0
  %3130 = vmatpush1.bf16.msra.mxu0 0
  %3131 = vmatprep.subr.bf16.mxu0 0
  %3132 = vmatpush1.bf16.msra.mxu0 0
  %3133 = vmatprep.subr.bf16.mxu0 0
  %3134 = vmatpush1.bf16.msra.mxu0 0
  %3135 = vmatprep.subr.bf16.mxu0 0
  %3136 = vmatpush1.bf16.msra.mxu0 0
  %3137 = vmatprep.subr.bf16.mxu0 0
  %3138 = vmatpush1.bf16.msra.mxu0 0
  %3139 = vmatprep.subr.bf16.mxu0 0
  %3140 = vmatpush1.bf16.msra.mxu0 0
  %3141 = vmatprep.subr.bf16.mxu0 0
  %3142 = vmatpush1.bf16.msra.mxu0 0
  %3143 = vmatprep.subr.bf16.mxu0 0
  %3144 = vmatpush1.bf16.msra.mxu0 0
  %3145 = vmatprep.subr.bf16.mxu0 0
  %3146 = vmatpush1.bf16.msra.mxu0 0
  %3147 = vmatprep.subr.bf16.mxu0 0
  %3148 = vmatpush1.bf16.msra.mxu0 0
  %3149 = vmatprep.subr.bf16.mxu0 0
  %3150 = vmatpush1.bf16.msra.mxu0 0
  %3151 = vmatprep.subr.bf16.mxu0 0
  %3152 = vmatpush1.bf16.msra.mxu0 0
  %3153 = vmatprep.mubr.bf16.mxu0 0
  %3154 = vmatmul.mubr.bf16.gmra.mrb[0].mxu0 %v3110
  %v3155 = vpop.f32.mrb[0].mxu0
  %v3156 = vadd.f32 0.0, %v3155
  %v3157 = vpop.f32.mrb[0].mxu0
  %v3158 = vpop.f32.mrb[0].mxu0
  %v3159 = vadd.f32 0.0, %v3158
  %v3160 = vpop.f32.mrb[0].mxu0
  %3161 = vmatprep.mubr.bf16.mxu0 0
  %3162 = vmatmul.mubr.bf16.gmra.mrb[0].mxu0 %v3113
  %v3163 = vpop.f32.mrb[0].mxu0
  %v3164 = vadd.f32 0.0, %v3163
  %v3165 = vpop.f32.mrb[0].mxu0
  %v3166 = vpop.f32.mrb[0].mxu0
  %v3167 = vadd.f32 0.0, %v3166
  %v3168 = vpop.f32.mrb[0].mxu0
  %3169 = vmatprep.mubr.bf16.mxu0 0
  %3170 = vmatmul.mubr.bf16.gmra.mrb[0].mxu0 %v3116
  %v3171 = vpop.f32.mrb[0].mxu0
  %v3172 = vadd.f32 0.0, %v3171
  %v3173 = vpop.f32.mrb[0].mxu0
  %v3174 = vpop.f32.mrb[0].mxu0
  %v3175 = vpop.f32.mrb[0].mxu0
  %3176 = vdwg.mxu0
  %3182 = vrot.lane.b32.xlu0 %v2716, 8
  %v3183 = vpop.permute.xlu0 %3182
  %3184 = vrot.lane.b32.xlu0 %v2719, 8
  %v3185 = vpop.permute.xlu0 %3184
  %3186 = vrot.lane.b32.xlu0 %v2724, 8
  %v3187 = vpop.permute.xlu0 %3186
  %3188 = vrot.lane.b32.xlu0 %v2727, 8
  %v3189 = vpop.permute.xlu0 %3188
  %3190 = vrot.lane.b32.xlu0 %v2732, 8
  %v3191 = vpop.permute.xlu0 %3190
  %3202 = vrot.lane.b32.xlu0 %v2936, 16
  %v3203 = vpop.permute.xlu0 %3202
  %3204 = vrot.lane.b32.xlu0 %v2939, 16
  %v3205 = vpop.permute.xlu0 %3204
  %3206 = vrot.lane.b32.xlu0 %v2944, 16
  %v3207 = vpop.permute.xlu0 %3206
  %3208 = vrot.lane.b32.xlu0 %v2947, 16
  %v3209 = vpop.permute.xlu0 %3208
  %3210 = vrot.lane.b32.xlu0 %v2952, 16
  %v3211 = vpop.permute.xlu0 %3210
  %3222 = vrot.lane.b32.xlu0 %v3156, 24
  %v3223 = vpop.permute.xlu0 %3222
  %3224 = vrot.lane.b32.xlu0 %v3159, 24
  %v3225 = vpop.permute.xlu0 %3224
  %3226 = vrot.lane.b32.xlu0 %v3164, 24
  %v3227 = vpop.permute.xlu0 %3226
  %3228 = vrot.lane.b32.xlu0 %v3167, 24
  %v3229 = vpop.permute.xlu0 %3228
  %3230 = vrot.lane.b32.xlu0 %v3172, 24
  %v3231 = vpop.permute.xlu0 %3230
  %v3237 = vsel %vm680, %v2496, %v3183
  %v3238 = vsel %vm680, %v2499, %v3185
  %v3239 = vsel %vm680, %v2504, %v3187
  %v3240 = vsel %vm680, %v2507, %v3189
  %v3241 = vsel %vm680, %v2512, %v3191
  %v3242 = vsel %vm1617, %v3237, %v3203
  %v3243 = vsel %vm1617, %v3238, %v3205
  %v3244 = vsel %vm1617, %v3239, %v3207
  %v3245 = vsel %vm1617, %v3240, %v3209
  %v3246 = vsel %vm1617, %v3241, %v3211
  %v3247 = vsel %vm1623, %v3242, %v3223
  %v3248 = vsel %vm1623, %v3243, %v3225
  %v3249 = vsel %vm1623, %v3244, %v3227
  %v3250 = vsel %vm1623, %v3245, %v3229
  %v3251 = vsel %vm1623, %v3246, %v3231
  %v3252 = vpack.c.bf16 %v3248, %v3247
  %v3253 = vpack.c.bf16 %v3250, %v3249
  %v3254 = vpack.c.bf16 %v3251, %v3251
  %v3256 = vsel %vm602, %v3252, 0
  %v3259 = vsel %vm602, %v3253, 0
  %v3262 = vsel %vm602, %v3254, 0
  %3264 = vmatprep.subr.bf16.mxu0 %v1709
  %3265 = vmatpush1.bf16.msra.mxu0 %v1708
  %3266 = vmatprep.subr.bf16.mxu0 %v1718
  %3267 = vmatpush1.bf16.msra.mxu0 %v1717
  %3268 = vmatprep.subr.bf16.mxu0 0
  %3269 = vmatpush1.bf16.msra.mxu0 0
  %3270 = vmatprep.subr.bf16.mxu0 0
  %3271 = vmatpush1.bf16.msra.mxu0 0
  %3272 = vmatprep.subr.bf16.mxu0 0
  %3273 = vmatpush1.bf16.msra.mxu0 0
  %3274 = vmatprep.subr.bf16.mxu0 0
  %3275 = vmatpush1.bf16.msra.mxu0 0
  %3276 = vmatprep.subr.bf16.mxu0 0
  %3277 = vmatpush1.bf16.msra.mxu0 0
  %3278 = vmatprep.subr.bf16.mxu0 0
  %3279 = vmatpush1.bf16.msra.mxu0 0
  %3280 = vmatprep.subr.bf16.mxu0 0
  %3281 = vmatpush1.bf16.msra.mxu0 0
  %3282 = vmatprep.subr.bf16.mxu0 0
  %3283 = vmatpush1.bf16.msra.mxu0 0
  %3284 = vmatprep.subr.bf16.mxu0 0
  %3285 = vmatpush1.bf16.msra.mxu0 0
  %3286 = vmatprep.subr.bf16.mxu0 0
  %3287 = vmatpush1.bf16.msra.mxu0 0
  %3288 = vmatprep.subr.bf16.mxu0 0
  %3289 = vmatpush1.bf16.msra.mxu0 0
  %3290 = vmatprep.subr.bf16.mxu0 0
  %3291 = vmatpush1.bf16.msra.mxu0 0
  %3292 = vmatprep.subr.bf16.mxu0 0
  %3293 = vmatpush1.bf16.msra.mxu0 0
  %3294 = vmatprep.subr.bf16.mxu0 0
  %3295 = vmatpush1.bf16.msra.mxu0 0
  %3296 = vmatprep.mubr.bf16.mxu0 0
  %3297 = vmatmul.mubr.bf16.gmra.mrb[0].mxu0 %v3256
  %v3298 = vpop.f32.mrb[0].mxu0
  %v3299 = vadd.f32 0.0, %v3298
  %v3300 = vpop.f32.mrb[0].mxu0
  %v3301 = vadd.f32 0.0, %v3300
  %v3302 = vpop.f32.mrb[0].mxu0
  %v3303 = vadd.f32 0.0, %v3302
  %v3304 = vpop.f32.mrb[0].mxu0
  %v3305 = vadd.f32 0.0, %v3304
  %3306 = vmatprep.mubr.bf16.mxu0 0
  %3307 = vmatmul.mubr.bf16.gmra.mrb[0].mxu0 %v3259
  %v3308 = vpop.f32.mrb[0].mxu0
  %v3309 = vadd.f32 0.0, %v3308
  %v3310 = vpop.f32.mrb[0].mxu0
  %v3311 = vadd.f32 0.0, %v3310
  %v3312 = vpop.f32.mrb[0].mxu0
  %v3313 = vadd.f32 0.0, %v3312
  %v3314 = vpop.f32.mrb[0].mxu0
  %v3315 = vadd.f32 0.0, %v3314
  %3316 = vmatprep.mubr.bf16.mxu0 0
  %3317 = vmatmul.mubr.bf16.gmra.mrb[0].mxu0 %v3262
  %v3318 = vpop.f32.mrb[0].mxu0
  %v3319 = vadd.f32 0.0, %v3318
  %v3320 = vpop.f32.mrb[0].mxu0
  %v3321 = vadd.f32 0.0, %v3320
  %v3322 = vpop.f32.mrb[0].mxu0
  %v3323 = vpop.f32.mrb[0].mxu0
  %3324 = vdwg.mxu0
  %3325 = vmatprep.subr.bf16.mxu0 %v1711
  %3326 = vmatpush1.bf16.msra.mxu0 %v1710
  %3327 = vmatprep.subr.bf16.mxu0 %v1720
  %3328 = vmatpush1.bf16.msra.mxu0 %v1719
  %3329 = vmatprep.subr.bf16.mxu0 0
  %3330 = vmatpush1.bf16.msra.mxu0 0
  %3331 = vmatprep.subr.bf16.mxu0 0
  %3332 = vmatpush1.bf16.msra.mxu0 0
  %3333 = vmatprep.subr.bf16.mxu0 0
  %3334 = vmatpush1.bf16.msra.mxu0 0
  %3335 = vmatprep.subr.bf16.mxu0 0
  %3336 = vmatpush1.bf16.msra.mxu0 0
  %3337 = vmatprep.subr.bf16.mxu0 0
  %3338 = vmatpush1.bf16.msra.mxu0 0
  %3339 = vmatprep.subr.bf16.mxu0 0
  %3340 = vmatpush1.bf16.msra.mxu0 0
  %3341 = vmatprep.subr.bf16.mxu0 0
  %3342 = vmatpush1.bf16.msra.mxu0 0
  %3343 = vmatprep.subr.bf16.mxu0 0
  %3344 = vmatpush1.bf16.msra.mxu0 0
  %3345 = vmatprep.subr.bf16.mxu0 0
  %3346 = vmatpush1.bf16.msra.mxu0 0
  %3347 = vmatprep.subr.bf16.mxu0 0
  %3348 = vmatpush1.bf16.msra.mxu0 0
  %3349 = vmatprep.subr.bf16.mxu0 0
  %3350 = vmatpush1.bf16.msra.mxu0 0
  %3351 = vmatprep.subr.bf16.mxu0 0
  %3352 = vmatpush1.bf16.msra.mxu0 0
  %3353 = vmatprep.subr.bf16.mxu0 0
  %3354 = vmatpush1.bf16.msra.mxu0 0
  %3355 = vmatprep.subr.bf16.mxu0 0
  %3356 = vmatpush1.bf16.msra.mxu0 0
  %3357 = vmatprep.mubr.bf16.mxu0 0
  %3358 = vmatmul.mubr.bf16.gmra.mrb[0].mxu0 %v3256
  %v3359 = vpop.f32.mrb[0].mxu0
  %v3360 = vadd.f32 0.0, %v3359
  %v3361 = vpop.f32.mrb[0].mxu0
  %v3362 = vadd.f32 0.0, %v3361
  %v3363 = vpop.f32.mrb[0].mxu0
  %v3364 = vadd.f32 0.0, %v3363
  %v3365 = vpop.f32.mrb[0].mxu0
  %v3366 = vadd.f32 0.0, %v3365
  %3367 = vmatprep.mubr.bf16.mxu0 0
  %3368 = vmatmul.mubr.bf16.gmra.mrb[0].mxu0 %v3259
  %v3369 = vpop.f32.mrb[0].mxu0
  %v3370 = vadd.f32 0.0, %v3369
  %v3371 = vpop.f32.mrb[0].mxu0
  %v3372 = vadd.f32 0.0, %v3371
  %v3373 = vpop.f32.mrb[0].mxu0
  %v3374 = vadd.f32 0.0, %v3373
  %v3375 = vpop.f32.mrb[0].mxu0
  %v3376 = vadd.f32 0.0, %v3375
  %3377 = vmatprep.mubr.bf16.mxu0 0
  %3378 = vmatmul.mubr.bf16.gmra.mrb[0].mxu0 %v3262
  %v3379 = vpop.f32.mrb[0].mxu0
  %v3380 = vadd.f32 0.0, %v3379
  %v3381 = vpop.f32.mrb[0].mxu0
  %v3382 = vadd.f32 0.0, %v3381
  %v3383 = vpop.f32.mrb[0].mxu0
  %v3384 = vpop.f32.mrb[0].mxu0
  %3385 = vdwg.mxu0
  %3386 = vmatprep.subr.bf16.mxu0 %v1713
  %3387 = vmatpush1.bf16.msra.mxu0 %v1712
  %3388 = vmatprep.subr.bf16.mxu0 %v1722
  %3389 = vmatpush1.bf16.msra.mxu0 %v1721
  %3390 = vmatprep.subr.bf16.mxu0 0
  %3391 = vmatpush1.bf16.msra.mxu0 0
  %3392 = vmatprep.subr.bf16.mxu0 0
  %3393 = vmatpush1.bf16.msra.mxu0 0
  %3394 = vmatprep.subr.bf16.mxu0 0
  %3395 = vmatpush1.bf16.msra.mxu0 0
  %3396 = vmatprep.subr.bf16.mxu0 0
  %3397 = vmatpush1.bf16.msra.mxu0 0
  %3398 = vmatprep.subr.bf16.mxu0 0
  %3399 = vmatpush1.bf16.msra.mxu0 0
  %3400 = vmatprep.subr.bf16.mxu0 0
  %3401 = vmatpush1.bf16.msra.mxu0 0
  %3402 = vmatprep.subr.bf16.mxu0 0
  %3403 = vmatpush1.bf16.msra.mxu0 0
  %3404 = vmatprep.subr.bf16.mxu0 0
  %3405 = vmatpush1.bf16.msra.mxu0 0
  %3406 = vmatprep.subr.bf16.mxu0 0
  %3407 = vmatpush1.bf16.msra.mxu0 0
  %3408 = vmatprep.subr.bf16.mxu0 0
  %3409 = vmatpush1.bf16.msra.mxu0 0
  %3410 = vmatprep.subr.bf16.mxu0 0
  %3411 = vmatpush1.bf16.msra.mxu0 0
  %3412 = vmatprep.subr.bf16.mxu0 0
  %3413 = vmatpush1.bf16.msra.mxu0 0
  %3414 = vmatprep.subr.bf16.mxu0 0
  %3415 = vmatpush1.bf16.msra.mxu0 0
  %3416 = vmatprep.subr.bf16.mxu0 0
  %3417 = vmatpush1.bf16.msra.mxu0 0
  %3418 = vmatprep.mubr.bf16.mxu0 0
  %3419 = vmatmul.mubr.bf16.gmra.mrb[0].mxu0 %v3256
  %v3420 = vpop.f32.mrb[0].mxu0
  %v3421 = vadd.f32 0.0, %v3420
  %v3422 = vpop.f32.mrb[0].mxu0
  %v3423 = vadd.f32 0.0, %v3422
  %v3424 = vpop.f32.mrb[0].mxu0
  %v3425 = vadd.f32 0.0, %v3424
  %v3426 = vpop.f32.mrb[0].mxu0
  %v3427 = vadd.f32 0.0, %v3426
  %3428 = vmatprep.mubr.bf16.mxu0 0
  %3429 = vmatmul.mubr.bf16.gmra.mrb[0].mxu0 %v3259
  %v3430 = vpop.f32.mrb[0].mxu0
  %v3431 = vadd.f32 0.0, %v3430
  %v3432 = vpop.f32.mrb[0].mxu0
  %v3433 = vadd.f32 0.0, %v3432
  %v3434 = vpop.f32.mrb[0].mxu0
  %v3435 = vadd.f32 0.0, %v3434
  %v3436 = vpop.f32.mrb[0].mxu0
  %v3437 = vadd.f32 0.0, %v3436
  %3438 = vmatprep.mubr.bf16.mxu0 0
  %3439 = vmatmul.mubr.bf16.gmra.mrb[0].mxu0 %v3262
  %v3440 = vpop.f32.mrb[0].mxu0
  %v3441 = vadd.f32 0.0, %v3440
  %v3442 = vpop.f32.mrb[0].mxu0
  %v3443 = vadd.f32 0.0, %v3442
  %v3444 = vpop.f32.mrb[0].mxu0
  %v3445 = vpop.f32.mrb[0].mxu0
  %3446 = vdwg.mxu0
  %3447 = vmatprep.subr.bf16.mxu0 %v1715
  %3448 = vmatpush1.bf16.msra.mxu0 %v1714
  %3449 = vmatprep.subr.bf16.mxu0 %v1724
  %3450 = vmatpush1.bf16.msra.mxu0 %v1723
  %3451 = vmatprep.subr.bf16.mxu0 0
  %3452 = vmatpush1.bf16.msra.mxu0 0
  %3453 = vmatprep.subr.bf16.mxu0 0
  %3454 = vmatpush1.bf16.msra.mxu0 0
  %3455 = vmatprep.subr.bf16.mxu0 0
  %3456 = vmatpush1.bf16.msra.mxu0 0
  %3457 = vmatprep.subr.bf16.mxu0 0
  %3458 = vmatpush1.bf16.msra.mxu0 0
  %3459 = vmatprep.subr.bf16.mxu0 0
  %3460 = vmatpush1.bf16.msra.mxu0 0
  %3461 = vmatprep.subr.bf16.mxu0 0
  %3462 = vmatpush1.bf16.msra.mxu0 0
  %3463 = vmatprep.subr.bf16.mxu0 0
  %3464 = vmatpush1.bf16.msra.mxu0 0
  %3465 = vmatprep.subr.bf16.mxu0 0
  %3466 = vmatpush1.bf16.msra.mxu0 0
  %3467 = vmatprep.subr.bf16.mxu0 0
  %3468 = vmatpush1.bf16.msra.mxu0 0
  %3469 = vmatprep.subr.bf16.mxu0 0
  %3470 = vmatpush1.bf16.msra.mxu0 0
  %3471 = vmatprep.subr.bf16.mxu0 0
  %3472 = vmatpush1.bf16.msra.mxu0 0
  %3473 = vmatprep.subr.bf16.mxu0 0
  %3474 = vmatpush1.bf16.msra.mxu0 0
  %3475 = vmatprep.subr.bf16.mxu0 0
  %3476 = vmatpush1.bf16.msra.mxu0 0
  %3477 = vmatprep.subr.bf16.mxu0 0
  %3478 = vmatpush1.bf16.msra.mxu0 0
  %3479 = vmatprep.mubr.bf16.mxu0 0
  %3480 = vmatmul.mubr.bf16.gmra.mrb[0].mxu0 %v3256
  %v3481 = vpop.f32.mrb[0].mxu0
  %v3482 = vadd.f32 0.0, %v3481
  %v3483 = vpop.f32.mrb[0].mxu0
  %v3484 = vadd.f32 0.0, %v3483
  %v3485 = vpop.f32.mrb[0].mxu0
  %v3486 = vadd.f32 0.0, %v3485
  %v3487 = vpop.f32.mrb[0].mxu0
  %v3488 = vadd.f32 0.0, %v3487
  %3489 = vmatprep.mubr.bf16.mxu0 0
  %3490 = vmatmul.mubr.bf16.gmra.mrb[0].mxu0 %v3259
  %v3491 = vpop.f32.mrb[0].mxu0
  %v3492 = vadd.f32 0.0, %v3491
  %v3493 = vpop.f32.mrb[0].mxu0
  %v3494 = vadd.f32 0.0, %v3493
  %v3495 = vpop.f32.mrb[0].mxu0
  %v3496 = vadd.f32 0.0, %v3495
  %v3497 = vpop.f32.mrb[0].mxu0
  %v3498 = vadd.f32 0.0, %v3497
  %3499 = vmatprep.mubr.bf16.mxu0 0
  %3500 = vmatmul.mubr.bf16.gmra.mrb[0].mxu0 %v3262
  %v3501 = vpop.f32.mrb[0].mxu0
  %v3502 = vadd.f32 0.0, %v3501
  %v3503 = vpop.f32.mrb[0].mxu0
  %v3504 = vadd.f32 0.0, %v3503
  %v3505 = vpop.f32.mrb[0].mxu0
  %v3506 = vpop.f32.mrb[0].mxu0
  %3507 = vdwg.mxu0
  %3508 = vmatprep.subr.bf16.mxu0 0
  %3509 = vmatpush1.bf16.msra.mxu0 %v1716
  %3510 = vmatprep.subr.bf16.mxu0 0
  %3511 = vmatpush1.bf16.msra.mxu0 %v1725
  %3512 = vmatprep.subr.bf16.mxu0 0
  %3513 = vmatpush1.bf16.msra.mxu0 0
  %3514 = vmatprep.subr.bf16.mxu0 0
  %3515 = vmatpush1.bf16.msra.mxu0 0
  %3516 = vmatprep.subr.bf16.mxu0 0
  %3517 = vmatpush1.bf16.msra.mxu0 0
  %3518 = vmatprep.subr.bf16.mxu0 0
  %3519 = vmatpush1.bf16.msra.mxu0 0
  %3520 = vmatprep.subr.bf16.mxu0 0
  %3521 = vmatpush1.bf16.msra.mxu0 0
  %3522 = vmatprep.subr.bf16.mxu0 0
  %3523 = vmatpush1.bf16.msra.mxu0 0
  %3524 = vmatprep.subr.bf16.mxu0 0
  %3525 = vmatpush1.bf16.msra.mxu0 0
  %3526 = vmatprep.subr.bf16.mxu0 0
  %3527 = vmatpush1.bf16.msra.mxu0 0
  %3528 = vmatprep.subr.bf16.mxu0 0
  %3529 = vmatpush1.bf16.msra.mxu0 0
  %3530 = vmatprep.subr.bf16.mxu0 0
  %3531 = vmatpush1.bf16.msra.mxu0 0
  %3532 = vmatprep.subr.bf16.mxu0 0
  %3533 = vmatpush1.bf16.msra.mxu0 0
  %3534 = vmatprep.subr.bf16.mxu0 0
  %3535 = vmatpush1.bf16.msra.mxu0 0
  %3536 = vmatprep.subr.bf16.mxu0 0
  %3537 = vmatpush1.bf16.msra.mxu0 0
  %3538 = vmatprep.subr.bf16.mxu0 0
  %3539 = vmatpush1.bf16.msra.mxu0 0
  %3540 = vmatprep.mubr.bf16.mxu0 0
  %3541 = vmatmul.mubr.bf16.gmra.mrb[0].mxu0 %v3256
  %v3542 = vpop.f32.mrb[0].mxu0
  %v3543 = vadd.f32 0.0, %v3542
  %v3544 = vpop.f32.mrb[0].mxu0
  %v3545 = vpop.f32.mrb[0].mxu0
  %v3546 = vadd.f32 0.0, %v3545
  %v3547 = vpop.f32.mrb[0].mxu0
  %3548 = vmatprep.mubr.bf16.mxu0 0
  %3549 = vmatmul.mubr.bf16.gmra.mrb[0].mxu0 %v3259
  %v3550 = vpop.f32.mrb[0].mxu0
  %v3551 = vadd.f32 0.0, %v3550
  %v3552 = vpop.f32.mrb[0].mxu0
  %v3553 = vpop.f32.mrb[0].mxu0
  %v3554 = vadd.f32 0.0, %v3553
  %v3555 = vpop.f32.mrb[0].mxu0
  %3556 = vmatprep.mubr.bf16.mxu0 0
  %3557 = vmatmul.mubr.bf16.gmra.mrb[0].mxu0 %v3262
  %v3558 = vpop.f32.mrb[0].mxu0
  %v3559 = vadd.f32 0.0, %v3558
  %v3560 = vpop.f32.mrb[0].mxu0
  %v3561 = vpop.f32.mrb[0].mxu0
  %v3562 = vpop.f32.mrb[0].mxu0
  %3563 = vdwg.mxu0
  %v3564 = vsel %vm523, %v3299, 0.0
  %v3565 = vsel %vm524, %v3301, 0.0
  %v3566 = vsel %vm525, %v3360, 0.0
  %v3567 = vsel %vm526, %v3362, 0.0
  %v3568 = vsel %vm527, %v3421, 0.0
  %v3569 = vsel %vm528, %v3423, 0.0
  %v3570 = vsel %vm529, %v3482, 0.0
  %v3571 = vsel %vm530, %v3484, 0.0
  %v3572 = vsel %vm531, %v3543, 0.0
  %v3573 = vsel %vm532, %v3303, 0.0
  %v3574 = vsel %vm533, %v3305, 0.0
  %v3575 = vsel %vm534, %v3364, 0.0
  %v3576 = vsel %vm535, %v3366, 0.0
  %v3577 = vsel %vm536, %v3425, 0.0
  %v3578 = vsel %vm537, %v3427, 0.0
  %v3579 = vsel %vm538, %v3486, 0.0
  %v3580 = vsel %vm539, %v3488, 0.0
  %v3581 = vsel %vm540, %v3546, 0.0
  %v3582 = vsel %vm541, %v3309, 0.0
  %v3583 = vsel %vm542, %v3311, 0.0
  %v3584 = vsel %vm543, %v3370, 0.0
  %v3585 = vsel %vm544, %v3372, 0.0
  %v3586 = vsel %vm545, %v3431, 0.0
  %v3587 = vsel %vm546, %v3433, 0.0
  %v3588 = vsel %vm547, %v3492, 0.0
  %v3589 = vsel %vm548, %v3494, 0.0
  %v3590 = vsel %vm549, %v3551, 0.0
  %v3591 = vsel %vm550, %v3313, 0.0
  %v3592 = vsel %vm551, %v3315, 0.0
  %v3593 = vsel %vm552, %v3374, 0.0
  %v3594 = vsel %vm553, %v3376, 0.0
  %v3595 = vsel %vm554, %v3435, 0.0
  %v3596 = vsel %vm555, %v3437, 0.0
  %v3597 = vsel %vm556, %v3496, 0.0
  %v3598 = vsel %vm557, %v3498, 0.0
  %v3599 = vsel %vm558, %v3554, 0.0
  %v3600 = vsel %vm559, %v3319, 0.0
  %v3601 = vsel %vm560, %v3321, 0.0
  %v3602 = vsel %vm561, %v3380, 0.0
  %v3603 = vsel %vm562, %v3382, 0.0
  %v3604 = vsel %vm563, %v3441, 0.0
  %v3605 = vsel %vm564, %v3443, 0.0
  %v3606 = vsel %vm565, %v3502, 0.0
  %v3607 = vsel %vm566, %v3504, 0.0
  %v3608 = vsel %vm567, %v3559, 0.0
  %v3609 = vadd.f32 %v3564, %v3573
  %v3610 = vadd.f32 %v3609, %v3582
  %v3611 = vadd.f32 %v3610, %v3591
  %v3612 = vsel %vm2101, %v3600, 0.0
  %v3613 = vadd.f32 %v3611, %v3612
  %v3614 = vrot.slane %v3613, 4
  %v3615 = vadd.f32 %v3613, %v3614
  %v3616 = vrot.slane %v3615, 2
  %v3617 = vadd.f32 %v3615, %v3616
  %v3618 = vrot.slane %v3617, 1
  %v3619 = vadd.f32 %v3617, %v3618
  %v3620 = vadd.f32 %v3565, %v3574
  %v3621 = vadd.f32 %v3620, %v3583
  %v3622 = vadd.f32 %v3621, %v3592
  %v3623 = vsel %vm2101, %v3601, 0.0
  %v3624 = vadd.f32 %v3622, %v3623
  %v3625 = vrot.slane %v3624, 4
  %v3626 = vadd.f32 %v3624, %v3625
  %v3627 = vrot.slane %v3626, 2
  %v3628 = vadd.f32 %v3626, %v3627
  %v3629 = vrot.slane %v3628, 1
  %v3630 = vadd.f32 %v3628, %v3629
  %v3631 = vadd.f32 %v3566, %v3575
  %v3632 = vadd.f32 %v3631, %v3584
  %v3633 = vadd.f32 %v3632, %v3593
  %v3634 = vsel %vm2101, %v3602, 0.0
  %v3635 = vadd.f32 %v3633, %v3634
  %v3636 = vrot.slane %v3635, 4
  %v3637 = vadd.f32 %v3635, %v3636
  %v3638 = vrot.slane %v3637, 2
  %v3639 = vadd.f32 %v3637, %v3638
  %v3640 = vrot.slane %v3639, 1
  %v3641 = vadd.f32 %v3639, %v3640
  %v3642 = vadd.f32 %v3567, %v3576
  %v3643 = vadd.f32 %v3642, %v3585
  %v3644 = vadd.f32 %v3643, %v3594
  %v3645 = vsel %vm2101, %v3603, 0.0
  %v3646 = vadd.f32 %v3644, %v3645
  %v3647 = vrot.slane %v3646, 4
  %v3648 = vadd.f32 %v3646, %v3647
  %v3649 = vrot.slane %v3648, 2
  %v3650 = vadd.f32 %v3648, %v3649
  %v3651 = vrot.slane %v3650, 1
  %v3652 = vadd.f32 %v3650, %v3651
  %v3653 = vadd.f32 %v3568, %v3577
  %v3654 = vadd.f32 %v3653, %v3586
  %v3655 = vadd.f32 %v3654, %v3595
  %v3656 = vsel %vm2101, %v3604, 0.0
  %v3657 = vadd.f32 %v3655, %v3656
  %v3658 = vrot.slane %v3657, 4
  %v3659 = vadd.f32 %v3657, %v3658
  %v3660 = vrot.slane %v3659, 2
  %v3661 = vadd.f32 %v3659, %v3660
  %v3662 = vrot.slane %v3661, 1
  %v3663 = vadd.f32 %v3661, %v3662
  %v3664 = vadd.f32 %v3569, %v3578
  %v3665 = vadd.f32 %v3664, %v3587
  %v3666 = vadd.f32 %v3665, %v3596
  %v3667 = vsel %vm2101, %v3605, 0.0
  %v3668 = vadd.f32 %v3666, %v3667
  %v3669 = vrot.slane %v3668, 4
  %v3670 = vadd.f32 %v3668, %v3669
  %v3671 = vrot.slane %v3670, 2
  %v3672 = vadd.f32 %v3670, %v3671
  %v3673 = vrot.slane %v3672, 1
  %v3674 = vadd.f32 %v3672, %v3673
  %v3675 = vadd.f32 %v3570, %v3579
  %v3676 = vadd.f32 %v3675, %v3588
  %v3677 = vadd.f32 %v3676, %v3597
  %v3678 = vsel %vm2101, %v3606, 0.0
  %v3679 = vadd.f32 %v3677, %v3678
  %v3680 = vrot.slane %v3679, 4
  %v3681 = vadd.f32 %v3679, %v3680
  %v3682 = vrot.slane %v3681, 2
  %v3683 = vadd.f32 %v3681, %v3682
  %v3684 = vrot.slane %v3683, 1
  %v3685 = vadd.f32 %v3683, %v3684
  %v3686 = vadd.f32 %v3571, %v3580
  %v3687 = vadd.f32 %v3686, %v3589
  %v3688 = vadd.f32 %v3687, %v3598
  %v3689 = vsel %vm2101, %v3607, 0.0
  %v3690 = vadd.f32 %v3688, %v3689
  %v3691 = vrot.slane %v3690, 4
  %v3692 = vadd.f32 %v3690, %v3691
  %v3693 = vrot.slane %v3692, 2
  %v3694 = vadd.f32 %v3692, %v3693
  %v3695 = vrot.slane %v3694, 1
  %v3696 = vadd.f32 %v3694, %v3695
  %v3697 = vadd.f32 %v3572, %v3581
  %v3698 = vadd.f32 %v3697, %v3590
  %v3699 = vadd.f32 %v3698, %v3599
  %v3700 = vsel %vm2101, %v3608, 0.0
  %v3701 = vadd.f32 %v3699, %v3700
  %v3702 = vrot.slane %v3701, 4
  %v3703 = vadd.f32 %v3701, %v3702
  %v3704 = vrot.slane %v3703, 2
  %v3705 = vadd.f32 %v3703, %v3704
  %v3706 = vrot.slane %v3705, 1
  %v3707 = vadd.f32 %v3705, %v3706
  %v3708 = vadd.f32 %v3619, %v3630
  %v3709 = vadd.f32 %v3708, %v3641
  %v3710 = vadd.f32 %v3709, %v3652
  %v3711 = vadd.f32 %v3710, %v3663
  %v3712 = vadd.f32 %v3711, %v3674
  %v3713 = vadd.f32 %v3712, %v3685
  %v3714 = vadd.f32 %v3713, %v3696
  %v3715 = vadd.f32 %v3714, %v3707
  %3717 = vrot.lane.b32.xlu0 %v3715, 96
  %v3718 = vpop.permute.xlu0 %3717
  %v3720 = vadd.f32 %v3715, %v3718
  %3721 = vrot.lane.b32.xlu0 %v3715, 64
  %v3722 = vpop.permute.xlu0 %3721
  %v3724 = vadd.f32 %v3720, %v3722
  %3725 = vrot.lane.b32.xlu0 %v3715, 32
  %v3726 = vpop.permute.xlu0 %3725
  %v3728 = vadd.f32 %v3724, %v3726
  %v3730 = vrot.slane %v3728, 7
  %vm3732 = vcmask 1040384
  %v3733 = vsel %vm3732, %v2218, %v3730
  %v3734 = vld [vmem:[%s7 + $0x1] sm:$0x1]
  %v3735 = vlaneseq
  %v3736 = vshrl.u32 %v3735, 7
  %v3737 = vsub.s32 0, %v3736
  %v3738 = vrot.slane %v3734, %v3737
  %v3739 = vadd.f32 %v3733, %v3738
  %v3740 = vmax.f32 %v3739, 0.0
  %v3741 = vpack.c.bf16 %v3740, %v3740
  %v3742 = vld [vmem:[%s5] sm:$0xf]
  %v3743 = vld [vmem:[%s5 + $0x4] sm:$0xf]
  %v3744 = vld [vmem:[%s5 + $0x8] sm:$0xf]
  %v3745 = vld [vmem:[%s5 + $0xc] sm:$0xf]
  %v3746 = vld [vmem:[%s7 + $0x2] sm:$0x1]
  %v3747 = vlaneseq
  %v3748 = vshrl.u32 %v3747, 7
  %v3749 = vsub.s32 0, %v3748
  %v3750 = vrot.slane %v3746, %v3749
  %v3755 = vunpack.c.l.b16 %v3742
  %v3756 = vunpack.c.l.b16 %v3743
  %v3757 = vunpack.c.l.b16 %v3744
  %v3758 = vunpack.c.l.b16 %v3745
  %v3759 = vpack.c.b16 %v3756, %v3755
  %v3760 = vpack.c.b16 %v3758, %v3757
  %v3764 = vsel %vm602, %v3741, 0
  %3766 = vmatprep.subr.bf16.mxu0 0
  %3767 = vmatpush1.bf16.msra.mxu0 %v3759
  %3768 = vmatprep.subr.bf16.mxu0 0
  %3769 = vmatpush1.bf16.msra.mxu0 %v3760
  %3770 = vmatprep.subr.bf16.mxu0 0
  %3771 = vmatpush1.bf16.msra.mxu0 0
  %3772 = vmatprep.subr.bf16.mxu0 0
  %3773 = vmatpush1.bf16.msra.mxu0 0
  %3774 = vmatprep.subr.bf16.mxu0 0
  %3775 = vmatpush1.bf16.msra.mxu0 0
  %3776 = vmatprep.subr.bf16.mxu0 0
  %3777 = vmatpush1.bf16.msra.mxu0 0
  %3778 = vmatprep.subr.bf16.mxu0 0
  %3779 = vmatpush1.bf16.msra.mxu0 0
  %3780 = vmatprep.subr.bf16.mxu0 0
  %3781 = vmatpush1.bf16.msra.mxu0 0
  %3782 = vmatprep.subr.bf16.mxu0 0
  %3783 = vmatpush1.bf16.msra.mxu0 0
  %3784 = vmatprep.subr.bf16.mxu0 0
  %3785 = vmatpush1.bf16.msra.mxu0 0
  %3786 = vmatprep.subr.bf16.mxu0 0
  %3787 = vmatpush1.bf16.msra.mxu0 0
  %3788 = vmatprep.subr.bf16.mxu0 0
  %3789 = vmatpush1.bf16.msra.mxu0 0
  %3790 = vmatprep.subr.bf16.mxu0 0
  %3791 = vmatpush1.bf16.msra.mxu0 0
  %3792 = vmatprep.subr.bf16.mxu0 0
  %3793 = vmatpush1.bf16.msra.mxu0 0
  %3794 = vmatprep.subr.bf16.mxu0 0
  %3795 = vmatpush1.bf16.msra.mxu0 0
  %3796 = vmatprep.subr.bf16.mxu0 0
  %3797 = vmatpush1.bf16.msra.mxu0 0
  %3798 = vmatprep.mubr.bf16.mxu0 0
  %3799 = vmatmul.mubr.bf16.gmra.mrb[0].mxu0 %v3764
  %v3800 = vpop.f32.mrb[0].mxu0
  %v3801 = vadd.f32 %v3750, %v3800
  %v3802 = vpop.f32.mrb[0].mxu0
  %v3803 = vpop.f32.mrb[0].mxu0
  %v3804 = vpop.f32.mrb[0].mxu0
  %3805 = vdwg.mxu0
  %v3806 = vmax.f32 %v3801, 0.0
  %v3807 = vpack.c.bf16 %v3806, %v3806
  %v3808 = vld [vmem:[%s6] sm:$0xf]
  %v3809 = vld [vmem:[%s6 + $0x4] sm:$0xf]
  %v3810 = vld [vmem:[%s6 + $0x8] sm:$0xf]
  %v3811 = vld [vmem:[%s6 + $0xc] sm:$0xf]
  %v3812 = vld [vmem:[%s7 + $0x3] sm:$0x1]
  %v3813 = vlaneseq
  %v3814 = vshrl.u32 %v3813, 7
  %v3815 = vsub.s32 0, %v3814
  %v3816 = vrot.slane %v3812, %v3815
  %v3821 = vunpack.c.l.b16 %v3808
  %v3822 = vunpack.c.l.b16 %v3809
  %v3823 = vunpack.c.l.b16 %v3810
  %v3824 = vunpack.c.l.b16 %v3811
  %v3825 = vpack.c.b16 %v3822, %v3821
  %v3826 = vpack.c.b16 %v3824, %v3823
  %v3830 = vsel %vm602, %v3807, 0
  %3832 = vmatprep.subr.bf16.mxu0 0
  %3833 = vmatpush1.bf16.msra.mxu0 %v3825
  %3834 = vmatprep.subr.bf16.mxu0 0
  %3835 = vmatpush1.bf16.msra.mxu0 %v3826
  %3836 = vmatprep.subr.bf16.mxu0 0
  %3837 = vmatpush1.bf16.msra.mxu0 0
  %3838 = vmatprep.subr.bf16.mxu0 0
  %3839 = vmatpush1.bf16.msra.mxu0 0
  %3840 = vmatprep.subr.bf16.mxu0 0
  %3841 = vmatpush1.bf16.msra.mxu0 0
  %3842 = vmatprep.subr.bf16.mxu0 0
  %3843 = vmatpush1.bf16.msra.mxu0 0
  %3844 = vmatprep.subr.bf16.mxu0 0
  %3845 = vmatpush1.bf16.msra.mxu0 0
  %3846 = vmatprep.subr.bf16.mxu0 0
  %3847 = vmatpush1.bf16.msra.mxu0 0
  %3848 = vmatprep.subr.bf16.mxu0 0
  %3849 = vmatpush1.bf16.msra.mxu0 0
  %3850 = vmatprep.subr.bf16.mxu0 0
  %3851 = vmatpush1.bf16.msra.mxu0 0
  %3852 = vmatprep.subr.bf16.mxu0 0
  %3853 = vmatpush1.bf16.msra.mxu0 0
  %3854 = vmatprep.subr.bf16.mxu0 0
  %3855 = vmatpush1.bf16.msra.mxu0 0
  %3856 = vmatprep.subr.bf16.mxu0 0
  %3857 = vmatpush1.bf16.msra.mxu0 0
  %3858 = vmatprep.subr.bf16.mxu0 0
  %3859 = vmatpush1.bf16.msra.mxu0 0
  %3860 = vmatprep.subr.bf16.mxu0 0
  %3861 = vmatpush1.bf16.msra.mxu0 0
  %3862 = vmatprep.subr.bf16.mxu0 0
  %3863 = vmatpush1.bf16.msra.mxu0 0
  %3864 = vmatprep.mubr.bf16.mxu0 0
  %3865 = vmatmul.mubr.bf16.gmra.mrb[0].mxu0 %v3830
  %v3866 = vpop.f32.mrb[0].mxu0
  %v3867 = vadd.f32 %v3816, %v3866
  %v3868 = vpop.f32.mrb[0].mxu0
  %v3869 = vpop.f32.mrb[0].mxu0
  %v3870 = vpop.f32.mrb[0].mxu0
  %3871 = vdwg.mxu0
  %vm3872 = vcmask 1024
  %3873 = vst.msk [vmem:[%s8] sm:$0x3] %vm3872, %v3867
  // Predicated region
  $region34: #{deepfam_mha_forward.1} parent=0 // pred_check
    _
  $region35: #{deepfam_mha_forward.1} parent=0 // pred_check_branch
    %3875 = sbr.rel (0) target = $region37
  $region36: #{deepfam_mha_forward.1} parent=0 // pred_region
    _
  $region37: #{deepfam_mha_forward.1} parent=0 // pred_fallthru
    _
  // Predicated region
  $region38: #{deepfam_mha_forward.1} parent=0 // pred_check
    _
  $region39: #{deepfam_mha_forward.1} parent=0 // pred_check_branch
    %3877 = sbr.rel (0) target = $region41
  $region40: #{deepfam_mha_forward.1} parent=0 // pred_region
    _
  $region41: #{deepfam_mha_forward.1} parent=0 // pred_fallthru
    _

</llo_original>
